<compile_context>
chip_gen: v7x
topology: tpu7x:2x2x1
jax: 0.10.0
libtpu: 0.0.40
codegen_flags: <defaults>
</compile_context>

<pallas_src>
import functools

import jax
import jax.numpy as jnp
from jax import lax
from jax.experimental import pallas as pl
from jax.experimental.pallas import tpu as pltpu


# ----------------------------------------------------------------------------------
# Kernel
# ----------------------------------------------------------------------------------
def _nonlocal_kernel(x_ref, wkv_ref, bkv_ref, wth_ref, bth_ref, ww_ref, bw_ref,
                     out_ref, kv_scr, gcm_scr, *, n_qt, d3, ci_p, tq):
    """Grid = (batch, 2*n_qt).

    steps [0, n_qt)      : phase 0 - project + maxpool(1,2,2) keys/values for token chunk s
    steps [n_qt, 2*n_qt) : phase 1 - attention, W projection and residual for query tile s-n_qt

    x_ref  : (1, C, tq) f32    token chunk / query tile of x (channel-major, tokens in lanes)
    wkv_ref: (C, M) bf16       fused [phi | g_0 .. g_{r-1}] projection weights (M = (1+r)*ci_p)
    bkv_ref: (1, M) f32
    wth_ref: (ci_p, C) bf16    theta projection (replica mean folded in)
    bth_ref: (ci_p, 1) f32
    ww_ref : (C, r*ci_p) bf16  block-diagonal W projection back to input channel order
    bw_ref : (C, 1) f32
    out_ref: (1, C, tq) f32    z = W_y + x for this query tile
    kv_scr : (Np, M) bf16      pooled [phi | g], token-major, resident per batch item
    gcm_scr: (r*ci_p, Np) bf16 channel-major copy of pooled g (native orientation for attention)
    """
    s = pl.program_id(1)

    x_tile = x_ref[0]                                   # (C, tq) f32
    x_bf = x_tile.astype(jnp.bfloat16)

    # ----------------- phase 0: project + pool keys / values for this token chunk -----------------
    @pl.when(s < n_qt)
    def _():
        # token-major projection: one fused [phi | g_all-replicas] matmul per chunk
        kv = lax.dot_general(x_bf, wkv_ref[...], (((0,), (0,)), ((), ())),
                             preferred_element_type=jnp.float32) + bkv_ref[...]   # (tq, M)
        m = kv.shape[-1]
        # MaxPool3d(kernel=(1,2,2)): pool d3 pairs, then d2 pairs (sublane-only reshapes)
        a = kv.reshape(tq // 2, 2, m).max(axis=1)
        a = a.reshape(tq // (2 * d3), 2, d3 // 2, m).max(axis=1)
        pooled = a.reshape(tq // 4, m)
        off = pl.multiple_of(s * (tq // 4), tq // 4)
        kv_scr[pl.ds(off, tq // 4), :] = pooled.astype(jnp.bfloat16)

    # once per batch item: channel-major copy of pooled g so the attention matmul is MXU-native
    @pl.when(s == n_qt)
    def _():
        g_tm = kv_scr[:, ci_p:]                                         # (Np, r*ci_p) bf16
        gcm_scr[...] = jnp.transpose(g_tm.astype(jnp.float32)).astype(jnp.bfloat16)

    # ----------------- phase 1: attention + W projection + residual for this query tile -----------
    @pl.when(s >= n_qt)
    def _():
        theta = jnp.dot(wth_ref[...], x_bf,
                        preferred_element_type=jnp.float32) + bth_ref[...]        # (ci_p, tq)
        phi = kv_scr[:, :ci_p]                                                    # (Np, ci_p)

        # scores with keys in the sublane dim -> softmax stats come out as (1, tq) directly
        sc = jnp.dot(phi, theta.astype(jnp.bfloat16),
                     preferred_element_type=jnp.float32)                          # (Np, tq)
        mx = jnp.max(sc, axis=0, keepdims=True)
        e = jnp.exp(sc - mx)                                                      # f32
        denom = jnp.sum(e, axis=0, keepdims=True)                                 # (1, tq)

        # y = softmax(f) @ g for all replicas in one matmul; normalize the narrow result
        y = jnp.dot(gcm_scr[...], e.astype(jnp.bfloat16),
                    preferred_element_type=jnp.float32)                           # (r*ci_p, tq)
        y = y * pl.reciprocal(denom, approx=True)

        wy = jnp.dot(ww_ref[...], y.astype(jnp.bfloat16),
                     preferred_element_type=jnp.float32) + bw_ref[...]            # (C, tq)
        out_ref[0] = (wy + x_tile).astype(out_ref.dtype)


# ----------------------------------------------------------------------------------
# Wrapper (weight folding + layout plumbing only)
# ----------------------------------------------------------------------------------
def _round_up(x, m):
    return ((x + m - 1) // m) * m


def _device_budget():
    """(q_tile cap, vmem_limit_bytes) based on the TPU generation's VMEM size."""
    try:
        info = pltpu.get_tpu_info()
        cap = int(getattr(info, "vmem_capacity_bytes", 0) or 0)
    except Exception:
        cap = 0
    if cap >= 96 * 1024 * 1024:            # v5e / v6e: 128 MiB VMEM -> big tiles
        return 512, 100 * 1024 * 1024
    return 256, 52 * 1024 * 1024           # v7x (64 MiB) or unknown -> conservative


def _pick_q_tile(n_tokens, d3, cap):
    """Largest tile that divides N, keeps pooling chunk-local (mult of 2*d3) and is
    lane-aligned (mult of 128, or the full token count)."""
    step = 2 * d3
    valid = [t for t in range(step, n_tokens + 1, step)
             if n_tokens % t == 0 and (t % 128 == 0 or t == n_tokens)]
    small = [t for t in valid if t <= cap]
    if small:
        return max(small)
    # awkward shapes: take the smallest legal tile (bounds VMEM better than falling back to N)
    return min(valid)


def nonlocal_block_forward(x, params, in_channels, inter_channels, q_tile=None):
    B, C, D1, D2, D3 = x.shape
    assert C % in_channels == 0 and D2 % 2 == 0 and D3 % 2 == 0
    r = C // in_channels
    N = D1 * D2 * D3
    Np = D1 * (D2 // 2) * (D3 // 2)
    ci = inter_channels
    ci_p = _round_up(ci, 128)              # lane-aligned scratch sections / clean MXU tiles
    M = (1 + r) * ci_p

    tq_cap, vmem_limit = _device_budget()
    if q_tile is None:
        q_tile = _pick_q_tile(N, D3, tq_cap)
    assert N % q_tile == 0 and q_tile % (2 * D3) == 0
    assert q_tile % 128 == 0 or q_tile == N
    n_qt = N // q_tile

    f32, bf = jnp.float32, jnp.bfloat16
    eye_r = jnp.eye(r, dtype=f32)

    def pad_rows(w):                       # (ci, C) -> (ci_p, C)
        return jnp.pad(w, ((0, ci_p - ci), (0, 0)))

    # x channel order is c = ic*r + j (ic = in_channel index, j = replica index).
    # Fold the replica mean into theta/phi weights; expand g / W into per-replica blocks.
    w_th_big = pad_rows(jnp.repeat(params["w_theta"].astype(f32), r, axis=1) / r)   # (ci_p, C)
    w_ph_big = pad_rows(jnp.repeat(params["w_phi"].astype(f32), r, axis=1) / r)     # (ci_p, C)
    g_blk = jnp.einsum("qi,jk->jqik", params["w_g"].astype(f32), eye_r).reshape(r, ci, C)
    g_big = jnp.concatenate([pad_rows(g_blk[j]) for j in range(r)], axis=0)         # (r*ci_p, C)
    w_kv = jnp.concatenate([w_ph_big, g_big], axis=0)                               # (M, C)
    b_kv = jnp.concatenate(
        [jnp.pad(params["b_phi"].astype(f32), (0, ci_p - ci))]
        + [jnp.pad(params["b_g"].astype(f32), (0, ci_p - ci))] * r).reshape(1, M)

    w_w_pad = jnp.pad(params["w_w"].astype(f32), ((0, 0), (0, ci_p - ci)))          # (Cin, ci_p)
    w_w_big = jnp.einsum("iq,jk->ijkq", w_w_pad, eye_r).reshape(C, r * ci_p)        # (C, r*ci_p)
    b_w = jnp.repeat(params["b_w"].astype(f32), r).reshape(C, 1)
    b_th = jnp.pad(params["b_theta"].astype(f32), (0, ci_p - ci)).reshape(ci_p, 1)

    x_cn = x.reshape(B, C, N)              # free: merges minor spatial dims only

    kernel = functools.partial(_nonlocal_kernel, n_qt=n_qt, d3=D3, ci_p=ci_p, tq=q_tile)
    const = lambda shape: pl.BlockSpec(shape, lambda b, s: (0, 0))

    out = pl.pallas_call(
        kernel,
        out_shape=jax.ShapeDtypeStruct((B, C, N), jnp.float32),
        grid=(B, 2 * n_qt),
        in_specs=[
            # x streamed per token chunk (phase 0) / per query tile (phase 1)
            pl.BlockSpec((1, C, q_tile), lambda b, s: (b, 0, s % n_qt)),
            const((C, M)), const((1, M)),                 # fused phi|g projection
            const((ci_p, C)), const((ci_p, 1)),           # theta projection
            const((C, r * ci_p)), const((C, 1)),          # W projection
        ],
        out_specs=pl.BlockSpec((1, C, q_tile),
                               lambda b, s: (b, 0, jnp.maximum(s - n_qt, 0))),
        scratch_shapes=[
            pltpu.VMEM((Np, M), bf),                      # pooled [phi | g], token-major
            pltpu.VMEM((r * ci_p, Np), bf),               # pooled g, channel-major
        ],
        compiler_params=pltpu.CompilerParams(
            dimension_semantics=("parallel", "arbitrary"),
            vmem_limit_bytes=vmem_limit,
        ),
    )(x_cn, w_kv.T.astype(bf), b_kv, w_th_big.astype(bf), b_th,
      w_w_big.astype(bf), b_w)

    return out.reshape(B, C, D1, D2, D3)   # free reshape, no transpose


# ----------------------------------------------------------------------------------
# Pure-JAX reference mirroring the PyTorch forward (correctness check)
# ----------------------------------------------------------------------------------
def ref_forward(x, params, in_channels, inter_channels):
    B, C = x.shape[:2]
    r = C // in_channels
    sp = x.shape[2:]

    def conv1x1(inp, w, b):  # NCDHW 1x1x1 conv
        n = inp.shape[0]
        flat = inp.reshape(n, inp.shape[1], -1)
        out = jnp.einsum("oc,ncm->nom", w, flat, precision="highest") + b[None, :, None]
        return out.reshape(n, w.shape[0], *inp.shape[2:])

    def maxpool122(inp):
        n, c, d1, d2, d3 = inp.shape
        return inp.reshape(n, c, d1, d2 // 2, 2, d3 // 2, 2).max(axis=(4, 6))

    x5 = x.reshape(B, in_channels, r, *sp)
    x_pool = x5.mean(axis=2)
    x_g = jnp.swapaxes(x5, 1, 2).reshape(B * r, in_channels, *sp)

    g_x = maxpool122(conv1x1(x_g, params["w_g"], params["b_g"])).reshape(B, r, inter_channels, -1)
    g_x = jnp.swapaxes(g_x, 1, 2).reshape(B, inter_channels * r, -1)
    g_x = jnp.transpose(g_x, (0, 2, 1))

    theta_x = conv1x1(x_pool, params["w_theta"], params["b_theta"]).reshape(B, inter_channels, -1)
    theta_x = jnp.transpose(theta_x, (0, 2, 1))
    phi_x = maxpool122(conv1x1(x_pool, params["w_phi"], params["b_phi"])).reshape(B, inter_channels, -1)

    f = jnp.einsum("bni,bim->bnm", theta_x, phi_x, precision="highest")
    f_div = jax.nn.softmax(f, axis=-1)
    y = jnp.einsum("bnm,bmk->bnk", f_div, g_x, precision="highest")
    y = jnp.transpose(y, (0, 2, 1)).reshape(B, inter_channels, r, *sp)
    y = jnp.swapaxes(y, 1, 2).reshape(B * r, inter_channels, *sp)

    W_y = conv1x1(y, params["w_w"], params["b_w"]).reshape(B, r, in_channels, *sp)
    W_y = jnp.swapaxes(W_y, 1, 2).reshape(B, -1, *sp)
    return W_y + x


# ----------------------------------------------------------------------------------
if __name__ == "__main__":
    # Module config: dimension=3, sub_sample=True, bn_layer=False
    B, in_ch, r = 2, 8, 2
    C = in_ch * r                       # input channels (a multiple of in_channels)
    inter = in_ch // 2                  # inter_channels default
    D1, D2, D3 = 2, 4, 32               # (views, t, v) -> N = 256 tokens, Np = 64 pooled keys

    key = jax.random.PRNGKey(0)
    kx, k1, k2, k3, k4, k5, k6, k7, k8 = jax.random.split(key, 9)
    x = jax.random.normal(kx, (B, C, D1, D2, D3), jnp.float32)

    # NOTE: the PyTorch __init__ zeros the W conv; small deterministic random values are used
    # instead so the whole path (attention + W projection) is exercised by the check.
    params = {
        "w_theta": 0.2 * jax.random.normal(k1, (inter, in_ch), jnp.float32),
        "b_theta": 0.1 * jax.random.normal(k2, (inter,), jnp.float32),
        "w_phi":   0.2 * jax.random.normal(k3, (inter, in_ch), jnp.float32),
        "b_phi":   0.1 * jax.random.normal(k4, (inter,), jnp.float32),
        "w_g":     0.2 * jax.random.normal(k5, (inter, in_ch), jnp.float32),
        "b_g":     0.1 * jax.random.normal(k6, (inter,), jnp.float32),
        "w_w":     0.2 * jax.random.normal(k7, (in_ch, inter), jnp.float32),
        "b_w":     0.1 * jax.random.normal(k8, (in_ch,), jnp.float32),
    }

    # q_tile=128 -> 2 query tiles per batch item, exercising the two-phase streaming path.
    z = nonlocal_block_forward(x, params, in_ch, inter, q_tile=128)
    jax.block_until_ready(z)

    z_ref = ref_forward(x, params, in_ch, inter)
    # bf16 matmul operands + approx reciprocal -> slightly looser tolerance than pure f32
    if not jnp.allclose(z, z_ref, rtol=2e-2, atol=2e-2):
        err = float(jnp.max(jnp.abs(z - z_ref)))
        raise AssertionError(f"Pallas kernel output does not match reference (max abs err {err})")

    print("KERNEL_OK")
</pallas_src>

<mosaic_0001>
module attributes {stable_mosaic.version = 11 : i64} {
  func.func @_nonlocal_kernel(%arg0: i32, %arg1: i32, %arg2: memref<1x16x128xf32, #tpu.memory_space<vmem>>, %arg3: memref<16x384xbf16, #tpu.memory_space<vmem>>, %arg4: memref<1x384xf32, #tpu.memory_space<vmem>>, %arg5: memref<128x16xbf16, #tpu.memory_space<vmem>>, %arg6: memref<128x1xf32, #tpu.memory_space<vmem>>, %arg7: memref<16x256xbf16, #tpu.memory_space<vmem>>, %arg8: memref<16x1xf32, #tpu.memory_space<vmem>>, %arg9: memref<1x16x128xf32, #tpu.memory_space<vmem>>, %arg10: memref<64x384xbf16, #tpu.memory_space<vmem>>, %arg11: memref<256x64xbf16, #tpu.memory_space<vmem>>) attributes {dimension_semantics = [#tpu.dimension_semantics<parallel>, #tpu.dimension_semantics<arbitrary>], iteration_bounds = array<i64: 2, 4>, scalar_prefetch = 0 : i64, scratch_operands = 2 : i64, tpu.core_type = #tpu.core_type<tc>, window_params = [{transform_indices = @transform_0, window_bounds = array<i64: 1, 16, 128>}, {pipeline_mode = #tpu.pipeline_mode<synchronous>, transform_indices = @transform_1, window_bounds = array<i64: 16, 384>}, {pipeline_mode = #tpu.pipeline_mode<synchronous>, transform_indices = @transform_2, window_bounds = array<i64: 1, 384>}, {pipeline_mode = #tpu.pipeline_mode<synchronous>, transform_indices = @transform_3, window_bounds = array<i64: 128, 16>}, {pipeline_mode = #tpu.pipeline_mode<synchronous>, transform_indices = @transform_4, window_bounds = array<i64: 128, 1>}, {pipeline_mode = #tpu.pipeline_mode<synchronous>, transform_indices = @transform_5, window_bounds = array<i64: 16, 256>}, {pipeline_mode = #tpu.pipeline_mode<synchronous>, transform_indices = @transform_6, window_bounds = array<i64: 16, 1>}, {transform_indices = @transform_7, window_bounds = array<i64: 1, 16, 128>}]} {
    %c0 = arith.constant 0 : index
    %c0_0 = arith.constant 0 : index
    %c0_1 = arith.constant 0 : index
    %0 = vector.load %arg2[%c0, %c0_0, %c0_1] : memref<1x16x128xf32, #tpu.memory_space<vmem>>, vector<1x16x128xf32>
    %1 = vector.shape_cast %0 : vector<1x16x128xf32> to vector<16x128xf32>
    %2 = arith.truncf %1 : vector<16x128xf32> to vector<16x128xbf16>
    %c2_i32 = arith.constant 2 : i32
    %3 = arith.cmpi slt, %arg1, %c2_i32 : i32
    %4 = arith.extui %3 : i1 to i32
    %c0_i32 = arith.constant 0 : i32
    %5 = arith.cmpi ne, %4, %c0_i32 : i32
    scf.if %5 {
      %c0_6 = arith.constant 0 : index
      %c0_7 = arith.constant 0 : index
      %12 = vector.load %arg3[%c0_6, %c0_7] : memref<16x384xbf16, #tpu.memory_space<vmem>>, vector<16x384xbf16>
      %cst = arith.constant dense<0.000000e+00> : vector<128x384xf32>
      %13 = tpu.matmul %2, %12, %cst {dimension_numbers = #tpu.dot_dimension_numbers<[0], [0], [1], [1], [0, 1, 1, 1], [], []>} : vector<16x128xbf16>, vector<16x384xbf16>, vector<128x384xf32> -> vector<128x384xf32>
      %c0_8 = arith.constant 0 : index
      %c0_9 = arith.constant 0 : index
      %14 = vector.load %arg4[%c0_8, %c0_9] : memref<1x384xf32, #tpu.memory_space<vmem>>, vector<1x384xf32>
      %15 = vector.broadcast %14 : vector<1x384xf32> to vector<128x384xf32>
      %16 = arith.addf %13, %15 : vector<128x384xf32>
      %17 = vector.shape_cast %16 : vector<128x384xf32> to vector<64x2x384xf32>
      %cst_10 = arith.constant dense<0xFF800000> : vector<64x384xf32>
      %18 = vector.multi_reduction <maximumf>, %17, %cst_10 [1] : vector<64x2x384xf32> to vector<64x384xf32>
      %19 = vector.shape_cast %18 : vector<64x384xf32> to vector<2x2x16x384xf32>
      %cst_11 = arith.constant dense<0xFF800000> : vector<2x16x384xf32>
      %20 = vector.multi_reduction <maximumf>, %19, %cst_11 [1] : vector<2x2x16x384xf32> to vector<2x16x384xf32>
      %21 = vector.shape_cast %20 : vector<2x16x384xf32> to vector<32x384xf32>
      %c32_i32 = arith.constant 32 : i32
      %22 = arith.muli %arg1, %c32_i32 : i32
      %23 = tpu.assume_multiple %22, 32 : i32
      %24 = arith.truncf %21 : vector<32x384xf32> to vector<32x384xbf16>
      %25 = arith.index_cast %23 : i32 to index
      %c0_12 = arith.constant 0 : index
      %26 = vector.load %arg10[%25, %c0_12] : memref<64x384xbf16, #tpu.memory_space<vmem>>, vector<32x384xbf16>
      tpu.vector_store %arg10[%25, %c0_12], %24 {strides = array<i32>} : memref<64x384xbf16, #tpu.memory_space<vmem>>, vector<32x384xbf16>,
    } else {
    }
    %c2_i32_2 = arith.constant 2 : i32
    %6 = arith.cmpi eq, %arg1, %c2_i32_2 : i32
    %7 = arith.extui %6 : i1 to i32
    %c0_i32_3 = arith.constant 0 : i32
    %8 = arith.cmpi ne, %7, %c0_i32_3 : i32
    scf.if %8 {
      %c0_6 = arith.constant 0 : index
      %c128 = arith.constant 128 : index
      %12 = vector.load %arg10[%c0_6, %c128] : memref<64x384xbf16, #tpu.memory_space<vmem>>, vector<64x256xbf16>
      %13 = arith.extf %12 : vector<64x256xbf16> to vector<64x256xf32>
      %14 = tpu.transpose %13, [1, 0] : vector<64x256xf32> -> vector<256x64xf32>
      %15 = arith.truncf %14 : vector<256x64xf32> to vector<256x64xbf16>
      %c0_7 = arith.constant 0 : index
      %c0_8 = arith.constant 0 : index
      %16 = vector.load %arg11[%c0_7, %c0_8] : memref<256x64xbf16, #tpu.memory_space<vmem>>, vector<256x64xbf16>
      tpu.vector_store %arg11[%c0_7, %c0_8], %15 {strides = array<i32>} : memref<256x64xbf16, #tpu.memory_space<vmem>>, vector<256x64xbf16>,
    } else {
    }
    %c2_i32_4 = arith.constant 2 : i32
    %9 = arith.cmpi sge, %arg1, %c2_i32_4 : i32
    %10 = arith.extui %9 : i1 to i32
    %c0_i32_5 = arith.constant 0 : i32
    %11 = arith.cmpi ne, %10, %c0_i32_5 : i32
    scf.if %11 {
      %c0_6 = arith.constant 0 : index
      %c0_7 = arith.constant 0 : index
      %12 = vector.load %arg5[%c0_6, %c0_7] : memref<128x16xbf16, #tpu.memory_space<vmem>>, vector<128x16xbf16>
      %cst = arith.constant dense<0.000000e+00> : vector<128x128xf32>
      %13 = tpu.matmul %12, %2, %cst {dimension_numbers = #tpu.dot_dimension_numbers<[1], [0], [0], [1], [0, 0, 1, 1], [], []>} : vector<128x16xbf16>, vector<16x128xbf16>, vector<128x128xf32> -> vector<128x128xf32>
      %c0_8 = arith.constant 0 : index
      %c0_9 = arith.constant 0 : index
      %14 = vector.load %arg6[%c0_8, %c0_9] : memref<128x1xf32, #tpu.memory_space<vmem>>, vector<128x1xf32>
      %15 = vector.broadcast %14 : vector<128x1xf32> to vector<128x128xf32>
      %16 = arith.addf %13, %15 : vector<128x128xf32>
      %c0_10 = arith.constant 0 : index
      %c0_11 = arith.constant 0 : index
      %17 = vector.load %arg10[%c0_10, %c0_11] : memref<64x384xbf16, #tpu.memory_space<vmem>>, vector<64x128xbf16>
      %18 = arith.truncf %16 : vector<128x128xf32> to vector<128x128xbf16>
      %cst_12 = arith.constant dense<0.000000e+00> : vector<64x128xf32>
      %19 = tpu.matmul %17, %18, %cst_12 {dimension_numbers = #tpu.dot_dimension_numbers<[1], [0], [0], [1], [0, 0, 1, 1], [], []>} : vector<64x128xbf16>, vector<128x128xbf16>, vector<64x128xf32> -> vector<64x128xf32>
      %cst_13 = arith.constant dense<0xFF800000> : vector<128xf32>
      %20 = vector.multi_reduction <maximumf>, %19, %cst_13 [0] : vector<64x128xf32> to vector<128xf32>
      %21 = vector.shape_cast %20 : vector<128xf32> to vector<1x128xf32>
      %22 = vector.broadcast %21 : vector<1x128xf32> to vector<64x128xf32>
      %23 = arith.subf %19, %22 : vector<64x128xf32>
      %24 = math.exp %23 : vector<64x128xf32>
      %cst_14 = arith.constant dense<0.000000e+00> : vector<128xf32>
      %25 = vector.multi_reduction <add>, %24, %cst_14 [0] : vector<64x128xf32> to vector<128xf32>
      %26 = vector.shape_cast %25 : vector<128xf32> to vector<1x128xf32>
      %c0_15 = arith.constant 0 : index
      %c0_16 = arith.constant 0 : index
      %27 = vector.load %arg11[%c0_15, %c0_16] : memref<256x64xbf16, #tpu.memory_space<vmem>>, vector<256x64xbf16>
      %28 = arith.truncf %24 : vector<64x128xf32> to vector<64x128xbf16>
      %cst_17 = arith.constant dense<0.000000e+00> : vector<256x128xf32>
      %29 = tpu.matmul %27, %28, %cst_17 {dimension_numbers = #tpu.dot_dimension_numbers<[1], [0], [0], [1], [0, 0, 1, 1], [], []>} : vector<256x64xbf16>, vector<64x128xbf16>, vector<256x128xf32> -> vector<256x128xf32>
      %30 = tpu.reciprocal %26 {approx = true} : vector<1x128xf32> -> vector<1x128xf32>
      %31 = vector.broadcast %30 : vector<1x128xf32> to vector<256x128xf32>
      %32 = arith.mulf %29, %31 : vector<256x128xf32>
      %c0_18 = arith.constant 0 : index
      %c0_19 = arith.constant 0 : index
      %33 = vector.load %arg7[%c0_18, %c0_19] : memref<16x256xbf16, #tpu.memory_space<vmem>>, vector<16x256xbf16>
      %34 = arith.truncf %32 : vector<256x128xf32> to vector<256x128xbf16>
      %cst_20 = arith.constant dense<0.000000e+00> : vector<16x128xf32>
      %35 = tpu.matmul %33, %34, %cst_20 {dimension_numbers = #tpu.dot_dimension_numbers<[1], [0], [0], [1], [0, 0, 1, 1], [], []>} : vector<16x256xbf16>, vector<256x128xbf16>, vector<16x128xf32> -> vector<16x128xf32>
      %c0_21 = arith.constant 0 : index
      %c0_22 = arith.constant 0 : index
      %36 = vector.load %arg8[%c0_21, %c0_22] : memref<16x1xf32, #tpu.memory_space<vmem>>, vector<16x1xf32>
      %37 = vector.broadcast %36 : vector<16x1xf32> to vector<16x128xf32>
      %38 = arith.addf %35, %37 : vector<16x128xf32>
      %39 = arith.addf %38, %1 : vector<16x128xf32>
      %c0_23 = arith.constant 0 : index
      %c0_24 = arith.constant 0 : index
      %c0_25 = arith.constant 0 : index
      %40 = vector.load %arg9[%c0_23, %c0_24, %c0_25] : memref<1x16x128xf32, #tpu.memory_space<vmem>>, vector<1x16x128xf32>
      %41 = vector.shape_cast %40 : vector<1x16x128xf32> to vector<16x128xf32>
      %42 = vector.shape_cast %39 : vector<16x128xf32> to vector<1x16x128xf32>
      tpu.vector_store %arg9[%c0_23, %c0_24, %c0_25], %42 {strides = array<i32>} : memref<1x16x128xf32, #tpu.memory_space<vmem>>, vector<1x16x128xf32>,
    } else {
    }
    return
  }
  func.func @transform_0(%arg0: i32, %arg1: i32) -> (i32, i32, i32) {
    %c2_i32 = arith.constant 2 : i32
    %c0_i32 = arith.constant 0 : i32
    %0 = arith.cmpi eq, %c2_i32, %c0_i32 : i32
    %c1_i32 = arith.constant 1 : i32
    %1 = arith.select %0, %c1_i32, %c2_i32 : i32
    %2 = arith.remsi %arg1, %1 : i32
    %c0_i32_0 = arith.constant 0 : i32
    %3 = arith.cmpi ne, %2, %c0_i32_0 : i32
    %c0_i32_1 = arith.constant 0 : i32
    %4 = arith.cmpi slt, %2, %c0_i32_1 : i32
    %c0_i32_2 = arith.constant 0 : i32
    %5 = arith.cmpi slt, %1, %c0_i32_2 : i32
    %6 = arith.xori %4, %5 : i1
    %7 = arith.andi %6, %3 : i1
    %8 = arith.addi %2, %1 : i32
    %9 = arith.select %7, %8, %2 : i32
    %c0_i32_3 = arith.constant 0 : i32
    %c0_i32_4 = arith.constant 0 : i32
    return %arg0, %c0_i32_3, %9 : i32, i32, i32
  }
  func.func @transform_1(%arg0: i32, %arg1: i32) -> (i32, i32) {
    %c0_i32 = arith.constant 0 : i32
    %c0_i32_0 = arith.constant 0 : i32
    %c0_i32_1 = arith.constant 0 : i32
    return %c0_i32, %c0_i32_0 : i32, i32
  }
  func.func @transform_2(%arg0: i32, %arg1: i32) -> (i32, i32) {
    %c0_i32 = arith.constant 0 : i32
    %c0_i32_0 = arith.constant 0 : i32
    %c0_i32_1 = arith.constant 0 : i32
    return %c0_i32, %c0_i32_0 : i32, i32
  }
  func.func @transform_3(%arg0: i32, %arg1: i32) -> (i32, i32) {
    %c0_i32 = arith.constant 0 : i32
    %c0_i32_0 = arith.constant 0 : i32
    %c0_i32_1 = arith.constant 0 : i32
    return %c0_i32, %c0_i32_0 : i32, i32
  }
  func.func @transform_4(%arg0: i32, %arg1: i32) -> (i32, i32) {
    %c0_i32 = arith.constant 0 : i32
    %c0_i32_0 = arith.constant 0 : i32
    %c0_i32_1 = arith.constant 0 : i32
    return %c0_i32, %c0_i32_0 : i32, i32
  }
  func.func @transform_5(%arg0: i32, %arg1: i32) -> (i32, i32) {
    %c0_i32 = arith.constant 0 : i32
    %c0_i32_0 = arith.constant 0 : i32
    %c0_i32_1 = arith.constant 0 : i32
    return %c0_i32, %c0_i32_0 : i32, i32
  }
  func.func @transform_6(%arg0: i32, %arg1: i32) -> (i32, i32) {
    %c0_i32 = arith.constant 0 : i32
    %c0_i32_0 = arith.constant 0 : i32
    %c0_i32_1 = arith.constant 0 : i32
    return %c0_i32, %c0_i32_0 : i32, i32
  }
  func.func @transform_7(%arg0: i32, %arg1: i32) -> (i32, i32, i32) {
    %c2_i32 = arith.constant 2 : i32
    %0 = arith.subi %arg1, %c2_i32 : i32
    %c0_i32 = arith.constant 0 : i32
    %1 = arith.maxsi %0, %c0_i32 : i32
    %c0_i32_0 = arith.constant 0 : i32
    %c0_i32_1 = arith.constant 0 : i32
    return %arg0, %c0_i32_0, %1 : i32, i32, i32
  }
}

</mosaic_0001>

<llo_original>
// kernel: tpu_custom_call.1
$region0: #{tpu_custom_call.1}
  #allocation0 [shape = 'u32[]', space=smem, size = 0x4, offset = 0x4, fixed_abs, tag = 'smem constant byte address 0x4 - core index']
  #allocation1 [shape = 'u32[144,128]{1,0:T(1,128)}', space=vmem, size = 0x12000, scoped, tag = 'internal scratch']
  #allocation2 [shape = 'bf16[64,384]{1,0:T(16,128)(2,1)}', space=vmem, size = 0xc000, scoped, tag = 'scratch operand']
  #allocation3 [shape = 'bf16[256,64]{1,0:T(16,128)(2,1)}', space=vmem, size = 0x10000, scoped, tag = 'scratch operand']
  %s0 = inlined_call_operand.vmem [shape: f32[2,16,256], index: 0, kind: input, shape index: {}]
  %s1 = inlined_call_operand.vmem [shape: bf16[16,384], index: 1, kind: input, shape index: {}]
  %s2 = inlined_call_operand.vmem [shape: f32[1,384], index: 2, kind: input, shape index: {}]
  %s3 = inlined_call_operand.vmem [shape: bf16[128,16], index: 3, kind: input, shape index: {}]
  %s4 = inlined_call_operand.vmem [shape: f32[128,1], index: 4, kind: input, shape index: {}]
  %s5 = inlined_call_operand.vmem [shape: bf16[16,256], index: 5, kind: input, shape index: {}]
  %s6 = inlined_call_operand.vmem [shape: f32[16,1], index: 6, kind: input, shape index: {}]
  %s7 = inlined_call_operand.hbm [shape: f32[2,16,256], index: 7, kind: output, shape index: {}]
  %s8 = sld [smem:[#allocation0]]
  $region111: #{tpu_custom_call.1} parent=0
    _
  %s10 = ssub.s32 1, %s8
  %s11 = scalar_select 0, %s10, %s8
  $region1: #{tpu_custom_call.1} parent=0
    #allocation4 [shape = 'u8[16384]{0}', space=vmem, size = 0x4000, scoped, tag = 'input window, operand 0']
    #allocation5 [shape = 'u8[16384]{0}', space=vmem, size = 0x4000, scoped, tag = 'output window, operand 0']
    #allocation6 [shape = 's32[2]{0}', space=sflag, size = 0x8, scoped, tag = 'scoped memory for tpu_custom_call.1']
    %12 = vsyncpa [#allocation6], 0
    %s13 = scalar_lea.sflag [#allocation6], 1
    %14 = vsyncpa %s13, 0
    loop: start=0, step=1, limit=10
    $region2: #{tpu_custom_call.1} parent=1 // loop_pre_header
      _
    $region3: #{tpu_custom_call.1} parent=1 // loop_header
      %s16 = sphi 0, %s20
      %p17 = scmp.ge.s32.totalorder %s16, 10
      %s23 = sphi 0, %s35
      %s24 = sphi 0, %s31
      %s25 = sphi 0, %s23
      %s26 = sphi 0, %s24
      %s27 = sphi 0, %s25
      %s28 = sphi 0, %s26
      %s64 = sphi 0, %s66
      %s67 = sphi 0, %s64
      %s68 = sphi 0, %s67
      %s84 = sphi 0, %s68
      %s88 = sphi 0, %s88
      %s90 = sphi 0, %s88
      %s91 = sphi 0, %s90
      %s105 = sphi 0, %s91
      %s109 = sphi 0, %s109
      %s111 = sphi 0, %s109
      %s112 = sphi 0, %s111
      %s126 = sphi 0, %s112
      %s130 = sphi 0, %s130
      %s132 = sphi 0, %s130
      %s133 = sphi 0, %s132
      %s147 = sphi 0, %s133
      %s151 = sphi 0, %s151
      %s153 = sphi 0, %s151
      %s154 = sphi 0, %s153
      %s168 = sphi 0, %s154
      %s172 = sphi 0, %s172
      %s174 = sphi 0, %s172
      %s175 = sphi 0, %s174
      %s189 = sphi 0, %s175
      %s193 = sphi 0, %s193
      %s195 = sphi 0, %s193
      %s196 = sphi 0, %s195
      %s210 = sphi 0, %s196
      %s224 = sphi 0, %s226
      %s227 = sphi 0, %s224
      %s228 = sphi 0, %s227
      %s244 = sphi 0, %s228
    $region4: #{tpu_custom_call.1} parent=1 // loop_header_branch
      %19 = sbr.rel (%p17) target = $region8
    $region5: #{tpu_custom_call.1} parent=1 // loop_body
      %s21 = ssub.s32 %s16, 1
      %s22 = ssub.s32 %s16, 2
      %s29 = sadd.s32 1, %s24
      %p30 = scmp.ge.s32.totalorder %s29, 4
      %s31 = scalar_select %p30, 0, %s29
      %s32 = sadd.s32 1, %s23
      %s33 = scalar_select %p30, %s32, %s23
      %p34 = scmp.ge.s32.totalorder %s33, 2
      %s35 = scalar_select %p34, 0, %s33
      %p36 = scmp.lt.s32.totalorder %s24, 0
      %s37 = ssub.s32 0, %s24
      %s38 = scalar_select %p36, %s37, %s24
      %s39 = sand.u32 %s38, 1
      %s40 = ssub.s32 0, %s39
      %s41 = scalar_select %p36, %s40, %s39
      %p42 = scmp.ne.s32.totalorder %s41, 0
      %p43 = scmp.lt.s32.totalorder %s41, 0
      %p44 = pnand %p43, %p42
      %p45 = pneg %p44
      %s46 = sadd.s32 %s41, 2
      %s47 = scalar_select %p45, %s46, %s41
      %p48 = scmp.lt.s32.totalorder %s31, 0
      %s49 = ssub.s32 0, %s31
      %s50 = scalar_select %p48, %s49, %s31
      %s51 = sand.u32 %s50, 1
      %s52 = ssub.s32 0, %s51
      %s53 = scalar_select %p48, %s52, %s51
      %p54 = scmp.ne.s32.totalorder %s53, 0
      %p55 = scmp.lt.s32.totalorder %s53, 0
      %p56 = pnand %p55, %p54
      %p57 = pneg %p56
      %s58 = sadd.s32 %s53, 2
      %s59 = scalar_select %p57, %s58, %s53
      %s60 = ssub.s32 %s23, %s35
      %s61 = ssub.s32 %s47, %s59
      %s62 = sor.u32 %s60, %s61
      %p63 = scmp.eq.s32.totalorder %s62, 0
      %s65 = sadd.s32 %s64, 1
      %s66 = scalar_select %p63, %s64, %s65
      %p69 = pneg %p63
      %p70 = scmp.eq.s32.totalorder %s16, 7
      %p71 = por %p69, %p70
      %p72 = scmp.ne.s32.totalorder %s64, %s67
      %p73 = scmp.eq.s32.totalorder %s16, 0
      %p74 = por %p72, %p73
      %p75 = scmp.ne.s32.totalorder %s64, %s67
      %p76 = scmp.eq.s32.totalorder %s21, 7
      %p77 = por %p75, %p76
      %p78 = scmp.ne.s32.totalorder %s67, %s68
      %p79 = scmp.eq.s32.totalorder %s21, 0
      %p80 = por %p78, %p79
      %p81 = scmp.ne.s32.totalorder %s67, %s68
      %p82 = scmp.eq.s32.totalorder %s22, 7
      %p83 = por %p81, %p82
      %p85 = scmp.ne.s32.totalorder %s68, %s84
      %p86 = scmp.eq.s32.totalorder %s22, 0
      %p87 = por %p85, %p86
      %s89 = sadd.s32 %s88, 1
      %p92 = scmp.eq.s32.totalorder %s16, 7
      %p93 = scmp.ne.s32.totalorder %s88, %s90
      %p94 = scmp.eq.s32.totalorder %s16, 0
      %p95 = por %p93, %p94
      %p96 = scmp.ne.s32.totalorder %s88, %s90
      %p97 = scmp.eq.s32.totalorder %s21, 7
      %p98 = por %p96, %p97
      %p99 = scmp.ne.s32.totalorder %s90, %s91
      %p100 = scmp.eq.s32.totalorder %s21, 0
      %p101 = por %p99, %p100
      %p102 = scmp.ne.s32.totalorder %s90, %s91
      %p103 = scmp.eq.s32.totalorder %s22, 7
      %p104 = por %p102, %p103
      %p106 = scmp.ne.s32.totalorder %s91, %s105
      %p107 = scmp.eq.s32.totalorder %s22, 0
      %p108 = por %p106, %p107
      %s110 = sadd.s32 %s109, 1
      %p113 = scmp.eq.s32.totalorder %s16, 7
      %p114 = scmp.ne.s32.totalorder %s109, %s111
      %p115 = scmp.eq.s32.totalorder %s16, 0
      %p116 = por %p114, %p115
      %p117 = scmp.ne.s32.totalorder %s109, %s111
      %p118 = scmp.eq.s32.totalorder %s21, 7
      %p119 = por %p117, %p118
      %p120 = scmp.ne.s32.totalorder %s111, %s112
      %p121 = scmp.eq.s32.totalorder %s21, 0
      %p122 = por %p120, %p121
      %p123 = scmp.ne.s32.totalorder %s111, %s112
      %p124 = scmp.eq.s32.totalorder %s22, 7
      %p125 = por %p123, %p124
      %p127 = scmp.ne.s32.totalorder %s112, %s126
      %p128 = scmp.eq.s32.totalorder %s22, 0
      %p129 = por %p127, %p128
      %s131 = sadd.s32 %s130, 1
      %p134 = scmp.eq.s32.totalorder %s16, 7
      %p135 = scmp.ne.s32.totalorder %s130, %s132
      %p136 = scmp.eq.s32.totalorder %s16, 0
      %p137 = por %p135, %p136
      %p138 = scmp.ne.s32.totalorder %s130, %s132
      %p139 = scmp.eq.s32.totalorder %s21, 7
      %p140 = por %p138, %p139
      %p141 = scmp.ne.s32.totalorder %s132, %s133
      %p142 = scmp.eq.s32.totalorder %s21, 0
      %p143 = por %p141, %p142
      %p144 = scmp.ne.s32.totalorder %s132, %s133
      %p145 = scmp.eq.s32.totalorder %s22, 7
      %p146 = por %p144, %p145
      %p148 = scmp.ne.s32.totalorder %s133, %s147
      %p149 = scmp.eq.s32.totalorder %s22, 0
      %p150 = por %p148, %p149
      %s152 = sadd.s32 %s151, 1
      %p155 = scmp.eq.s32.totalorder %s16, 7
      %p156 = scmp.ne.s32.totalorder %s151, %s153
      %p157 = scmp.eq.s32.totalorder %s16, 0
      %p158 = por %p156, %p157
      %p159 = scmp.ne.s32.totalorder %s151, %s153
      %p160 = scmp.eq.s32.totalorder %s21, 7
      %p161 = por %p159, %p160
      %p162 = scmp.ne.s32.totalorder %s153, %s154
      %p163 = scmp.eq.s32.totalorder %s21, 0
      %p164 = por %p162, %p163
      %p165 = scmp.ne.s32.totalorder %s153, %s154
      %p166 = scmp.eq.s32.totalorder %s22, 7
      %p167 = por %p165, %p166
      %p169 = scmp.ne.s32.totalorder %s154, %s168
      %p170 = scmp.eq.s32.totalorder %s22, 0
      %p171 = por %p169, %p170
      %s173 = sadd.s32 %s172, 1
      %p176 = scmp.eq.s32.totalorder %s16, 7
      %p177 = scmp.ne.s32.totalorder %s172, %s174
      %p178 = scmp.eq.s32.totalorder %s16, 0
      %p179 = por %p177, %p178
      %p180 = scmp.ne.s32.totalorder %s172, %s174
      %p181 = scmp.eq.s32.totalorder %s21, 7
      %p182 = por %p180, %p181
      %p183 = scmp.ne.s32.totalorder %s174, %s175
      %p184 = scmp.eq.s32.totalorder %s21, 0
      %p185 = por %p183, %p184
      %p186 = scmp.ne.s32.totalorder %s174, %s175
      %p187 = scmp.eq.s32.totalorder %s22, 7
      %p188 = por %p186, %p187
      %p190 = scmp.ne.s32.totalorder %s175, %s189
      %p191 = scmp.eq.s32.totalorder %s22, 0
      %p192 = por %p190, %p191
      %s194 = sadd.s32 %s193, 1
      %p197 = scmp.eq.s32.totalorder %s16, 7
      %p198 = scmp.ne.s32.totalorder %s193, %s195
      %p199 = scmp.eq.s32.totalorder %s16, 0
      %p200 = por %p198, %p199
      %p201 = scmp.ne.s32.totalorder %s193, %s195
      %p202 = scmp.eq.s32.totalorder %s21, 7
      %p203 = por %p201, %p202
      %p204 = scmp.ne.s32.totalorder %s195, %s196
      %p205 = scmp.eq.s32.totalorder %s21, 0
      %p206 = por %p204, %p205
      %p207 = scmp.ne.s32.totalorder %s195, %s196
      %p208 = scmp.eq.s32.totalorder %s22, 7
      %p209 = por %p207, %p208
      %p211 = scmp.ne.s32.totalorder %s196, %s210
      %p212 = scmp.eq.s32.totalorder %s22, 0
      %p213 = por %p211, %p212
      %s214 = ssub.s32 %s24, 2
      %p215 = scmp.gt.s32.totalorder %s214, 0
      %s216 = scalar_select %p215, %s214, 0
      %s217 = ssub.s32 %s31, 2
      %p218 = scmp.gt.s32.totalorder %s217, 0
      %s219 = scalar_select %p218, %s217, 0
      %s220 = ssub.s32 %s23, %s35
      %s221 = ssub.s32 %s216, %s219
      %s222 = sor.u32 %s220, %s221
      %p223 = scmp.eq.s32.totalorder %s222, 0
      %s225 = sadd.s32 %s224, 1
      %s226 = scalar_select %p223, %s224, %s225
      %p229 = pneg %p223
      %p230 = scmp.eq.s32.totalorder %s16, 7
      %p231 = por %p229, %p230
      %p232 = scmp.ne.s32.totalorder %s224, %s227
      %p233 = scmp.eq.s32.totalorder %s16, 0
      %p234 = por %p232, %p233
      %p235 = scmp.ne.s32.totalorder %s224, %s227
      %p236 = scmp.eq.s32.totalorder %s21, 7
      %p237 = por %p235, %p236
      %p238 = scmp.ne.s32.totalorder %s227, %s228
      %p239 = scmp.eq.s32.totalorder %s21, 0
      %p240 = por %p238, %p239
      %p241 = scmp.ne.s32.totalorder %s227, %s228
      %p242 = scmp.eq.s32.totalorder %s22, 7
      %p243 = por %p241, %p242
      %p245 = scmp.ne.s32.totalorder %s228, %s244
      %p246 = scmp.eq.s32.totalorder %s22, 0
      %p247 = por %p245, %p246
      %p248 = scmp.le.s32.totalorder 1, %s16
      %p249 = scmp.lt.s32.totalorder %s16, 9
      %p250 = pnand %p248, %p249
      %p251 = pneg %p250
      // Predicated region
      $region9: #{tpu_custom_call.1} parent=5 // pred_check
        _
      $region10: #{tpu_custom_call.1} parent=5 // pred_check_branch
        %253 = sbr.rel (%p250) target = $region12
      $region11: #{tpu_custom_call.1} parent=5 // pred_region
        %s254 = ssub.s32 %s16, 1
        // Predicated region
        $region13: #{tpu_custom_call.1} parent=11 // pred_check
          %p255 = pneg %p101
        $region14: #{tpu_custom_call.1} parent=11 // pred_check_branch
          %257 = sbr.rel (%p255) target = $region16
        $region15: #{tpu_custom_call.1} parent=11 // pred_region
          _
        $region16: #{tpu_custom_call.1} parent=11 // pred_fallthru
          _
        // Predicated region
        $region17: #{tpu_custom_call.1} parent=11 // pred_check
          %p258 = pneg %p122
        $region18: #{tpu_custom_call.1} parent=11 // pred_check_branch
          %260 = sbr.rel (%p258) target = $region20
        $region19: #{tpu_custom_call.1} parent=11 // pred_region
          _
        $region20: #{tpu_custom_call.1} parent=11 // pred_fallthru
          _
        // Predicated region
        $region21: #{tpu_custom_call.1} parent=11 // pred_check
          %p261 = pneg %p143
        $region22: #{tpu_custom_call.1} parent=11 // pred_check_branch
          %263 = sbr.rel (%p261) target = $region24
        $region23: #{tpu_custom_call.1} parent=11 // pred_region
          _
        $region24: #{tpu_custom_call.1} parent=11 // pred_fallthru
          _
        // Predicated region
        $region25: #{tpu_custom_call.1} parent=11 // pred_check
          %p264 = pneg %p164
        $region26: #{tpu_custom_call.1} parent=11 // pred_check_branch
          %266 = sbr.rel (%p264) target = $region28
        $region27: #{tpu_custom_call.1} parent=11 // pred_region
          _
        $region28: #{tpu_custom_call.1} parent=11 // pred_fallthru
          _
        // Predicated region
        $region29: #{tpu_custom_call.1} parent=11 // pred_check
          %p267 = pneg %p185
        $region30: #{tpu_custom_call.1} parent=11 // pred_check_branch
          %269 = sbr.rel (%p267) target = $region32
        $region31: #{tpu_custom_call.1} parent=11 // pred_region
          _
        $region32: #{tpu_custom_call.1} parent=11 // pred_fallthru
          _
        // Predicated region
        $region33: #{tpu_custom_call.1} parent=11 // pred_check
          %p270 = pneg %p206
        $region34: #{tpu_custom_call.1} parent=11 // pred_check_branch
          %272 = sbr.rel (%p270) target = $region36
        $region35: #{tpu_custom_call.1} parent=11 // pred_region
          _
        $region36: #{tpu_custom_call.1} parent=11 // pred_fallthru
          _
      $region12: #{tpu_custom_call.1} parent=5 // pred_fallthru
        _
      %p273 = scmp.lt.s32.totalorder %s16, 8
      // Predicated region
      $region37: #{tpu_custom_call.1} parent=5 // pred_check
        %p274 = pneg %p273
      $region38: #{tpu_custom_call.1} parent=5 // pred_check_branch
        %276 = sbr.rel (%p274) target = $region40
      $region39: #{tpu_custom_call.1} parent=5 // pred_region
        // Predicated region
        $region41: #{tpu_custom_call.1} parent=39 // pred_check
          %p277 = pneg %p74
        $region42: #{tpu_custom_call.1} parent=39 // pred_check_branch
          %279 = sbr.rel (%p277) target = $region44
        $region43: #{tpu_custom_call.1} parent=39 // pred_region
          %s280 = sand.u32 %s64, 1
          %s281 = sand.u32 %s64, 1
          %s282 = smul.addr %s281, 16
          %s283 = scalar_lea.vmem [#allocation4], %s282
          %p284 = scmp.lt.s32.totalorder %s24, 0
          %s285 = ssub.s32 0, %s24
          %s286 = scalar_select %p284, %s285, %s24
          %s287 = sand.u32 %s286, 1
          %s288 = ssub.s32 0, %s287
          %s289 = scalar_select %p284, %s288, %s287
          %p290 = scmp.ne.s32.totalorder %s289, 0
          %p291 = scmp.lt.s32.totalorder %s289, 0
          %p292 = pnand %p291, %p290
          %p293 = pneg %p292
          %s294 = sadd.s32 %s289, 2
          %s295 = scalar_select %p293, %s294, %s289
          %s296 = smul.addr %s23, 4
          %s297 = sadd.s32 %s295, %s296
          %s298 = smul.addr %s297, 8
          %s299 = scalar_lea.vmem %s0, %s298
          // Predicated region
          $region45: #{tpu_custom_call.1} parent=43 // pred_check
            _
          $region46: #{tpu_custom_call.1} parent=43 // pred_check_branch
            %301 = sbr.rel (0) target = $region48
          $region47: #{tpu_custom_call.1} parent=43 // pred_region
            // Predicated region
            $region49: #{tpu_custom_call.1} parent=47 // pred_check
              _
            $region50: #{tpu_custom_call.1} parent=47 // pred_check_branch
              %303 = sbr.rel (0) target = $region52
            $region51: #{tpu_custom_call.1} parent=47 // pred_region
              // Predicated region
              $region64: #{tpu_custom_call.1} parent=51 // pred_check
                _
              $region65: #{tpu_custom_call.1} parent=51 // pred_check_branch
                %320 = sbr.rel (0) target = $region67
              $region66: #{tpu_custom_call.1} parent=51 // pred_region
                loop: start=0, step=1, limit=1
                $region68: #{tpu_custom_call.1} parent=66 // loop_pre_header
                  _
                $region69: #{tpu_custom_call.1} parent=66 // loop_header
                  %s322 = sphi 0, %s326
                  %p323 = scmp.ge.s32.totalorder %s322, 1
                  %s327 = sphi %s299, %s299
                  %s328 = sphi %s283, %s283
                $region70: #{tpu_custom_call.1} parent=66 // loop_header_branch
                  %325 = sbr.rel (%p323) target = $region74
                $region71: #{tpu_custom_call.1} parent=66 // loop_body
                  %v329 = vld [vmem:[%s327] sm:$0xff]
                  %330 = vst [vmem:[%s328] sm:$0xff] %v329
                  %v331 = vld [vmem:[%s327 + $0x10] sm:$0xff]
                  %332 = vst [vmem:[%s328 + $0x8] sm:$0xff] %v331
                $region72: #{tpu_custom_call.1} parent=66 // loop_footer
                  %s326 = sadd.s32 1, %s322
                $region73: #{tpu_custom_call.1} parent=66 // loop_footer_branch
                  %321 = sbr.rel target = $region69
                $region74: #{tpu_custom_call.1} parent=66 // loop_exit
                  _
              $region67: #{tpu_custom_call.1} parent=51 // pred_fallthru
                _
              // Predicated region
              $region75: #{tpu_custom_call.1} parent=51 // pred_check
                _
              $region76: #{tpu_custom_call.1} parent=51 // pred_check_branch
                %334 = sbr.rel target = $region78
              $region77: #{tpu_custom_call.1} parent=51 // pred_region
                _
              $region78: #{tpu_custom_call.1} parent=51 // pred_fallthru
                _
            $region52: #{tpu_custom_call.1} parent=47 // pred_fallthru
              _
            // Predicated region
            $region53: #{tpu_custom_call.1} parent=47 // pred_check
              _
            $region54: #{tpu_custom_call.1} parent=47 // pred_check_branch
              %305 = sbr.rel target = $region56
            $region55: #{tpu_custom_call.1} parent=47 // pred_region
              loop: start=0, step=1, limit=1
              $region57: #{tpu_custom_call.1} parent=55 // loop_pre_header
                _
              $region58: #{tpu_custom_call.1} parent=55 // loop_header
                %s308 = sphi 0, %s312
                %p309 = scmp.ge.s32.totalorder %s308, 1
                %s313 = sphi %s299, %s299
                %s314 = sphi %s283, %s283
              $region59: #{tpu_custom_call.1} parent=55 // loop_header_branch
                %311 = sbr.rel (%p309) target = $region63
              $region60: #{tpu_custom_call.1} parent=55 // loop_body
                %v315 = vld [vmem:[%s313] sm:$0xff]
                %316 = vst [vmem:[%s314] sm:$0xff] %v315
                %v317 = vld [vmem:[%s313 + $0x10] sm:$0xff]
                %318 = vst [vmem:[%s314 + $0x8] sm:$0xff] %v317
              $region61: #{tpu_custom_call.1} parent=55 // loop_footer
                %s312 = sadd.s32 1, %s308
              $region62: #{tpu_custom_call.1} parent=55 // loop_footer_branch
                %307 = sbr.rel target = $region58
              $region63: #{tpu_custom_call.1} parent=55 // loop_exit
                _
            $region56: #{tpu_custom_call.1} parent=47 // pred_fallthru
              _
          $region48: #{tpu_custom_call.1} parent=43 // pred_fallthru
            _
          %335 = vnop
        $region44: #{tpu_custom_call.1} parent=39 // pred_fallthru
          _
      $region40: #{tpu_custom_call.1} parent=5 // pred_fallthru
        _
      %p336 = scmp.le.s32.totalorder 1, %s16
      %p337 = scmp.lt.s32.totalorder %s16, 9
      %p338 = pnand %p336, %p337
      %p339 = pneg %p338
      // Predicated region
      $region79: #{tpu_custom_call.1} parent=5 // pred_check
        _
      $region80: #{tpu_custom_call.1} parent=5 // pred_check_branch
        %341 = sbr.rel (%p338) target = $region82
      $region81: #{tpu_custom_call.1} parent=5 // pred_region
        %s342 = ssub.s32 %s16, 1
        %s343 = sand.u32 %s67, 1
        %s344 = sand.u32 %s67, 1
        %s345 = smul.addr %s344, 16
        %s346 = scalar_lea.vmem [#allocation4], %s345
        // Predicated region
        $region83: #{tpu_custom_call.1} parent=81 // pred_check
          %p347 = pneg %p80
        $region84: #{tpu_custom_call.1} parent=81 // pred_check_branch
          %349 = sbr.rel (%p347) target = $region86
        $region85: #{tpu_custom_call.1} parent=81 // pred_region
          _
        $region86: #{tpu_custom_call.1} parent=81 // pred_fallthru
          _
        %s350 = sand.u32 %s67, 1
        %s351 = sand.u32 %s67, 1
        %s352 = smul.addr %s351, 16
        %s353 = scalar_lea.vmem [#allocation4], %s352
        %p354 = pneg %p80
        %p355 = pneg %p77
        %p356 = pneg %p101
        %p357 = pneg %p98
        %p358 = pneg %p122
        %p359 = pneg %p119
        %p360 = pneg %p143
        %p361 = pneg %p140
        %p362 = pneg %p164
        %p363 = pneg %p161
        %p364 = pneg %p185
        %p365 = pneg %p182
        %p366 = pneg %p206
        %p367 = pneg %p203
        %p368 = pneg %p240
        %p369 = pneg %p237
        %s370 = sand.u32 %s227, 1
        %s371 = scalar_lea.sflag [#allocation6], %s370
        %s372 = sand.u32 %s227, 1
        %s373 = smul.addr %s372, 16
        %s374 = scalar_lea.vmem [#allocation5], %s373
        %p375 = scmp.lt.s32.totalorder %s26, 0
        %s376 = ssub.s32 0, %s26
        %s377 = scalar_select %p375, %s376, %s26
        %s378 = sand.u32 %s377, 1
        %s379 = ssub.s32 0, %s378
        %s380 = scalar_select %p375, %s379, %s378
        %p381 = scmp.ne.s32.totalorder %s380, 0
        %p382 = scmp.lt.s32.totalorder %s380, 0
        %p383 = pnand %p382, %p381
        %p384 = pneg %p383
        %s385 = sadd.s32 %s380, 2
        %s386 = scalar_select %p384, %s385, %s380
        %s387 = ssub.s32 %s26, 2
        %p388 = scmp.gt.s32.totalorder %s387, 0
        %s389 = scalar_select %p388, %s387, 0
        %v391 = vld [vmem:[%s346] sm:$0xff]
        %v392 = vld [vmem:[%s346 + $0x8] sm:$0xff]
        %v393 = vpack.c.bf16 %v392, %v391
        %p394 = scmp.lt.s32.totalorder %s26, 2
        // Predicated region
        $region87: #{tpu_custom_call.1} parent=81 // pred_check
          %p395 = pneg %p394
        $region88: #{tpu_custom_call.1} parent=81 // pred_check_branch
          %397 = sbr.rel (%p395) target = $region90
        $region89: #{tpu_custom_call.1} parent=81 // pred_region
          %v398 = vld [vmem:[%s1] sm:$0xff]
          %v399 = vld [vmem:[%s1 + $0x8] sm:$0xf]
          %v400 = vld [vmem:[%s1 + $0xc] sm:$0xff]
          %v401 = vld [vmem:[%s1 + $0x14] sm:$0xf]
          %v402 = vld [vmem:[%s2] sm:$0x7]
          %v404 = vlaneseq
          %v405 = vshrl.u32 %v404, 7
          %v406 = vsub.s32 0, %v405
          %v407 = vrot.slane %v402, %v406
          %v408 = vlaneseq
          %v409 = vshrl.u32 %v408, 7
          %v410 = vsub.s32 1, %v409
          %v411 = vrot.slane %v402, %v410
          %v412 = vlaneseq
          %v413 = vshrl.u32 %v412, 7
          %v414 = vsub.s32 2, %v413
          %v415 = vrot.slane %v402, %v414
          %419 = vxpose.xlu0.c.b16.start [1/8] %v393, 128
          %420 = vxpose.xlu0.c.b16.cont [2/8] 0, 128
          %421 = vxpose.xlu0.c.b16.cont [3/8] 0, 128
          %422 = vxpose.xlu0.c.b16.cont [4/8] 0, 128
          %423 = vxpose.xlu0.c.b16.cont [5/8] 0, 128
          %424 = vxpose.xlu0.c.b16.cont [6/8] 0, 128
          %425 = vxpose.xlu0.c.b16.cont [7/8] 0, 128
          %426 = vxpose.xlu0.c.b16.end [8/8] 0, 128
          %v427 = vpop.trf.xlu0
          %v428 = vpop.trf.xlu0
          %v429 = vpop.trf.xlu0
          %v430 = vpop.trf.xlu0
          %v431 = vpop.trf.xlu0
          %v432 = vpop.trf.xlu0
          %v433 = vpop.trf.xlu0
          %v434 = vpop.trf.xlu0
          %v439 = vunpack.c.l.b16 %v398
          %v440 = vunpack.c.h.b16 %v398
          %v441 = vunpack.c.l.b16 %v399
          %v442 = vunpack.c.l.b16 %v400
          %v443 = vunpack.c.h.b16 %v400
          %v444 = vunpack.c.l.b16 %v401
          %v445 = vpack.c.b16 %v442, %v439
          %v446 = vpack.c.b16 %v443, %v440
          %v447 = vpack.c.b16 %v444, %v441
          %vm451 = vcmask 130048
          %v453 = vsel %vm451, %v427, 0
          %v456 = vsel %vm451, %v428, 0
          %v459 = vsel %vm451, %v429, 0
          %v462 = vsel %vm451, %v430, 0
          %v465 = vsel %vm451, %v431, 0
          %v468 = vsel %vm451, %v432, 0
          %v471 = vsel %vm451, %v433, 0
          %v474 = vsel %vm451, %v434, 0
          %476 = vmatprep.subr.bf16.mxu0 %v446
          %477 = vmatpush1.bf16.msra.mxu0 %v445
          %478 = vmatprep.subr.bf16.mxu0 0
          %479 = vmatpush1.bf16.msra.mxu0 0
          %480 = vmatprep.subr.bf16.mxu0 0
          %481 = vmatpush1.bf16.msra.mxu0 0
          %482 = vmatprep.subr.bf16.mxu0 0
          %483 = vmatpush1.bf16.msra.mxu0 0
          %484 = vmatprep.subr.bf16.mxu0 0
          %485 = vmatpush1.bf16.msra.mxu0 0
          %486 = vmatprep.subr.bf16.mxu0 0
          %487 = vmatpush1.bf16.msra.mxu0 0
          %488 = vmatprep.subr.bf16.mxu0 0
          %489 = vmatpush1.bf16.msra.mxu0 0
          %490 = vmatprep.subr.bf16.mxu0 0
          %491 = vmatpush1.bf16.msra.mxu0 0
          %492 = vmatprep.subr.bf16.mxu0 0
          %493 = vmatpush1.bf16.msra.mxu0 0
          %494 = vmatprep.subr.bf16.mxu0 0
          %495 = vmatpush1.bf16.msra.mxu0 0
          %496 = vmatprep.subr.bf16.mxu0 0
          %497 = vmatpush1.bf16.msra.mxu0 0
          %498 = vmatprep.subr.bf16.mxu0 0
          %499 = vmatpush1.bf16.msra.mxu0 0
          %500 = vmatprep.subr.bf16.mxu0 0
          %501 = vmatpush1.bf16.msra.mxu0 0
          %502 = vmatprep.subr.bf16.mxu0 0
          %503 = vmatpush1.bf16.msra.mxu0 0
          %504 = vmatprep.subr.bf16.mxu0 0
          %505 = vmatpush1.bf16.msra.mxu0 0
          %506 = vmatprep.subr.bf16.mxu0 0
          %507 = vmatpush1.bf16.msra.mxu0 0
          %508 = vmatprep.mubr.bf16.mxu0 0
          %509 = vmatmul.mubr.bf16.gmra.mrb[0].mxu0 %v453
          %v510 = vpop.f32.mrb[0].mxu0
          %v511 = vadd.f32 %v407, %v510
          %v512 = vpop.f32.mrb[0].mxu0
          %v513 = vadd.f32 %v411, %v512
          %v514 = vpop.f32.mrb[0].mxu0
          %v515 = vadd.f32 %v407, %v514
          %v516 = vpop.f32.mrb[0].mxu0
          %v517 = vadd.f32 %v411, %v516
          %518 = vmatprep.mubr.bf16.mxu0 0
          %519 = vmatmul.mubr.bf16.gmra.mrb[0].mxu0 %v456
          %v520 = vpop.f32.mrb[0].mxu0
          %v521 = vadd.f32 %v407, %v520
          %v522 = vpop.f32.mrb[0].mxu0
          %v523 = vadd.f32 %v411, %v522
          %v524 = vpop.f32.mrb[0].mxu0
          %v525 = vadd.f32 %v407, %v524
          %v526 = vpop.f32.mrb[0].mxu0
          %v527 = vadd.f32 %v411, %v526
          %528 = vmatprep.mubr.bf16.mxu0 0
          %529 = vmatmul.mubr.bf16.gmra.mrb[0].mxu0 %v459
          %v530 = vpop.f32.mrb[0].mxu0
          %v531 = vadd.f32 %v407, %v530
          %v532 = vpop.f32.mrb[0].mxu0
          %v533 = vadd.f32 %v411, %v532
          %v534 = vpop.f32.mrb[0].mxu0
          %v535 = vadd.f32 %v407, %v534
          %v536 = vpop.f32.mrb[0].mxu0
          %v537 = vadd.f32 %v411, %v536
          %538 = vmatprep.mubr.bf16.mxu0 0
          %539 = vmatmul.mubr.bf16.gmra.mrb[0].mxu0 %v462
          %v540 = vpop.f32.mrb[0].mxu0
          %v541 = vadd.f32 %v407, %v540
          %v542 = vpop.f32.mrb[0].mxu0
          %v543 = vadd.f32 %v411, %v542
          %v544 = vpop.f32.mrb[0].mxu0
          %v545 = vadd.f32 %v407, %v544
          %v546 = vpop.f32.mrb[0].mxu0
          %v547 = vadd.f32 %v411, %v546
          %548 = vmatprep.mubr.bf16.mxu0 0
          %549 = vmatmul.mubr.bf16.gmra.mrb[0].mxu0 %v465
          %v550 = vpop.f32.mrb[0].mxu0
          %v551 = vadd.f32 %v407, %v550
          %v552 = vpop.f32.mrb[0].mxu0
          %v553 = vadd.f32 %v411, %v552
          %v554 = vpop.f32.mrb[0].mxu0
          %v555 = vadd.f32 %v407, %v554
          %v556 = vpop.f32.mrb[0].mxu0
          %v557 = vadd.f32 %v411, %v556
          %558 = vmatprep.mubr.bf16.mxu0 0
          %559 = vmatmul.mubr.bf16.gmra.mrb[0].mxu0 %v468
          %v560 = vpop.f32.mrb[0].mxu0
          %v561 = vadd.f32 %v407, %v560
          %v562 = vpop.f32.mrb[0].mxu0
          %v563 = vadd.f32 %v411, %v562
          %v564 = vpop.f32.mrb[0].mxu0
          %v565 = vadd.f32 %v407, %v564
          %v566 = vpop.f32.mrb[0].mxu0
          %v567 = vadd.f32 %v411, %v566
          %568 = vmatprep.mubr.bf16.mxu0 0
          %569 = vmatmul.mubr.bf16.gmra.mrb[0].mxu0 %v471
          %v570 = vpop.f32.mrb[0].mxu0
          %v571 = vadd.f32 %v407, %v570
          %v572 = vpop.f32.mrb[0].mxu0
          %v573 = vadd.f32 %v411, %v572
          %v574 = vpop.f32.mrb[0].mxu0
          %v575 = vadd.f32 %v407, %v574
          %v576 = vpop.f32.mrb[0].mxu0
          %v577 = vadd.f32 %v411, %v576
          %578 = vmatprep.mubr.bf16.mxu0 0
          %579 = vmatmul.mubr.bf16.gmra.mrb[0].mxu0 %v474
          %v580 = vpop.f32.mrb[0].mxu0
          %v581 = vadd.f32 %v407, %v580
          %v582 = vpop.f32.mrb[0].mxu0
          %v583 = vadd.f32 %v411, %v582
          %v584 = vpop.f32.mrb[0].mxu0
          %v585 = vadd.f32 %v407, %v584
          %v586 = vpop.f32.mrb[0].mxu0
          %v587 = vadd.f32 %v411, %v586
          %588 = vdwg.mxu0
          %589 = vmatprep.subr.bf16.mxu0 0
          %590 = vmatpush1.bf16.msra.mxu0 %v447
          %591 = vmatprep.subr.bf16.mxu0 0
          %592 = vmatpush1.bf16.msra.mxu0 0
          %593 = vmatprep.subr.bf16.mxu0 0
          %594 = vmatpush1.bf16.msra.mxu0 0
          %595 = vmatprep.subr.bf16.mxu0 0
          %596 = vmatpush1.bf16.msra.mxu0 0
          %597 = vmatprep.subr.bf16.mxu0 0
          %598 = vmatpush1.bf16.msra.mxu0 0
          %599 = vmatprep.subr.bf16.mxu0 0
          %600 = vmatpush1.bf16.msra.mxu0 0
          %601 = vmatprep.subr.bf16.mxu0 0
          %602 = vmatpush1.bf16.msra.mxu0 0
          %603 = vmatprep.subr.bf16.mxu0 0
          %604 = vmatpush1.bf16.msra.mxu0 0
          %605 = vmatprep.subr.bf16.mxu0 0
          %606 = vmatpush1.bf16.msra.mxu0 0
          %607 = vmatprep.subr.bf16.mxu0 0
          %608 = vmatpush1.bf16.msra.mxu0 0
          %609 = vmatprep.subr.bf16.mxu0 0
          %610 = vmatpush1.bf16.msra.mxu0 0
          %611 = vmatprep.subr.bf16.mxu0 0
          %612 = vmatpush1.bf16.msra.mxu0 0
          %613 = vmatprep.subr.bf16.mxu0 0
          %614 = vmatpush1.bf16.msra.mxu0 0
          %615 = vmatprep.subr.bf16.mxu0 0
          %616 = vmatpush1.bf16.msra.mxu0 0
          %617 = vmatprep.subr.bf16.mxu0 0
          %618 = vmatpush1.bf16.msra.mxu0 0
          %619 = vmatprep.subr.bf16.mxu0 0
          %620 = vmatpush1.bf16.msra.mxu0 0
          %621 = vmatprep.mubr.bf16.mxu0 0
          %622 = vmatmul.mubr.bf16.gmra.mrb[0].mxu0 %v453
          %v623 = vpop.f32.mrb[0].mxu0
          %v624 = vadd.f32 %v415, %v623
          %v625 = vpop.f32.mrb[0].mxu0
          %v626 = vpop.f32.mrb[0].mxu0
          %v627 = vadd.f32 %v415, %v626
          %v628 = vpop.f32.mrb[0].mxu0
          %629 = vmatprep.mubr.bf16.mxu0 0
          %630 = vmatmul.mubr.bf16.gmra.mrb[0].mxu0 %v456
          %v631 = vpop.f32.mrb[0].mxu0
          %v632 = vadd.f32 %v415, %v631
          %v633 = vpop.f32.mrb[0].mxu0
          %v634 = vpop.f32.mrb[0].mxu0
          %v635 = vadd.f32 %v415, %v634
          %v636 = vpop.f32.mrb[0].mxu0
          %637 = vmatprep.mubr.bf16.mxu0 0
          %638 = vmatmul.mubr.bf16.gmra.mrb[0].mxu0 %v459
          %v639 = vpop.f32.mrb[0].mxu0
          %v640 = vadd.f32 %v415, %v639
          %v641 = vpop.f32.mrb[0].mxu0
          %v642 = vpop.f32.mrb[0].mxu0
          %v643 = vadd.f32 %v415, %v642
          %v644 = vpop.f32.mrb[0].mxu0
          %645 = vmatprep.mubr.bf16.mxu0 0
          %646 = vmatmul.mubr.bf16.gmra.mrb[0].mxu0 %v462
          %v647 = vpop.f32.mrb[0].mxu0
          %v648 = vadd.f32 %v415, %v647
          %v649 = vpop.f32.mrb[0].mxu0
          %v650 = vpop.f32.mrb[0].mxu0
          %v651 = vadd.f32 %v415, %v650
          %v652 = vpop.f32.mrb[0].mxu0
          %653 = vmatprep.mubr.bf16.mxu0 0
          %654 = vmatmul.mubr.bf16.gmra.mrb[0].mxu0 %v465
          %v655 = vpop.f32.mrb[0].mxu0
          %v656 = vadd.f32 %v415, %v655
          %v657 = vpop.f32.mrb[0].mxu0
          %v658 = vpop.f32.mrb[0].mxu0
          %v659 = vadd.f32 %v415, %v658
          %v660 = vpop.f32.mrb[0].mxu0
          %661 = vmatprep.mubr.bf16.mxu0 0
          %662 = vmatmul.mubr.bf16.gmra.mrb[0].mxu0 %v468
          %v663 = vpop.f32.mrb[0].mxu0
          %v664 = vadd.f32 %v415, %v663
          %v665 = vpop.f32.mrb[0].mxu0
          %v666 = vpop.f32.mrb[0].mxu0
          %v667 = vadd.f32 %v415, %v666
          %v668 = vpop.f32.mrb[0].mxu0
          %669 = vmatprep.mubr.bf16.mxu0 0
          %670 = vmatmul.mubr.bf16.gmra.mrb[0].mxu0 %v471
          %v671 = vpop.f32.mrb[0].mxu0
          %v672 = vadd.f32 %v415, %v671
          %v673 = vpop.f32.mrb[0].mxu0
          %v674 = vpop.f32.mrb[0].mxu0
          %v675 = vadd.f32 %v415, %v674
          %v676 = vpop.f32.mrb[0].mxu0
          %677 = vmatprep.mubr.bf16.mxu0 0
          %678 = vmatmul.mubr.bf16.gmra.mrb[0].mxu0 %v474
          %v679 = vpop.f32.mrb[0].mxu0
          %v680 = vadd.f32 %v415, %v679
          %v681 = vpop.f32.mrb[0].mxu0
          %v682 = vpop.f32.mrb[0].mxu0
          %v683 = vadd.f32 %v415, %v682
          %v684 = vpop.f32.mrb[0].mxu0
          %685 = vdwg.mxu0
          %v734 = vcombine.low %v511, %v513
          %v735 = vcombine.high %v511, %v513
          %v736 = vcombine.high %v624, %v624
          %v738 = vunpack.c.l.s4 1983009808
          %v739 = vunpack.c.0.s8 %v738
          %v740 = vlaneseq
          %v741 = vshrl.u32 %v740, 7
          %v742 = vsub.s32 %v739, %v741
          %v743 = vrot.slane %v734, %v742
          %v745 = vunpack.c.l.s4 1983009808
          %v746 = vunpack.c.0.s8 %v745
          %v747 = vlaneseq
          %v748 = vshrl.u32 %v747, 7
          %v749 = vsub.s32 %v746, %v748
          %v750 = vrot.slane %v735, %v749
          %v752 = vunpack.c.l.s4 1983009808
          %v753 = vunpack.c.0.s8 %v752
          %v754 = vlaneseq
          %v755 = vshrl.u32 %v754, 7
          %v756 = vsub.s32 %v753, %v755
          %v757 = vrot.slane %v624, %v756
          %v759 = vunpack.c.l.s4 1983009808
          %v760 = vunpack.c.0.s8 %v759
          %v761 = vlaneseq
          %v762 = vshrl.u32 %v761, 7
          %v763 = vsub.s32 %v760, %v762
          %v764 = vrot.slane %v736, %v763
          %v765 = vcombine.low %v743, %v757
          %v766 = vcombine.high %v743, %v757
          %v767 = vcombine.low %v750, %v764
          %v768 = vcombine.high %v750, %v764
          %v769 = vcombine.low %v515, %v517
          %v770 = vcombine.high %v515, %v517
          %v771 = vcombine.high %v627, %v627
          %v773 = vunpack.c.l.s4 1983009808
          %v774 = vunpack.c.0.s8 %v773
          %v775 = vlaneseq
          %v776 = vshrl.u32 %v775, 7
          %v777 = vsub.s32 %v774, %v776
          %v778 = vrot.slane %v769, %v777
          %v780 = vunpack.c.l.s4 1983009808
          %v781 = vunpack.c.0.s8 %v780
          %v782 = vlaneseq
          %v783 = vshrl.u32 %v782, 7
          %v784 = vsub.s32 %v781, %v783
          %v785 = vrot.slane %v770, %v784
          %v787 = vunpack.c.l.s4 1983009808
          %v788 = vunpack.c.0.s8 %v787
          %v789 = vlaneseq
          %v790 = vshrl.u32 %v789, 7
          %v791 = vsub.s32 %v788, %v790
          %v792 = vrot.slane %v627, %v791
          %v794 = vunpack.c.l.s4 1983009808
          %v795 = vunpack.c.0.s8 %v794
          %v796 = vlaneseq
          %v797 = vshrl.u32 %v796, 7
          %v798 = vsub.s32 %v795, %v797
          %v799 = vrot.slane %v771, %v798
          %v800 = vcombine.low %v778, %v792
          %v801 = vcombine.high %v778, %v792
          %v802 = vcombine.low %v785, %v799
          %v803 = vcombine.high %v785, %v799
          %v804 = vcombine.low %v521, %v523
          %v805 = vcombine.high %v521, %v523
          %v806 = vcombine.high %v632, %v632
          %v808 = vunpack.c.l.s4 1983009808
          %v809 = vunpack.c.0.s8 %v808
          %v810 = vlaneseq
          %v811 = vshrl.u32 %v810, 7
          %v812 = vsub.s32 %v809, %v811
          %v813 = vrot.slane %v804, %v812
          %v815 = vunpack.c.l.s4 1983009808
          %v816 = vunpack.c.0.s8 %v815
          %v817 = vlaneseq
          %v818 = vshrl.u32 %v817, 7
          %v819 = vsub.s32 %v816, %v818
          %v820 = vrot.slane %v805, %v819
          %v822 = vunpack.c.l.s4 1983009808
          %v823 = vunpack.c.0.s8 %v822
          %v824 = vlaneseq
          %v825 = vshrl.u32 %v824, 7
          %v826 = vsub.s32 %v823, %v825
          %v827 = vrot.slane %v632, %v826
          %v829 = vunpack.c.l.s4 1983009808
          %v830 = vunpack.c.0.s8 %v829
          %v831 = vlaneseq
          %v832 = vshrl.u32 %v831, 7
          %v833 = vsub.s32 %v830, %v832
          %v834 = vrot.slane %v806, %v833
          %v835 = vcombine.low %v813, %v827
          %v836 = vcombine.high %v813, %v827
          %v837 = vcombine.low %v820, %v834
          %v838 = vcombine.high %v820, %v834
          %v839 = vcombine.low %v525, %v527
          %v840 = vcombine.high %v525, %v527
          %v841 = vcombine.high %v635, %v635
          %v843 = vunpack.c.l.s4 1983009808
          %v844 = vunpack.c.0.s8 %v843
          %v845 = vlaneseq
          %v846 = vshrl.u32 %v845, 7
          %v847 = vsub.s32 %v844, %v846
          %v848 = vrot.slane %v839, %v847
          %v850 = vunpack.c.l.s4 1983009808
          %v851 = vunpack.c.0.s8 %v850
          %v852 = vlaneseq
          %v853 = vshrl.u32 %v852, 7
          %v854 = vsub.s32 %v851, %v853
          %v855 = vrot.slane %v840, %v854
          %v857 = vunpack.c.l.s4 1983009808
          %v858 = vunpack.c.0.s8 %v857
          %v859 = vlaneseq
          %v860 = vshrl.u32 %v859, 7
          %v861 = vsub.s32 %v858, %v860
          %v862 = vrot.slane %v635, %v861
          %v864 = vunpack.c.l.s4 1983009808
          %v865 = vunpack.c.0.s8 %v864
          %v866 = vlaneseq
          %v867 = vshrl.u32 %v866, 7
          %v868 = vsub.s32 %v865, %v867
          %v869 = vrot.slane %v841, %v868
          %v870 = vcombine.low %v848, %v862
          %v871 = vcombine.high %v848, %v862
          %v872 = vcombine.low %v855, %v869
          %v873 = vcombine.high %v855, %v869
          %v874 = vcombine.low %v531, %v533
          %v875 = vcombine.high %v531, %v533
          %v876 = vcombine.high %v640, %v640
          %v878 = vunpack.c.l.s4 1983009808
          %v879 = vunpack.c.0.s8 %v878
          %v880 = vlaneseq
          %v881 = vshrl.u32 %v880, 7
          %v882 = vsub.s32 %v879, %v881
          %v883 = vrot.slane %v874, %v882
          %v885 = vunpack.c.l.s4 1983009808
          %v886 = vunpack.c.0.s8 %v885
          %v887 = vlaneseq
          %v888 = vshrl.u32 %v887, 7
          %v889 = vsub.s32 %v886, %v888
          %v890 = vrot.slane %v875, %v889
          %v892 = vunpack.c.l.s4 1983009808
          %v893 = vunpack.c.0.s8 %v892
          %v894 = vlaneseq
          %v895 = vshrl.u32 %v894, 7
          %v896 = vsub.s32 %v893, %v895
          %v897 = vrot.slane %v640, %v896
          %v899 = vunpack.c.l.s4 1983009808
          %v900 = vunpack.c.0.s8 %v899
          %v901 = vlaneseq
          %v902 = vshrl.u32 %v901, 7
          %v903 = vsub.s32 %v900, %v902
          %v904 = vrot.slane %v876, %v903
          %v905 = vcombine.low %v883, %v897
          %v906 = vcombine.high %v883, %v897
          %v907 = vcombine.low %v890, %v904
          %v908 = vcombine.high %v890, %v904
          %v909 = vcombine.low %v535, %v537
          %v910 = vcombine.high %v535, %v537
          %v911 = vcombine.high %v643, %v643
          %v913 = vunpack.c.l.s4 1983009808
          %v914 = vunpack.c.0.s8 %v913
          %v915 = vlaneseq
          %v916 = vshrl.u32 %v915, 7
          %v917 = vsub.s32 %v914, %v916
          %v918 = vrot.slane %v909, %v917
          %v920 = vunpack.c.l.s4 1983009808
          %v921 = vunpack.c.0.s8 %v920
          %v922 = vlaneseq
          %v923 = vshrl.u32 %v922, 7
          %v924 = vsub.s32 %v921, %v923
          %v925 = vrot.slane %v910, %v924
          %v927 = vunpack.c.l.s4 1983009808
          %v928 = vunpack.c.0.s8 %v927
          %v929 = vlaneseq
          %v930 = vshrl.u32 %v929, 7
          %v931 = vsub.s32 %v928, %v930
          %v932 = vrot.slane %v643, %v931
          %v934 = vunpack.c.l.s4 1983009808
          %v935 = vunpack.c.0.s8 %v934
          %v936 = vlaneseq
          %v937 = vshrl.u32 %v936, 7
          %v938 = vsub.s32 %v935, %v937
          %v939 = vrot.slane %v911, %v938
          %v940 = vcombine.low %v918, %v932
          %v941 = vcombine.high %v918, %v932
          %v942 = vcombine.low %v925, %v939
          %v943 = vcombine.high %v925, %v939
          %v944 = vcombine.low %v541, %v543
          %v945 = vcombine.high %v541, %v543
          %v946 = vcombine.high %v648, %v648
          %v948 = vunpack.c.l.s4 1983009808
          %v949 = vunpack.c.0.s8 %v948
          %v950 = vlaneseq
          %v951 = vshrl.u32 %v950, 7
          %v952 = vsub.s32 %v949, %v951
          %v953 = vrot.slane %v944, %v952
          %v955 = vunpack.c.l.s4 1983009808
          %v956 = vunpack.c.0.s8 %v955
          %v957 = vlaneseq
          %v958 = vshrl.u32 %v957, 7
          %v959 = vsub.s32 %v956, %v958
          %v960 = vrot.slane %v945, %v959
          %v962 = vunpack.c.l.s4 1983009808
          %v963 = vunpack.c.0.s8 %v962
          %v964 = vlaneseq
          %v965 = vshrl.u32 %v964, 7
          %v966 = vsub.s32 %v963, %v965
          %v967 = vrot.slane %v648, %v966
          %v969 = vunpack.c.l.s4 1983009808
          %v970 = vunpack.c.0.s8 %v969
          %v971 = vlaneseq
          %v972 = vshrl.u32 %v971, 7
          %v973 = vsub.s32 %v970, %v972
          %v974 = vrot.slane %v946, %v973
          %v975 = vcombine.low %v953, %v967
          %v976 = vcombine.high %v953, %v967
          %v977 = vcombine.low %v960, %v974
          %v978 = vcombine.high %v960, %v974
          %v979 = vcombine.low %v545, %v547
          %v980 = vcombine.high %v545, %v547
          %v981 = vcombine.high %v651, %v651
          %v983 = vunpack.c.l.s4 1983009808
          %v984 = vunpack.c.0.s8 %v983
          %v985 = vlaneseq
          %v986 = vshrl.u32 %v985, 7
          %v987 = vsub.s32 %v984, %v986
          %v988 = vrot.slane %v979, %v987
          %v990 = vunpack.c.l.s4 1983009808
          %v991 = vunpack.c.0.s8 %v990
          %v992 = vlaneseq
          %v993 = vshrl.u32 %v992, 7
          %v994 = vsub.s32 %v991, %v993
          %v995 = vrot.slane %v980, %v994
          %v997 = vunpack.c.l.s4 1983009808
          %v998 = vunpack.c.0.s8 %v997
          %v999 = vlaneseq
          %v1000 = vshrl.u32 %v999, 7
          %v1001 = vsub.s32 %v998, %v1000
          %v1002 = vrot.slane %v651, %v1001
          %v1004 = vunpack.c.l.s4 1983009808
          %v1005 = vunpack.c.0.s8 %v1004
          %v1006 = vlaneseq
          %v1007 = vshrl.u32 %v1006, 7
          %v1008 = vsub.s32 %v1005, %v1007
          %v1009 = vrot.slane %v981, %v1008
          %v1010 = vcombine.low %v988, %v1002
          %v1011 = vcombine.high %v988, %v1002
          %v1012 = vcombine.low %v995, %v1009
          %v1013 = vcombine.high %v995, %v1009
          %v1014 = vcombine.low %v551, %v553
          %v1015 = vcombine.high %v551, %v553
          %v1016 = vcombine.high %v656, %v656
          %v1018 = vunpack.c.l.s4 1983009808
          %v1019 = vunpack.c.0.s8 %v1018
          %v1020 = vlaneseq
          %v1021 = vshrl.u32 %v1020, 7
          %v1022 = vsub.s32 %v1019, %v1021
          %v1023 = vrot.slane %v1014, %v1022
          %v1025 = vunpack.c.l.s4 1983009808
          %v1026 = vunpack.c.0.s8 %v1025
          %v1027 = vlaneseq
          %v1028 = vshrl.u32 %v1027, 7
          %v1029 = vsub.s32 %v1026, %v1028
          %v1030 = vrot.slane %v1015, %v1029
          %v1032 = vunpack.c.l.s4 1983009808
          %v1033 = vunpack.c.0.s8 %v1032
          %v1034 = vlaneseq
          %v1035 = vshrl.u32 %v1034, 7
          %v1036 = vsub.s32 %v1033, %v1035
          %v1037 = vrot.slane %v656, %v1036
          %v1039 = vunpack.c.l.s4 1983009808
          %v1040 = vunpack.c.0.s8 %v1039
          %v1041 = vlaneseq
          %v1042 = vshrl.u32 %v1041, 7
          %v1043 = vsub.s32 %v1040, %v1042
          %v1044 = vrot.slane %v1016, %v1043
          %v1045 = vcombine.low %v1023, %v1037
          %v1046 = vcombine.high %v1023, %v1037
          %v1047 = vcombine.low %v1030, %v1044
          %v1048 = vcombine.high %v1030, %v1044
          %v1049 = vcombine.low %v555, %v557
          %v1050 = vcombine.high %v555, %v557
          %v1051 = vcombine.high %v659, %v659
          %v1053 = vunpack.c.l.s4 1983009808
          %v1054 = vunpack.c.0.s8 %v1053
          %v1055 = vlaneseq
          %v1056 = vshrl.u32 %v1055, 7
          %v1057 = vsub.s32 %v1054, %v1056
          %v1058 = vrot.slane %v1049, %v1057
          %v1060 = vunpack.c.l.s4 1983009808
          %v1061 = vunpack.c.0.s8 %v1060
          %v1062 = vlaneseq
          %v1063 = vshrl.u32 %v1062, 7
          %v1064 = vsub.s32 %v1061, %v1063
          %v1065 = vrot.slane %v1050, %v1064
          %v1067 = vunpack.c.l.s4 1983009808
          %v1068 = vunpack.c.0.s8 %v1067
          %v1069 = vlaneseq
          %v1070 = vshrl.u32 %v1069, 7
          %v1071 = vsub.s32 %v1068, %v1070
          %v1072 = vrot.slane %v659, %v1071
          %v1074 = vunpack.c.l.s4 1983009808
          %v1075 = vunpack.c.0.s8 %v1074
          %v1076 = vlaneseq
          %v1077 = vshrl.u32 %v1076, 7
          %v1078 = vsub.s32 %v1075, %v1077
          %v1079 = vrot.slane %v1051, %v1078
          %v1080 = vcombine.low %v1058, %v1072
          %v1081 = vcombine.high %v1058, %v1072
          %v1082 = vcombine.low %v1065, %v1079
          %v1083 = vcombine.high %v1065, %v1079
          %v1084 = vcombine.low %v561, %v563
          %v1085 = vcombine.high %v561, %v563
          %v1086 = vcombine.high %v664, %v664
          %v1088 = vunpack.c.l.s4 1983009808
          %v1089 = vunpack.c.0.s8 %v1088
          %v1090 = vlaneseq
          %v1091 = vshrl.u32 %v1090, 7
          %v1092 = vsub.s32 %v1089, %v1091
          %v1093 = vrot.slane %v1084, %v1092
          %v1095 = vunpack.c.l.s4 1983009808
          %v1096 = vunpack.c.0.s8 %v1095
          %v1097 = vlaneseq
          %v1098 = vshrl.u32 %v1097, 7
          %v1099 = vsub.s32 %v1096, %v1098
          %v1100 = vrot.slane %v1085, %v1099
          %v1102 = vunpack.c.l.s4 1983009808
          %v1103 = vunpack.c.0.s8 %v1102
          %v1104 = vlaneseq
          %v1105 = vshrl.u32 %v1104, 7
          %v1106 = vsub.s32 %v1103, %v1105
          %v1107 = vrot.slane %v664, %v1106
          %v1109 = vunpack.c.l.s4 1983009808
          %v1110 = vunpack.c.0.s8 %v1109
          %v1111 = vlaneseq
          %v1112 = vshrl.u32 %v1111, 7
          %v1113 = vsub.s32 %v1110, %v1112
          %v1114 = vrot.slane %v1086, %v1113
          %v1115 = vcombine.low %v1093, %v1107
          %v1116 = vcombine.high %v1093, %v1107
          %v1117 = vcombine.low %v1100, %v1114
          %v1118 = vcombine.high %v1100, %v1114
          %v1119 = vcombine.low %v565, %v567
          %v1120 = vcombine.high %v565, %v567
          %v1121 = vcombine.high %v667, %v667
          %v1123 = vunpack.c.l.s4 1983009808
          %v1124 = vunpack.c.0.s8 %v1123
          %v1125 = vlaneseq
          %v1126 = vshrl.u32 %v1125, 7
          %v1127 = vsub.s32 %v1124, %v1126
          %v1128 = vrot.slane %v1119, %v1127
          %v1130 = vunpack.c.l.s4 1983009808
          %v1131 = vunpack.c.0.s8 %v1130
          %v1132 = vlaneseq
          %v1133 = vshrl.u32 %v1132, 7
          %v1134 = vsub.s32 %v1131, %v1133
          %v1135 = vrot.slane %v1120, %v1134
          %v1137 = vunpack.c.l.s4 1983009808
          %v1138 = vunpack.c.0.s8 %v1137
          %v1139 = vlaneseq
          %v1140 = vshrl.u32 %v1139, 7
          %v1141 = vsub.s32 %v1138, %v1140
          %v1142 = vrot.slane %v667, %v1141
          %v1144 = vunpack.c.l.s4 1983009808
          %v1145 = vunpack.c.0.s8 %v1144
          %v1146 = vlaneseq
          %v1147 = vshrl.u32 %v1146, 7
          %v1148 = vsub.s32 %v1145, %v1147
          %v1149 = vrot.slane %v1121, %v1148
          %v1150 = vcombine.low %v1128, %v1142
          %v1151 = vcombine.high %v1128, %v1142
          %v1152 = vcombine.low %v1135, %v1149
          %v1153 = vcombine.high %v1135, %v1149
          %v1154 = vcombine.low %v571, %v573
          %v1155 = vcombine.high %v571, %v573
          %v1156 = vcombine.high %v672, %v672
          %v1158 = vunpack.c.l.s4 1983009808
          %v1159 = vunpack.c.0.s8 %v1158
          %v1160 = vlaneseq
          %v1161 = vshrl.u32 %v1160, 7
          %v1162 = vsub.s32 %v1159, %v1161
          %v1163 = vrot.slane %v1154, %v1162
          %v1165 = vunpack.c.l.s4 1983009808
          %v1166 = vunpack.c.0.s8 %v1165
          %v1167 = vlaneseq
          %v1168 = vshrl.u32 %v1167, 7
          %v1169 = vsub.s32 %v1166, %v1168
          %v1170 = vrot.slane %v1155, %v1169
          %v1172 = vunpack.c.l.s4 1983009808
          %v1173 = vunpack.c.0.s8 %v1172
          %v1174 = vlaneseq
          %v1175 = vshrl.u32 %v1174, 7
          %v1176 = vsub.s32 %v1173, %v1175
          %v1177 = vrot.slane %v672, %v1176
          %v1179 = vunpack.c.l.s4 1983009808
          %v1180 = vunpack.c.0.s8 %v1179
          %v1181 = vlaneseq
          %v1182 = vshrl.u32 %v1181, 7
          %v1183 = vsub.s32 %v1180, %v1182
          %v1184 = vrot.slane %v1156, %v1183
          %v1185 = vcombine.low %v1163, %v1177
          %v1186 = vcombine.high %v1163, %v1177
          %v1187 = vcombine.low %v1170, %v1184
          %v1188 = vcombine.high %v1170, %v1184
          %v1189 = vcombine.low %v575, %v577
          %v1190 = vcombine.high %v575, %v577
          %v1191 = vcombine.high %v675, %v675
          %v1193 = vunpack.c.l.s4 1983009808
          %v1194 = vunpack.c.0.s8 %v1193
          %v1195 = vlaneseq
          %v1196 = vshrl.u32 %v1195, 7
          %v1197 = vsub.s32 %v1194, %v1196
          %v1198 = vrot.slane %v1189, %v1197
          %v1200 = vunpack.c.l.s4 1983009808
          %v1201 = vunpack.c.0.s8 %v1200
          %v1202 = vlaneseq
          %v1203 = vshrl.u32 %v1202, 7
          %v1204 = vsub.s32 %v1201, %v1203
          %v1205 = vrot.slane %v1190, %v1204
          %v1207 = vunpack.c.l.s4 1983009808
          %v1208 = vunpack.c.0.s8 %v1207
          %v1209 = vlaneseq
          %v1210 = vshrl.u32 %v1209, 7
          %v1211 = vsub.s32 %v1208, %v1210
          %v1212 = vrot.slane %v675, %v1211
          %v1214 = vunpack.c.l.s4 1983009808
          %v1215 = vunpack.c.0.s8 %v1214
          %v1216 = vlaneseq
          %v1217 = vshrl.u32 %v1216, 7
          %v1218 = vsub.s32 %v1215, %v1217
          %v1219 = vrot.slane %v1191, %v1218
          %v1220 = vcombine.low %v1198, %v1212
          %v1221 = vcombine.high %v1198, %v1212
          %v1222 = vcombine.low %v1205, %v1219
          %v1223 = vcombine.high %v1205, %v1219
          %v1224 = vcombine.low %v581, %v583
          %v1225 = vcombine.high %v581, %v583
          %v1226 = vcombine.high %v680, %v680
          %v1228 = vunpack.c.l.s4 1983009808
          %v1229 = vunpack.c.0.s8 %v1228
          %v1230 = vlaneseq
          %v1231 = vshrl.u32 %v1230, 7
          %v1232 = vsub.s32 %v1229, %v1231
          %v1233 = vrot.slane %v1224, %v1232
          %v1235 = vunpack.c.l.s4 1983009808
          %v1236 = vunpack.c.0.s8 %v1235
          %v1237 = vlaneseq
          %v1238 = vshrl.u32 %v1237, 7
          %v1239 = vsub.s32 %v1236, %v1238
          %v1240 = vrot.slane %v1225, %v1239
          %v1242 = vunpack.c.l.s4 1983009808
          %v1243 = vunpack.c.0.s8 %v1242
          %v1244 = vlaneseq
          %v1245 = vshrl.u32 %v1244, 7
          %v1246 = vsub.s32 %v1243, %v1245
          %v1247 = vrot.slane %v680, %v1246
          %v1249 = vunpack.c.l.s4 1983009808
          %v1250 = vunpack.c.0.s8 %v1249
          %v1251 = vlaneseq
          %v1252 = vshrl.u32 %v1251, 7
          %v1253 = vsub.s32 %v1250, %v1252
          %v1254 = vrot.slane %v1226, %v1253
          %v1255 = vcombine.low %v1233, %v1247
          %v1256 = vcombine.high %v1233, %v1247
          %v1257 = vcombine.low %v1240, %v1254
          %v1258 = vcombine.high %v1240, %v1254
          %v1259 = vcombine.low %v585, %v587
          %v1260 = vcombine.high %v585, %v587
          %v1261 = vcombine.high %v683, %v683
          %v1263 = vunpack.c.l.s4 1983009808
          %v1264 = vunpack.c.0.s8 %v1263
          %v1265 = vlaneseq
          %v1266 = vshrl.u32 %v1265, 7
          %v1267 = vsub.s32 %v1264, %v1266
          %v1268 = vrot.slane %v1259, %v1267
          %v1270 = vunpack.c.l.s4 1983009808
          %v1271 = vunpack.c.0.s8 %v1270
          %v1272 = vlaneseq
          %v1273 = vshrl.u32 %v1272, 7
          %v1274 = vsub.s32 %v1271, %v1273
          %v1275 = vrot.slane %v1260, %v1274
          %v1277 = vunpack.c.l.s4 1983009808
          %v1278 = vunpack.c.0.s8 %v1277
          %v1279 = vlaneseq
          %v1280 = vshrl.u32 %v1279, 7
          %v1281 = vsub.s32 %v1278, %v1280
          %v1282 = vrot.slane %v683, %v1281
          %v1284 = vunpack.c.l.s4 1983009808
          %v1285 = vunpack.c.0.s8 %v1284
          %v1286 = vlaneseq
          %v1287 = vshrl.u32 %v1286, 7
          %v1288 = vsub.s32 %v1285, %v1287
          %v1289 = vrot.slane %v1261, %v1288
          %v1290 = vcombine.low %v1268, %v1282
          %v1291 = vcombine.high %v1268, %v1282
          %v1292 = vcombine.low %v1275, %v1289
          %v1293 = vcombine.high %v1275, %v1289
          %v1294 = vcombine.high %v765, %v765
          %v1296 = vunpack.c.l.s4 1983009808
          %v1297 = vunpack.c.0.s8 %v1296
          %v1298 = vlaneseq
          %v1299 = vshrl.u32 %v1298, 7
          %v1300 = vsub.s32 %v1297, %v1299
          %v1301 = vrot.slane %v765, %v1300
          %v1303 = vunpack.c.l.s4 1983009808
          %v1304 = vunpack.c.0.s8 %v1303
          %v1305 = vlaneseq
          %v1306 = vshrl.u32 %v1305, 7
          %v1307 = vsub.s32 %v1304, %v1306
          %v1308 = vrot.slane %v1294, %v1307
          %v1309 = vcombine.high %v1301, %v1301
          %v1310 = vcombine.high %v766, %v766
          %v1312 = vunpack.c.l.s4 1983009808
          %v1313 = vunpack.c.0.s8 %v1312
          %v1314 = vlaneseq
          %v1315 = vshrl.u32 %v1314, 7
          %v1316 = vsub.s32 %v1313, %v1315
          %v1317 = vrot.slane %v766, %v1316
          %v1319 = vunpack.c.l.s4 1983009808
          %v1320 = vunpack.c.0.s8 %v1319
          %v1321 = vlaneseq
          %v1322 = vshrl.u32 %v1321, 7
          %v1323 = vsub.s32 %v1320, %v1322
          %v1324 = vrot.slane %v1310, %v1323
          %v1325 = vcombine.high %v1317, %v1317
          %v1326 = vcombine.high %v767, %v767
          %v1328 = vunpack.c.l.s4 1983009808
          %v1329 = vunpack.c.0.s8 %v1328
          %v1330 = vlaneseq
          %v1331 = vshrl.u32 %v1330, 7
          %v1332 = vsub.s32 %v1329, %v1331
          %v1333 = vrot.slane %v767, %v1332
          %v1335 = vunpack.c.l.s4 1983009808
          %v1336 = vunpack.c.0.s8 %v1335
          %v1337 = vlaneseq
          %v1338 = vshrl.u32 %v1337, 7
          %v1339 = vsub.s32 %v1336, %v1338
          %v1340 = vrot.slane %v1326, %v1339
          %v1341 = vcombine.high %v1333, %v1333
          %v1342 = vcombine.high %v768, %v768
          %v1344 = vunpack.c.l.s4 1983009808
          %v1345 = vunpack.c.0.s8 %v1344
          %v1346 = vlaneseq
          %v1347 = vshrl.u32 %v1346, 7
          %v1348 = vsub.s32 %v1345, %v1347
          %v1349 = vrot.slane %v768, %v1348
          %v1351 = vunpack.c.l.s4 1983009808
          %v1352 = vunpack.c.0.s8 %v1351
          %v1353 = vlaneseq
          %v1354 = vshrl.u32 %v1353, 7
          %v1355 = vsub.s32 %v1352, %v1354
          %v1356 = vrot.slane %v1342, %v1355
          %v1357 = vcombine.high %v1349, %v1349
          %v1358 = vcombine.high %v800, %v800
          %v1360 = vunpack.c.l.s4 1983009808
          %v1361 = vunpack.c.0.s8 %v1360
          %v1362 = vlaneseq
          %v1363 = vshrl.u32 %v1362, 7
          %v1364 = vsub.s32 %v1361, %v1363
          %v1365 = vrot.slane %v800, %v1364
          %v1367 = vunpack.c.l.s4 1983009808
          %v1368 = vunpack.c.0.s8 %v1367
          %v1369 = vlaneseq
          %v1370 = vshrl.u32 %v1369, 7
          %v1371 = vsub.s32 %v1368, %v1370
          %v1372 = vrot.slane %v1358, %v1371
          %v1373 = vcombine.high %v1365, %v1365
          %v1374 = vcombine.high %v801, %v801
          %v1376 = vunpack.c.l.s4 1983009808
          %v1377 = vunpack.c.0.s8 %v1376
          %v1378 = vlaneseq
          %v1379 = vshrl.u32 %v1378, 7
          %v1380 = vsub.s32 %v1377, %v1379
          %v1381 = vrot.slane %v801, %v1380
          %v1383 = vunpack.c.l.s4 1983009808
          %v1384 = vunpack.c.0.s8 %v1383
          %v1385 = vlaneseq
          %v1386 = vshrl.u32 %v1385, 7
          %v1387 = vsub.s32 %v1384, %v1386
          %v1388 = vrot.slane %v1374, %v1387
          %v1389 = vcombine.high %v1381, %v1381
          %v1390 = vcombine.high %v802, %v802
          %v1392 = vunpack.c.l.s4 1983009808
          %v1393 = vunpack.c.0.s8 %v1392
          %v1394 = vlaneseq
          %v1395 = vshrl.u32 %v1394, 7
          %v1396 = vsub.s32 %v1393, %v1395
          %v1397 = vrot.slane %v802, %v1396
          %v1399 = vunpack.c.l.s4 1983009808
          %v1400 = vunpack.c.0.s8 %v1399
          %v1401 = vlaneseq
          %v1402 = vshrl.u32 %v1401, 7
          %v1403 = vsub.s32 %v1400, %v1402
          %v1404 = vrot.slane %v1390, %v1403
          %v1405 = vcombine.high %v1397, %v1397
          %v1406 = vcombine.high %v803, %v803
          %v1408 = vunpack.c.l.s4 1983009808
          %v1409 = vunpack.c.0.s8 %v1408
          %v1410 = vlaneseq
          %v1411 = vshrl.u32 %v1410, 7
          %v1412 = vsub.s32 %v1409, %v1411
          %v1413 = vrot.slane %v803, %v1412
          %v1415 = vunpack.c.l.s4 1983009808
          %v1416 = vunpack.c.0.s8 %v1415
          %v1417 = vlaneseq
          %v1418 = vshrl.u32 %v1417, 7
          %v1419 = vsub.s32 %v1416, %v1418
          %v1420 = vrot.slane %v1406, %v1419
          %v1421 = vcombine.high %v1413, %v1413
          %v1422 = vcombine.high %v835, %v835
          %v1424 = vunpack.c.l.s4 1983009808
          %v1425 = vunpack.c.0.s8 %v1424
          %v1426 = vlaneseq
          %v1427 = vshrl.u32 %v1426, 7
          %v1428 = vsub.s32 %v1425, %v1427
          %v1429 = vrot.slane %v835, %v1428
          %v1431 = vunpack.c.l.s4 1983009808
          %v1432 = vunpack.c.0.s8 %v1431
          %v1433 = vlaneseq
          %v1434 = vshrl.u32 %v1433, 7
          %v1435 = vsub.s32 %v1432, %v1434
          %v1436 = vrot.slane %v1422, %v1435
          %v1437 = vcombine.high %v1429, %v1429
          %v1438 = vcombine.high %v836, %v836
          %v1440 = vunpack.c.l.s4 1983009808
          %v1441 = vunpack.c.0.s8 %v1440
          %v1442 = vlaneseq
          %v1443 = vshrl.u32 %v1442, 7
          %v1444 = vsub.s32 %v1441, %v1443
          %v1445 = vrot.slane %v836, %v1444
          %v1447 = vunpack.c.l.s4 1983009808
          %v1448 = vunpack.c.0.s8 %v1447
          %v1449 = vlaneseq
          %v1450 = vshrl.u32 %v1449, 7
          %v1451 = vsub.s32 %v1448, %v1450
          %v1452 = vrot.slane %v1438, %v1451
          %v1453 = vcombine.high %v1445, %v1445
          %v1454 = vcombine.high %v837, %v837
          %v1456 = vunpack.c.l.s4 1983009808
          %v1457 = vunpack.c.0.s8 %v1456
          %v1458 = vlaneseq
          %v1459 = vshrl.u32 %v1458, 7
          %v1460 = vsub.s32 %v1457, %v1459
          %v1461 = vrot.slane %v837, %v1460
          %v1463 = vunpack.c.l.s4 1983009808
          %v1464 = vunpack.c.0.s8 %v1463
          %v1465 = vlaneseq
          %v1466 = vshrl.u32 %v1465, 7
          %v1467 = vsub.s32 %v1464, %v1466
          %v1468 = vrot.slane %v1454, %v1467
          %v1469 = vcombine.high %v1461, %v1461
          %v1470 = vcombine.high %v838, %v838
          %v1472 = vunpack.c.l.s4 1983009808
          %v1473 = vunpack.c.0.s8 %v1472
          %v1474 = vlaneseq
          %v1475 = vshrl.u32 %v1474, 7
          %v1476 = vsub.s32 %v1473, %v1475
          %v1477 = vrot.slane %v838, %v1476
          %v1479 = vunpack.c.l.s4 1983009808
          %v1480 = vunpack.c.0.s8 %v1479
          %v1481 = vlaneseq
          %v1482 = vshrl.u32 %v1481, 7
          %v1483 = vsub.s32 %v1480, %v1482
          %v1484 = vrot.slane %v1470, %v1483
          %v1485 = vcombine.high %v1477, %v1477
          %v1486 = vcombine.high %v870, %v870
          %v1488 = vunpack.c.l.s4 1983009808
          %v1489 = vunpack.c.0.s8 %v1488
          %v1490 = vlaneseq
          %v1491 = vshrl.u32 %v1490, 7
          %v1492 = vsub.s32 %v1489, %v1491
          %v1493 = vrot.slane %v870, %v1492
          %v1495 = vunpack.c.l.s4 1983009808
          %v1496 = vunpack.c.0.s8 %v1495
          %v1497 = vlaneseq
          %v1498 = vshrl.u32 %v1497, 7
          %v1499 = vsub.s32 %v1496, %v1498
          %v1500 = vrot.slane %v1486, %v1499
          %v1501 = vcombine.high %v1493, %v1493
          %v1502 = vcombine.high %v871, %v871
          %v1504 = vunpack.c.l.s4 1983009808
          %v1505 = vunpack.c.0.s8 %v1504
          %v1506 = vlaneseq
          %v1507 = vshrl.u32 %v1506, 7
          %v1508 = vsub.s32 %v1505, %v1507
          %v1509 = vrot.slane %v871, %v1508
          %v1511 = vunpack.c.l.s4 1983009808
          %v1512 = vunpack.c.0.s8 %v1511
          %v1513 = vlaneseq
          %v1514 = vshrl.u32 %v1513, 7
          %v1515 = vsub.s32 %v1512, %v1514
          %v1516 = vrot.slane %v1502, %v1515
          %v1517 = vcombine.high %v1509, %v1509
          %v1518 = vcombine.high %v872, %v872
          %v1520 = vunpack.c.l.s4 1983009808
          %v1521 = vunpack.c.0.s8 %v1520
          %v1522 = vlaneseq
          %v1523 = vshrl.u32 %v1522, 7
          %v1524 = vsub.s32 %v1521, %v1523
          %v1525 = vrot.slane %v872, %v1524
          %v1527 = vunpack.c.l.s4 1983009808
          %v1528 = vunpack.c.0.s8 %v1527
          %v1529 = vlaneseq
          %v1530 = vshrl.u32 %v1529, 7
          %v1531 = vsub.s32 %v1528, %v1530
          %v1532 = vrot.slane %v1518, %v1531
          %v1533 = vcombine.high %v1525, %v1525
          %v1534 = vcombine.high %v873, %v873
          %v1536 = vunpack.c.l.s4 1983009808
          %v1537 = vunpack.c.0.s8 %v1536
          %v1538 = vlaneseq
          %v1539 = vshrl.u32 %v1538, 7
          %v1540 = vsub.s32 %v1537, %v1539
          %v1541 = vrot.slane %v873, %v1540
          %v1543 = vunpack.c.l.s4 1983009808
          %v1544 = vunpack.c.0.s8 %v1543
          %v1545 = vlaneseq
          %v1546 = vshrl.u32 %v1545, 7
          %v1547 = vsub.s32 %v1544, %v1546
          %v1548 = vrot.slane %v1534, %v1547
          %v1549 = vcombine.high %v1541, %v1541
          %v1550 = vcombine.high %v905, %v905
          %v1552 = vunpack.c.l.s4 1983009808
          %v1553 = vunpack.c.0.s8 %v1552
          %v1554 = vlaneseq
          %v1555 = vshrl.u32 %v1554, 7
          %v1556 = vsub.s32 %v1553, %v1555
          %v1557 = vrot.slane %v905, %v1556
          %v1559 = vunpack.c.l.s4 1983009808
          %v1560 = vunpack.c.0.s8 %v1559
          %v1561 = vlaneseq
          %v1562 = vshrl.u32 %v1561, 7
          %v1563 = vsub.s32 %v1560, %v1562
          %v1564 = vrot.slane %v1550, %v1563
          %v1565 = vcombine.high %v1557, %v1557
          %v1566 = vcombine.high %v906, %v906
          %v1568 = vunpack.c.l.s4 1983009808
          %v1569 = vunpack.c.0.s8 %v1568
          %v1570 = vlaneseq
          %v1571 = vshrl.u32 %v1570, 7
          %v1572 = vsub.s32 %v1569, %v1571
          %v1573 = vrot.slane %v906, %v1572
          %v1575 = vunpack.c.l.s4 1983009808
          %v1576 = vunpack.c.0.s8 %v1575
          %v1577 = vlaneseq
          %v1578 = vshrl.u32 %v1577, 7
          %v1579 = vsub.s32 %v1576, %v1578
          %v1580 = vrot.slane %v1566, %v1579
          %v1581 = vcombine.high %v1573, %v1573
          %v1582 = vcombine.high %v907, %v907
          %v1584 = vunpack.c.l.s4 1983009808
          %v1585 = vunpack.c.0.s8 %v1584
          %v1586 = vlaneseq
          %v1587 = vshrl.u32 %v1586, 7
          %v1588 = vsub.s32 %v1585, %v1587
          %v1589 = vrot.slane %v907, %v1588
          %v1591 = vunpack.c.l.s4 1983009808
          %v1592 = vunpack.c.0.s8 %v1591
          %v1593 = vlaneseq
          %v1594 = vshrl.u32 %v1593, 7
          %v1595 = vsub.s32 %v1592, %v1594
          %v1596 = vrot.slane %v1582, %v1595
          %v1597 = vcombine.high %v1589, %v1589
          %v1598 = vcombine.high %v908, %v908
          %v1600 = vunpack.c.l.s4 1983009808
          %v1601 = vunpack.c.0.s8 %v1600
          %v1602 = vlaneseq
          %v1603 = vshrl.u32 %v1602, 7
          %v1604 = vsub.s32 %v1601, %v1603
          %v1605 = vrot.slane %v908, %v1604
          %v1607 = vunpack.c.l.s4 1983009808
          %v1608 = vunpack.c.0.s8 %v1607
          %v1609 = vlaneseq
          %v1610 = vshrl.u32 %v1609, 7
          %v1611 = vsub.s32 %v1608, %v1610
          %v1612 = vrot.slane %v1598, %v1611
          %v1613 = vcombine.high %v1605, %v1605
          %v1614 = vcombine.high %v940, %v940
          %v1616 = vunpack.c.l.s4 1983009808
          %v1617 = vunpack.c.0.s8 %v1616
          %v1618 = vlaneseq
          %v1619 = vshrl.u32 %v1618, 7
          %v1620 = vsub.s32 %v1617, %v1619
          %v1621 = vrot.slane %v940, %v1620
          %v1623 = vunpack.c.l.s4 1983009808
          %v1624 = vunpack.c.0.s8 %v1623
          %v1625 = vlaneseq
          %v1626 = vshrl.u32 %v1625, 7
          %v1627 = vsub.s32 %v1624, %v1626
          %v1628 = vrot.slane %v1614, %v1627
          %v1629 = vcombine.high %v1621, %v1621
          %v1630 = vcombine.high %v941, %v941
          %v1632 = vunpack.c.l.s4 1983009808
          %v1633 = vunpack.c.0.s8 %v1632
          %v1634 = vlaneseq
          %v1635 = vshrl.u32 %v1634, 7
          %v1636 = vsub.s32 %v1633, %v1635
          %v1637 = vrot.slane %v941, %v1636
          %v1639 = vunpack.c.l.s4 1983009808
          %v1640 = vunpack.c.0.s8 %v1639
          %v1641 = vlaneseq
          %v1642 = vshrl.u32 %v1641, 7
          %v1643 = vsub.s32 %v1640, %v1642
          %v1644 = vrot.slane %v1630, %v1643
          %v1645 = vcombine.high %v1637, %v1637
          %v1646 = vcombine.high %v942, %v942
          %v1648 = vunpack.c.l.s4 1983009808
          %v1649 = vunpack.c.0.s8 %v1648
          %v1650 = vlaneseq
          %v1651 = vshrl.u32 %v1650, 7
          %v1652 = vsub.s32 %v1649, %v1651
          %v1653 = vrot.slane %v942, %v1652
          %v1655 = vunpack.c.l.s4 1983009808
          %v1656 = vunpack.c.0.s8 %v1655
          %v1657 = vlaneseq
          %v1658 = vshrl.u32 %v1657, 7
          %v1659 = vsub.s32 %v1656, %v1658
          %v1660 = vrot.slane %v1646, %v1659
          %v1661 = vcombine.high %v1653, %v1653
          %v1662 = vcombine.high %v943, %v943
          %v1664 = vunpack.c.l.s4 1983009808
          %v1665 = vunpack.c.0.s8 %v1664
          %v1666 = vlaneseq
          %v1667 = vshrl.u32 %v1666, 7
          %v1668 = vsub.s32 %v1665, %v1667
          %v1669 = vrot.slane %v943, %v1668
          %v1671 = vunpack.c.l.s4 1983009808
          %v1672 = vunpack.c.0.s8 %v1671
          %v1673 = vlaneseq
          %v1674 = vshrl.u32 %v1673, 7
          %v1675 = vsub.s32 %v1672, %v1674
          %v1676 = vrot.slane %v1662, %v1675
          %v1677 = vcombine.high %v1669, %v1669
          %v1678 = vcombine.high %v975, %v975
          %v1680 = vunpack.c.l.s4 1983009808
          %v1681 = vunpack.c.0.s8 %v1680
          %v1682 = vlaneseq
          %v1683 = vshrl.u32 %v1682, 7
          %v1684 = vsub.s32 %v1681, %v1683
          %v1685 = vrot.slane %v975, %v1684
          %v1687 = vunpack.c.l.s4 1983009808
          %v1688 = vunpack.c.0.s8 %v1687
          %v1689 = vlaneseq
          %v1690 = vshrl.u32 %v1689, 7
          %v1691 = vsub.s32 %v1688, %v1690
          %v1692 = vrot.slane %v1678, %v1691
          %v1693 = vcombine.high %v1685, %v1685
          %v1694 = vcombine.high %v976, %v976
          %v1696 = vunpack.c.l.s4 1983009808
          %v1697 = vunpack.c.0.s8 %v1696
          %v1698 = vlaneseq
          %v1699 = vshrl.u32 %v1698, 7
          %v1700 = vsub.s32 %v1697, %v1699
          %v1701 = vrot.slane %v976, %v1700
          %v1703 = vunpack.c.l.s4 1983009808
          %v1704 = vunpack.c.0.s8 %v1703
          %v1705 = vlaneseq
          %v1706 = vshrl.u32 %v1705, 7
          %v1707 = vsub.s32 %v1704, %v1706
          %v1708 = vrot.slane %v1694, %v1707
          %v1709 = vcombine.high %v1701, %v1701
          %v1710 = vcombine.high %v977, %v977
          %v1712 = vunpack.c.l.s4 1983009808
          %v1713 = vunpack.c.0.s8 %v1712
          %v1714 = vlaneseq
          %v1715 = vshrl.u32 %v1714, 7
          %v1716 = vsub.s32 %v1713, %v1715
          %v1717 = vrot.slane %v977, %v1716
          %v1719 = vunpack.c.l.s4 1983009808
          %v1720 = vunpack.c.0.s8 %v1719
          %v1721 = vlaneseq
          %v1722 = vshrl.u32 %v1721, 7
          %v1723 = vsub.s32 %v1720, %v1722
          %v1724 = vrot.slane %v1710, %v1723
          %v1725 = vcombine.high %v1717, %v1717
          %v1726 = vcombine.high %v978, %v978
          %v1728 = vunpack.c.l.s4 1983009808
          %v1729 = vunpack.c.0.s8 %v1728
          %v1730 = vlaneseq
          %v1731 = vshrl.u32 %v1730, 7
          %v1732 = vsub.s32 %v1729, %v1731
          %v1733 = vrot.slane %v978, %v1732
          %v1735 = vunpack.c.l.s4 1983009808
          %v1736 = vunpack.c.0.s8 %v1735
          %v1737 = vlaneseq
          %v1738 = vshrl.u32 %v1737, 7
          %v1739 = vsub.s32 %v1736, %v1738
          %v1740 = vrot.slane %v1726, %v1739
          %v1741 = vcombine.high %v1733, %v1733
          %v1742 = vcombine.high %v1010, %v1010
          %v1744 = vunpack.c.l.s4 1983009808
          %v1745 = vunpack.c.0.s8 %v1744
          %v1746 = vlaneseq
          %v1747 = vshrl.u32 %v1746, 7
          %v1748 = vsub.s32 %v1745, %v1747
          %v1749 = vrot.slane %v1010, %v1748
          %v1751 = vunpack.c.l.s4 1983009808
          %v1752 = vunpack.c.0.s8 %v1751
          %v1753 = vlaneseq
          %v1754 = vshrl.u32 %v1753, 7
          %v1755 = vsub.s32 %v1752, %v1754
          %v1756 = vrot.slane %v1742, %v1755
          %v1757 = vcombine.high %v1749, %v1749
          %v1758 = vcombine.high %v1011, %v1011
          %v1760 = vunpack.c.l.s4 1983009808
          %v1761 = vunpack.c.0.s8 %v1760
          %v1762 = vlaneseq
          %v1763 = vshrl.u32 %v1762, 7
          %v1764 = vsub.s32 %v1761, %v1763
          %v1765 = vrot.slane %v1011, %v1764
          %v1767 = vunpack.c.l.s4 1983009808
          %v1768 = vunpack.c.0.s8 %v1767
          %v1769 = vlaneseq
          %v1770 = vshrl.u32 %v1769, 7
          %v1771 = vsub.s32 %v1768, %v1770
          %v1772 = vrot.slane %v1758, %v1771
          %v1773 = vcombine.high %v1765, %v1765
          %v1774 = vcombine.high %v1012, %v1012
          %v1776 = vunpack.c.l.s4 1983009808
          %v1777 = vunpack.c.0.s8 %v1776
          %v1778 = vlaneseq
          %v1779 = vshrl.u32 %v1778, 7
          %v1780 = vsub.s32 %v1777, %v1779
          %v1781 = vrot.slane %v1012, %v1780
          %v1783 = vunpack.c.l.s4 1983009808
          %v1784 = vunpack.c.0.s8 %v1783
          %v1785 = vlaneseq
          %v1786 = vshrl.u32 %v1785, 7
          %v1787 = vsub.s32 %v1784, %v1786
          %v1788 = vrot.slane %v1774, %v1787
          %v1789 = vcombine.high %v1781, %v1781
          %v1790 = vcombine.high %v1013, %v1013
          %v1792 = vunpack.c.l.s4 1983009808
          %v1793 = vunpack.c.0.s8 %v1792
          %v1794 = vlaneseq
          %v1795 = vshrl.u32 %v1794, 7
          %v1796 = vsub.s32 %v1793, %v1795
          %v1797 = vrot.slane %v1013, %v1796
          %v1799 = vunpack.c.l.s4 1983009808
          %v1800 = vunpack.c.0.s8 %v1799
          %v1801 = vlaneseq
          %v1802 = vshrl.u32 %v1801, 7
          %v1803 = vsub.s32 %v1800, %v1802
          %v1804 = vrot.slane %v1790, %v1803
          %v1805 = vcombine.high %v1797, %v1797
          %v1806 = vcombine.high %v1045, %v1045
          %v1808 = vunpack.c.l.s4 1983009808
          %v1809 = vunpack.c.0.s8 %v1808
          %v1810 = vlaneseq
          %v1811 = vshrl.u32 %v1810, 7
          %v1812 = vsub.s32 %v1809, %v1811
          %v1813 = vrot.slane %v1045, %v1812
          %v1815 = vunpack.c.l.s4 1983009808
          %v1816 = vunpack.c.0.s8 %v1815
          %v1817 = vlaneseq
          %v1818 = vshrl.u32 %v1817, 7
          %v1819 = vsub.s32 %v1816, %v1818
          %v1820 = vrot.slane %v1806, %v1819
          %v1821 = vcombine.high %v1813, %v1813
          %v1822 = vcombine.high %v1046, %v1046
          %v1824 = vunpack.c.l.s4 1983009808
          %v1825 = vunpack.c.0.s8 %v1824
          %v1826 = vlaneseq
          %v1827 = vshrl.u32 %v1826, 7
          %v1828 = vsub.s32 %v1825, %v1827
          %v1829 = vrot.slane %v1046, %v1828
          %v1831 = vunpack.c.l.s4 1983009808
          %v1832 = vunpack.c.0.s8 %v1831
          %v1833 = vlaneseq
          %v1834 = vshrl.u32 %v1833, 7
          %v1835 = vsub.s32 %v1832, %v1834
          %v1836 = vrot.slane %v1822, %v1835
          %v1837 = vcombine.high %v1829, %v1829
          %v1838 = vcombine.high %v1047, %v1047
          %v1840 = vunpack.c.l.s4 1983009808
          %v1841 = vunpack.c.0.s8 %v1840
          %v1842 = vlaneseq
          %v1843 = vshrl.u32 %v1842, 7
          %v1844 = vsub.s32 %v1841, %v1843
          %v1845 = vrot.slane %v1047, %v1844
          %v1847 = vunpack.c.l.s4 1983009808
          %v1848 = vunpack.c.0.s8 %v1847
          %v1849 = vlaneseq
          %v1850 = vshrl.u32 %v1849, 7
          %v1851 = vsub.s32 %v1848, %v1850
          %v1852 = vrot.slane %v1838, %v1851
          %v1853 = vcombine.high %v1845, %v1845
          %v1854 = vcombine.high %v1048, %v1048
          %v1856 = vunpack.c.l.s4 1983009808
          %v1857 = vunpack.c.0.s8 %v1856
          %v1858 = vlaneseq
          %v1859 = vshrl.u32 %v1858, 7
          %v1860 = vsub.s32 %v1857, %v1859
          %v1861 = vrot.slane %v1048, %v1860
          %v1863 = vunpack.c.l.s4 1983009808
          %v1864 = vunpack.c.0.s8 %v1863
          %v1865 = vlaneseq
          %v1866 = vshrl.u32 %v1865, 7
          %v1867 = vsub.s32 %v1864, %v1866
          %v1868 = vrot.slane %v1854, %v1867
          %v1869 = vcombine.high %v1861, %v1861
          %v1870 = vcombine.high %v1080, %v1080
          %v1872 = vunpack.c.l.s4 1983009808
          %v1873 = vunpack.c.0.s8 %v1872
          %v1874 = vlaneseq
          %v1875 = vshrl.u32 %v1874, 7
          %v1876 = vsub.s32 %v1873, %v1875
          %v1877 = vrot.slane %v1080, %v1876
          %v1879 = vunpack.c.l.s4 1983009808
          %v1880 = vunpack.c.0.s8 %v1879
          %v1881 = vlaneseq
          %v1882 = vshrl.u32 %v1881, 7
          %v1883 = vsub.s32 %v1880, %v1882
          %v1884 = vrot.slane %v1870, %v1883
          %v1885 = vcombine.high %v1877, %v1877
          %v1886 = vcombine.high %v1081, %v1081
          %v1888 = vunpack.c.l.s4 1983009808
          %v1889 = vunpack.c.0.s8 %v1888
          %v1890 = vlaneseq
          %v1891 = vshrl.u32 %v1890, 7
          %v1892 = vsub.s32 %v1889, %v1891
          %v1893 = vrot.slane %v1081, %v1892
          %v1895 = vunpack.c.l.s4 1983009808
          %v1896 = vunpack.c.0.s8 %v1895
          %v1897 = vlaneseq
          %v1898 = vshrl.u32 %v1897, 7
          %v1899 = vsub.s32 %v1896, %v1898
          %v1900 = vrot.slane %v1886, %v1899
          %v1901 = vcombine.high %v1893, %v1893
          %v1902 = vcombine.high %v1082, %v1082
          %v1904 = vunpack.c.l.s4 1983009808
          %v1905 = vunpack.c.0.s8 %v1904
          %v1906 = vlaneseq
          %v1907 = vshrl.u32 %v1906, 7
          %v1908 = vsub.s32 %v1905, %v1907
          %v1909 = vrot.slane %v1082, %v1908
          %v1911 = vunpack.c.l.s4 1983009808
          %v1912 = vunpack.c.0.s8 %v1911
          %v1913 = vlaneseq
          %v1914 = vshrl.u32 %v1913, 7
          %v1915 = vsub.s32 %v1912, %v1914
          %v1916 = vrot.slane %v1902, %v1915
          %v1917 = vcombine.high %v1909, %v1909
          %v1918 = vcombine.high %v1083, %v1083
          %v1920 = vunpack.c.l.s4 1983009808
          %v1921 = vunpack.c.0.s8 %v1920
          %v1922 = vlaneseq
          %v1923 = vshrl.u32 %v1922, 7
          %v1924 = vsub.s32 %v1921, %v1923
          %v1925 = vrot.slane %v1083, %v1924
          %v1927 = vunpack.c.l.s4 1983009808
          %v1928 = vunpack.c.0.s8 %v1927
          %v1929 = vlaneseq
          %v1930 = vshrl.u32 %v1929, 7
          %v1931 = vsub.s32 %v1928, %v1930
          %v1932 = vrot.slane %v1918, %v1931
          %v1933 = vcombine.high %v1925, %v1925
          %v1934 = vcombine.high %v1115, %v1115
          %v1936 = vunpack.c.l.s4 1983009808
          %v1937 = vunpack.c.0.s8 %v1936
          %v1938 = vlaneseq
          %v1939 = vshrl.u32 %v1938, 7
          %v1940 = vsub.s32 %v1937, %v1939
          %v1941 = vrot.slane %v1115, %v1940
          %v1943 = vunpack.c.l.s4 1983009808
          %v1944 = vunpack.c.0.s8 %v1943
          %v1945 = vlaneseq
          %v1946 = vshrl.u32 %v1945, 7
          %v1947 = vsub.s32 %v1944, %v1946
          %v1948 = vrot.slane %v1934, %v1947
          %v1949 = vcombine.high %v1941, %v1941
          %v1950 = vcombine.high %v1116, %v1116
          %v1952 = vunpack.c.l.s4 1983009808
          %v1953 = vunpack.c.0.s8 %v1952
          %v1954 = vlaneseq
          %v1955 = vshrl.u32 %v1954, 7
          %v1956 = vsub.s32 %v1953, %v1955
          %v1957 = vrot.slane %v1116, %v1956
          %v1959 = vunpack.c.l.s4 1983009808
          %v1960 = vunpack.c.0.s8 %v1959
          %v1961 = vlaneseq
          %v1962 = vshrl.u32 %v1961, 7
          %v1963 = vsub.s32 %v1960, %v1962
          %v1964 = vrot.slane %v1950, %v1963
          %v1965 = vcombine.high %v1957, %v1957
          %v1966 = vcombine.high %v1117, %v1117
          %v1968 = vunpack.c.l.s4 1983009808
          %v1969 = vunpack.c.0.s8 %v1968
          %v1970 = vlaneseq
          %v1971 = vshrl.u32 %v1970, 7
          %v1972 = vsub.s32 %v1969, %v1971
          %v1973 = vrot.slane %v1117, %v1972
          %v1975 = vunpack.c.l.s4 1983009808
          %v1976 = vunpack.c.0.s8 %v1975
          %v1977 = vlaneseq
          %v1978 = vshrl.u32 %v1977, 7
          %v1979 = vsub.s32 %v1976, %v1978
          %v1980 = vrot.slane %v1966, %v1979
          %v1981 = vcombine.high %v1973, %v1973
          %v1982 = vcombine.high %v1118, %v1118
          %v1984 = vunpack.c.l.s4 1983009808
          %v1985 = vunpack.c.0.s8 %v1984
          %v1986 = vlaneseq
          %v1987 = vshrl.u32 %v1986, 7
          %v1988 = vsub.s32 %v1985, %v1987
          %v1989 = vrot.slane %v1118, %v1988
          %v1991 = vunpack.c.l.s4 1983009808
          %v1992 = vunpack.c.0.s8 %v1991
          %v1993 = vlaneseq
          %v1994 = vshrl.u32 %v1993, 7
          %v1995 = vsub.s32 %v1992, %v1994
          %v1996 = vrot.slane %v1982, %v1995
          %v1997 = vcombine.high %v1989, %v1989
          %v1998 = vcombine.high %v1150, %v1150
          %v2000 = vunpack.c.l.s4 1983009808
          %v2001 = vunpack.c.0.s8 %v2000
          %v2002 = vlaneseq
          %v2003 = vshrl.u32 %v2002, 7
          %v2004 = vsub.s32 %v2001, %v2003
          %v2005 = vrot.slane %v1150, %v2004
          %v2007 = vunpack.c.l.s4 1983009808
          %v2008 = vunpack.c.0.s8 %v2007
          %v2009 = vlaneseq
          %v2010 = vshrl.u32 %v2009, 7
          %v2011 = vsub.s32 %v2008, %v2010
          %v2012 = vrot.slane %v1998, %v2011
          %v2013 = vcombine.high %v2005, %v2005
          %v2014 = vcombine.high %v1151, %v1151
          %v2016 = vunpack.c.l.s4 1983009808
          %v2017 = vunpack.c.0.s8 %v2016
          %v2018 = vlaneseq
          %v2019 = vshrl.u32 %v2018, 7
          %v2020 = vsub.s32 %v2017, %v2019
          %v2021 = vrot.slane %v1151, %v2020
          %v2023 = vunpack.c.l.s4 1983009808
          %v2024 = vunpack.c.0.s8 %v2023
          %v2025 = vlaneseq
          %v2026 = vshrl.u32 %v2025, 7
          %v2027 = vsub.s32 %v2024, %v2026
          %v2028 = vrot.slane %v2014, %v2027
          %v2029 = vcombine.high %v2021, %v2021
          %v2030 = vcombine.high %v1152, %v1152
          %v2032 = vunpack.c.l.s4 1983009808
          %v2033 = vunpack.c.0.s8 %v2032
          %v2034 = vlaneseq
          %v2035 = vshrl.u32 %v2034, 7
          %v2036 = vsub.s32 %v2033, %v2035
          %v2037 = vrot.slane %v1152, %v2036
          %v2039 = vunpack.c.l.s4 1983009808
          %v2040 = vunpack.c.0.s8 %v2039
          %v2041 = vlaneseq
          %v2042 = vshrl.u32 %v2041, 7
          %v2043 = vsub.s32 %v2040, %v2042
          %v2044 = vrot.slane %v2030, %v2043
          %v2045 = vcombine.high %v2037, %v2037
          %v2046 = vcombine.high %v1153, %v1153
          %v2048 = vunpack.c.l.s4 1983009808
          %v2049 = vunpack.c.0.s8 %v2048
          %v2050 = vlaneseq
          %v2051 = vshrl.u32 %v2050, 7
          %v2052 = vsub.s32 %v2049, %v2051
          %v2053 = vrot.slane %v1153, %v2052
          %v2055 = vunpack.c.l.s4 1983009808
          %v2056 = vunpack.c.0.s8 %v2055
          %v2057 = vlaneseq
          %v2058 = vshrl.u32 %v2057, 7
          %v2059 = vsub.s32 %v2056, %v2058
          %v2060 = vrot.slane %v2046, %v2059
          %v2061 = vcombine.high %v2053, %v2053
          %v2062 = vcombine.high %v1185, %v1185
          %v2064 = vunpack.c.l.s4 1983009808
          %v2065 = vunpack.c.0.s8 %v2064
          %v2066 = vlaneseq
          %v2067 = vshrl.u32 %v2066, 7
          %v2068 = vsub.s32 %v2065, %v2067
          %v2069 = vrot.slane %v1185, %v2068
          %v2071 = vunpack.c.l.s4 1983009808
          %v2072 = vunpack.c.0.s8 %v2071
          %v2073 = vlaneseq
          %v2074 = vshrl.u32 %v2073, 7
          %v2075 = vsub.s32 %v2072, %v2074
          %v2076 = vrot.slane %v2062, %v2075
          %v2077 = vcombine.high %v2069, %v2069
          %v2078 = vcombine.high %v1186, %v1186
          %v2080 = vunpack.c.l.s4 1983009808
          %v2081 = vunpack.c.0.s8 %v2080
          %v2082 = vlaneseq
          %v2083 = vshrl.u32 %v2082, 7
          %v2084 = vsub.s32 %v2081, %v2083
          %v2085 = vrot.slane %v1186, %v2084
          %v2087 = vunpack.c.l.s4 1983009808
          %v2088 = vunpack.c.0.s8 %v2087
          %v2089 = vlaneseq
          %v2090 = vshrl.u32 %v2089, 7
          %v2091 = vsub.s32 %v2088, %v2090
          %v2092 = vrot.slane %v2078, %v2091
          %v2093 = vcombine.high %v2085, %v2085
          %v2094 = vcombine.high %v1187, %v1187
          %v2096 = vunpack.c.l.s4 1983009808
          %v2097 = vunpack.c.0.s8 %v2096
          %v2098 = vlaneseq
          %v2099 = vshrl.u32 %v2098, 7
          %v2100 = vsub.s32 %v2097, %v2099
          %v2101 = vrot.slane %v1187, %v2100
          %v2103 = vunpack.c.l.s4 1983009808
          %v2104 = vunpack.c.0.s8 %v2103
          %v2105 = vlaneseq
          %v2106 = vshrl.u32 %v2105, 7
          %v2107 = vsub.s32 %v2104, %v2106
          %v2108 = vrot.slane %v2094, %v2107
          %v2109 = vcombine.high %v2101, %v2101
          %v2110 = vcombine.high %v1188, %v1188
          %v2112 = vunpack.c.l.s4 1983009808
          %v2113 = vunpack.c.0.s8 %v2112
          %v2114 = vlaneseq
          %v2115 = vshrl.u32 %v2114, 7
          %v2116 = vsub.s32 %v2113, %v2115
          %v2117 = vrot.slane %v1188, %v2116
          %v2119 = vunpack.c.l.s4 1983009808
          %v2120 = vunpack.c.0.s8 %v2119
          %v2121 = vlaneseq
          %v2122 = vshrl.u32 %v2121, 7
          %v2123 = vsub.s32 %v2120, %v2122
          %v2124 = vrot.slane %v2110, %v2123
          %v2125 = vcombine.high %v2117, %v2117
          %v2126 = vcombine.high %v1220, %v1220
          %v2128 = vunpack.c.l.s4 1983009808
          %v2129 = vunpack.c.0.s8 %v2128
          %v2130 = vlaneseq
          %v2131 = vshrl.u32 %v2130, 7
          %v2132 = vsub.s32 %v2129, %v2131
          %v2133 = vrot.slane %v1220, %v2132
          %v2135 = vunpack.c.l.s4 1983009808
          %v2136 = vunpack.c.0.s8 %v2135
          %v2137 = vlaneseq
          %v2138 = vshrl.u32 %v2137, 7
          %v2139 = vsub.s32 %v2136, %v2138
          %v2140 = vrot.slane %v2126, %v2139
          %v2141 = vcombine.high %v2133, %v2133
          %v2142 = vcombine.high %v1221, %v1221
          %v2144 = vunpack.c.l.s4 1983009808
          %v2145 = vunpack.c.0.s8 %v2144
          %v2146 = vlaneseq
          %v2147 = vshrl.u32 %v2146, 7
          %v2148 = vsub.s32 %v2145, %v2147
          %v2149 = vrot.slane %v1221, %v2148
          %v2151 = vunpack.c.l.s4 1983009808
          %v2152 = vunpack.c.0.s8 %v2151
          %v2153 = vlaneseq
          %v2154 = vshrl.u32 %v2153, 7
          %v2155 = vsub.s32 %v2152, %v2154
          %v2156 = vrot.slane %v2142, %v2155
          %v2157 = vcombine.high %v2149, %v2149
          %v2158 = vcombine.high %v1222, %v1222
          %v2160 = vunpack.c.l.s4 1983009808
          %v2161 = vunpack.c.0.s8 %v2160
          %v2162 = vlaneseq
          %v2163 = vshrl.u32 %v2162, 7
          %v2164 = vsub.s32 %v2161, %v2163
          %v2165 = vrot.slane %v1222, %v2164
          %v2167 = vunpack.c.l.s4 1983009808
          %v2168 = vunpack.c.0.s8 %v2167
          %v2169 = vlaneseq
          %v2170 = vshrl.u32 %v2169, 7
          %v2171 = vsub.s32 %v2168, %v2170
          %v2172 = vrot.slane %v2158, %v2171
          %v2173 = vcombine.high %v2165, %v2165
          %v2174 = vcombine.high %v1223, %v1223
          %v2176 = vunpack.c.l.s4 1983009808
          %v2177 = vunpack.c.0.s8 %v2176
          %v2178 = vlaneseq
          %v2179 = vshrl.u32 %v2178, 7
          %v2180 = vsub.s32 %v2177, %v2179
          %v2181 = vrot.slane %v1223, %v2180
          %v2183 = vunpack.c.l.s4 1983009808
          %v2184 = vunpack.c.0.s8 %v2183
          %v2185 = vlaneseq
          %v2186 = vshrl.u32 %v2185, 7
          %v2187 = vsub.s32 %v2184, %v2186
          %v2188 = vrot.slane %v2174, %v2187
          %v2189 = vcombine.high %v2181, %v2181
          %v2190 = vcombine.high %v1255, %v1255
          %v2192 = vunpack.c.l.s4 1983009808
          %v2193 = vunpack.c.0.s8 %v2192
          %v2194 = vlaneseq
          %v2195 = vshrl.u32 %v2194, 7
          %v2196 = vsub.s32 %v2193, %v2195
          %v2197 = vrot.slane %v1255, %v2196
          %v2199 = vunpack.c.l.s4 1983009808
          %v2200 = vunpack.c.0.s8 %v2199
          %v2201 = vlaneseq
          %v2202 = vshrl.u32 %v2201, 7
          %v2203 = vsub.s32 %v2200, %v2202
          %v2204 = vrot.slane %v2190, %v2203
          %v2205 = vcombine.high %v2197, %v2197
          %v2206 = vcombine.high %v1256, %v1256
          %v2208 = vunpack.c.l.s4 1983009808
          %v2209 = vunpack.c.0.s8 %v2208
          %v2210 = vlaneseq
          %v2211 = vshrl.u32 %v2210, 7
          %v2212 = vsub.s32 %v2209, %v2211
          %v2213 = vrot.slane %v1256, %v2212
          %v2215 = vunpack.c.l.s4 1983009808
          %v2216 = vunpack.c.0.s8 %v2215
          %v2217 = vlaneseq
          %v2218 = vshrl.u32 %v2217, 7
          %v2219 = vsub.s32 %v2216, %v2218
          %v2220 = vrot.slane %v2206, %v2219
          %v2221 = vcombine.high %v2213, %v2213
          %v2222 = vcombine.high %v1257, %v1257
          %v2224 = vunpack.c.l.s4 1983009808
          %v2225 = vunpack.c.0.s8 %v2224
          %v2226 = vlaneseq
          %v2227 = vshrl.u32 %v2226, 7
          %v2228 = vsub.s32 %v2225, %v2227
          %v2229 = vrot.slane %v1257, %v2228
          %v2231 = vunpack.c.l.s4 1983009808
          %v2232 = vunpack.c.0.s8 %v2231
          %v2233 = vlaneseq
          %v2234 = vshrl.u32 %v2233, 7
          %v2235 = vsub.s32 %v2232, %v2234
          %v2236 = vrot.slane %v2222, %v2235
          %v2237 = vcombine.high %v2229, %v2229
          %v2238 = vcombine.high %v1258, %v1258
          %v2240 = vunpack.c.l.s4 1983009808
          %v2241 = vunpack.c.0.s8 %v2240
          %v2242 = vlaneseq
          %v2243 = vshrl.u32 %v2242, 7
          %v2244 = vsub.s32 %v2241, %v2243
          %v2245 = vrot.slane %v1258, %v2244
          %v2247 = vunpack.c.l.s4 1983009808
          %v2248 = vunpack.c.0.s8 %v2247
          %v2249 = vlaneseq
          %v2250 = vshrl.u32 %v2249, 7
          %v2251 = vsub.s32 %v2248, %v2250
          %v2252 = vrot.slane %v2238, %v2251
          %v2253 = vcombine.high %v2245, %v2245
          %v2254 = vcombine.high %v1290, %v1290
          %v2256 = vunpack.c.l.s4 1983009808
          %v2257 = vunpack.c.0.s8 %v2256
          %v2258 = vlaneseq
          %v2259 = vshrl.u32 %v2258, 7
          %v2260 = vsub.s32 %v2257, %v2259
          %v2261 = vrot.slane %v1290, %v2260
          %v2263 = vunpack.c.l.s4 1983009808
          %v2264 = vunpack.c.0.s8 %v2263
          %v2265 = vlaneseq
          %v2266 = vshrl.u32 %v2265, 7
          %v2267 = vsub.s32 %v2264, %v2266
          %v2268 = vrot.slane %v2254, %v2267
          %v2269 = vcombine.high %v2261, %v2261
          %v2270 = vcombine.high %v1291, %v1291
          %v2272 = vunpack.c.l.s4 1983009808
          %v2273 = vunpack.c.0.s8 %v2272
          %v2274 = vlaneseq
          %v2275 = vshrl.u32 %v2274, 7
          %v2276 = vsub.s32 %v2273, %v2275
          %v2277 = vrot.slane %v1291, %v2276
          %v2279 = vunpack.c.l.s4 1983009808
          %v2280 = vunpack.c.0.s8 %v2279
          %v2281 = vlaneseq
          %v2282 = vshrl.u32 %v2281, 7
          %v2283 = vsub.s32 %v2280, %v2282
          %v2284 = vrot.slane %v2270, %v2283
          %v2285 = vcombine.high %v2277, %v2277
          %v2286 = vcombine.high %v1292, %v1292
          %v2288 = vunpack.c.l.s4 1983009808
          %v2289 = vunpack.c.0.s8 %v2288
          %v2290 = vlaneseq
          %v2291 = vshrl.u32 %v2290, 7
          %v2292 = vsub.s32 %v2289, %v2291
          %v2293 = vrot.slane %v1292, %v2292
          %v2295 = vunpack.c.l.s4 1983009808
          %v2296 = vunpack.c.0.s8 %v2295
          %v2297 = vlaneseq
          %v2298 = vshrl.u32 %v2297, 7
          %v2299 = vsub.s32 %v2296, %v2298
          %v2300 = vrot.slane %v2286, %v2299
          %v2301 = vcombine.high %v2293, %v2293
          %v2302 = vcombine.high %v1293, %v1293
          %v2304 = vunpack.c.l.s4 1983009808
          %v2305 = vunpack.c.0.s8 %v2304
          %v2306 = vlaneseq
          %v2307 = vshrl.u32 %v2306, 7
          %v2308 = vsub.s32 %v2305, %v2307
          %v2309 = vrot.slane %v1293, %v2308
          %v2311 = vunpack.c.l.s4 1983009808
          %v2312 = vunpack.c.0.s8 %v2311
          %v2313 = vlaneseq
          %v2314 = vshrl.u32 %v2313, 7
          %v2315 = vsub.s32 %v2312, %v2314
          %v2316 = vrot.slane %v2302, %v2315
          %v2317 = vcombine.high %v2309, %v2309
          %vm2510 = vcmask 1041408
          %v2511 = vsel %vm2510, %v1301, -inf
          %v2512 = vrot.slane %v2511, 4
          %v2513 = vmax.f32 %v2511, %v2512
          %v2514 = vrot.slane %v2513, 2
          %v2515 = vmax.f32 %v2513, %v2514
          %v2516 = vrot.slane %v2515, 1
          %v2517 = vmax.f32 %v2515, %v2516
          %v2518 = vsel %vm2510, %v1309, -inf
          %v2519 = vrot.slane %v2518, 4
          %v2520 = vmax.f32 %v2518, %v2519
          %v2521 = vrot.slane %v2520, 2
          %v2522 = vmax.f32 %v2520, %v2521
          %v2523 = vrot.slane %v2522, 1
          %v2524 = vmax.f32 %v2522, %v2523
          %v2525 = vsel %vm2510, %v1308, -inf
          %v2526 = vrot.slane %v2525, 4
          %v2527 = vmax.f32 %v2525, %v2526
          %v2528 = vrot.slane %v2527, 2
          %v2529 = vmax.f32 %v2527, %v2528
          %v2530 = vrot.slane %v2529, 1
          %v2531 = vmax.f32 %v2529, %v2530
          %v2532 = vsel %vm2510, %v1317, -inf
          %v2533 = vrot.slane %v2532, 4
          %v2534 = vmax.f32 %v2532, %v2533
          %v2535 = vrot.slane %v2534, 2
          %v2536 = vmax.f32 %v2534, %v2535
          %v2537 = vrot.slane %v2536, 1
          %v2538 = vmax.f32 %v2536, %v2537
          %v2539 = vsel %vm2510, %v1325, -inf
          %v2540 = vrot.slane %v2539, 4
          %v2541 = vmax.f32 %v2539, %v2540
          %v2542 = vrot.slane %v2541, 2
          %v2543 = vmax.f32 %v2541, %v2542
          %v2544 = vrot.slane %v2543, 1
          %v2545 = vmax.f32 %v2543, %v2544
          %v2546 = vsel %vm2510, %v1324, -inf
          %v2547 = vrot.slane %v2546, 4
          %v2548 = vmax.f32 %v2546, %v2547
          %v2549 = vrot.slane %v2548, 2
          %v2550 = vmax.f32 %v2548, %v2549
          %v2551 = vrot.slane %v2550, 1
          %v2552 = vmax.f32 %v2550, %v2551
          %v2553 = vsel %vm2510, %v1333, -inf
          %v2554 = vrot.slane %v2553, 4
          %v2555 = vmax.f32 %v2553, %v2554
          %v2556 = vrot.slane %v2555, 2
          %v2557 = vmax.f32 %v2555, %v2556
          %v2558 = vrot.slane %v2557, 1
          %v2559 = vmax.f32 %v2557, %v2558
          %v2560 = vsel %vm2510, %v1341, -inf
          %v2561 = vrot.slane %v2560, 4
          %v2562 = vmax.f32 %v2560, %v2561
          %v2563 = vrot.slane %v2562, 2
          %v2564 = vmax.f32 %v2562, %v2563
          %v2565 = vrot.slane %v2564, 1
          %v2566 = vmax.f32 %v2564, %v2565
          %v2567 = vsel %vm2510, %v1340, -inf
          %v2568 = vrot.slane %v2567, 4
          %v2569 = vmax.f32 %v2567, %v2568
          %v2570 = vrot.slane %v2569, 2
          %v2571 = vmax.f32 %v2569, %v2570
          %v2572 = vrot.slane %v2571, 1
          %v2573 = vmax.f32 %v2571, %v2572
          %v2574 = vsel %vm2510, %v1349, -inf
          %v2575 = vrot.slane %v2574, 4
          %v2576 = vmax.f32 %v2574, %v2575
          %v2577 = vrot.slane %v2576, 2
          %v2578 = vmax.f32 %v2576, %v2577
          %v2579 = vrot.slane %v2578, 1
          %v2580 = vmax.f32 %v2578, %v2579
          %v2581 = vsel %vm2510, %v1357, -inf
          %v2582 = vrot.slane %v2581, 4
          %v2583 = vmax.f32 %v2581, %v2582
          %v2584 = vrot.slane %v2583, 2
          %v2585 = vmax.f32 %v2583, %v2584
          %v2586 = vrot.slane %v2585, 1
          %v2587 = vmax.f32 %v2585, %v2586
          %v2588 = vsel %vm2510, %v1356, -inf
          %v2589 = vrot.slane %v2588, 4
          %v2590 = vmax.f32 %v2588, %v2589
          %v2591 = vrot.slane %v2590, 2
          %v2592 = vmax.f32 %v2590, %v2591
          %v2593 = vrot.slane %v2592, 1
          %v2594 = vmax.f32 %v2592, %v2593
          %v2595 = vsel %vm2510, %v1365, -inf
          %v2596 = vrot.slane %v2595, 4
          %v2597 = vmax.f32 %v2595, %v2596
          %v2598 = vrot.slane %v2597, 2
          %v2599 = vmax.f32 %v2597, %v2598
          %v2600 = vrot.slane %v2599, 1
          %v2601 = vmax.f32 %v2599, %v2600
          %v2602 = vsel %vm2510, %v1373, -inf
          %v2603 = vrot.slane %v2602, 4
          %v2604 = vmax.f32 %v2602, %v2603
          %v2605 = vrot.slane %v2604, 2
          %v2606 = vmax.f32 %v2604, %v2605
          %v2607 = vrot.slane %v2606, 1
          %v2608 = vmax.f32 %v2606, %v2607
          %v2609 = vsel %vm2510, %v1372, -inf
          %v2610 = vrot.slane %v2609, 4
          %v2611 = vmax.f32 %v2609, %v2610
          %v2612 = vrot.slane %v2611, 2
          %v2613 = vmax.f32 %v2611, %v2612
          %v2614 = vrot.slane %v2613, 1
          %v2615 = vmax.f32 %v2613, %v2614
          %v2616 = vsel %vm2510, %v1381, -inf
          %v2617 = vrot.slane %v2616, 4
          %v2618 = vmax.f32 %v2616, %v2617
          %v2619 = vrot.slane %v2618, 2
          %v2620 = vmax.f32 %v2618, %v2619
          %v2621 = vrot.slane %v2620, 1
          %v2622 = vmax.f32 %v2620, %v2621
          %v2623 = vsel %vm2510, %v1389, -inf
          %v2624 = vrot.slane %v2623, 4
          %v2625 = vmax.f32 %v2623, %v2624
          %v2626 = vrot.slane %v2625, 2
          %v2627 = vmax.f32 %v2625, %v2626
          %v2628 = vrot.slane %v2627, 1
          %v2629 = vmax.f32 %v2627, %v2628
          %v2630 = vsel %vm2510, %v1388, -inf
          %v2631 = vrot.slane %v2630, 4
          %v2632 = vmax.f32 %v2630, %v2631
          %v2633 = vrot.slane %v2632, 2
          %v2634 = vmax.f32 %v2632, %v2633
          %v2635 = vrot.slane %v2634, 1
          %v2636 = vmax.f32 %v2634, %v2635
          %v2637 = vsel %vm2510, %v1397, -inf
          %v2638 = vrot.slane %v2637, 4
          %v2639 = vmax.f32 %v2637, %v2638
          %v2640 = vrot.slane %v2639, 2
          %v2641 = vmax.f32 %v2639, %v2640
          %v2642 = vrot.slane %v2641, 1
          %v2643 = vmax.f32 %v2641, %v2642
          %v2644 = vsel %vm2510, %v1405, -inf
          %v2645 = vrot.slane %v2644, 4
          %v2646 = vmax.f32 %v2644, %v2645
          %v2647 = vrot.slane %v2646, 2
          %v2648 = vmax.f32 %v2646, %v2647
          %v2649 = vrot.slane %v2648, 1
          %v2650 = vmax.f32 %v2648, %v2649
          %v2651 = vsel %vm2510, %v1404, -inf
          %v2652 = vrot.slane %v2651, 4
          %v2653 = vmax.f32 %v2651, %v2652
          %v2654 = vrot.slane %v2653, 2
          %v2655 = vmax.f32 %v2653, %v2654
          %v2656 = vrot.slane %v2655, 1
          %v2657 = vmax.f32 %v2655, %v2656
          %v2658 = vsel %vm2510, %v1413, -inf
          %v2659 = vrot.slane %v2658, 4
          %v2660 = vmax.f32 %v2658, %v2659
          %v2661 = vrot.slane %v2660, 2
          %v2662 = vmax.f32 %v2660, %v2661
          %v2663 = vrot.slane %v2662, 1
          %v2664 = vmax.f32 %v2662, %v2663
          %v2665 = vsel %vm2510, %v1421, -inf
          %v2666 = vrot.slane %v2665, 4
          %v2667 = vmax.f32 %v2665, %v2666
          %v2668 = vrot.slane %v2667, 2
          %v2669 = vmax.f32 %v2667, %v2668
          %v2670 = vrot.slane %v2669, 1
          %v2671 = vmax.f32 %v2669, %v2670
          %v2672 = vsel %vm2510, %v1420, -inf
          %v2673 = vrot.slane %v2672, 4
          %v2674 = vmax.f32 %v2672, %v2673
          %v2675 = vrot.slane %v2674, 2
          %v2676 = vmax.f32 %v2674, %v2675
          %v2677 = vrot.slane %v2676, 1
          %v2678 = vmax.f32 %v2676, %v2677
          %v2679 = vsel %vm2510, %v1429, -inf
          %v2680 = vrot.slane %v2679, 4
          %v2681 = vmax.f32 %v2679, %v2680
          %v2682 = vrot.slane %v2681, 2
          %v2683 = vmax.f32 %v2681, %v2682
          %v2684 = vrot.slane %v2683, 1
          %v2685 = vmax.f32 %v2683, %v2684
          %v2686 = vsel %vm2510, %v1437, -inf
          %v2687 = vrot.slane %v2686, 4
          %v2688 = vmax.f32 %v2686, %v2687
          %v2689 = vrot.slane %v2688, 2
          %v2690 = vmax.f32 %v2688, %v2689
          %v2691 = vrot.slane %v2690, 1
          %v2692 = vmax.f32 %v2690, %v2691
          %v2693 = vsel %vm2510, %v1436, -inf
          %v2694 = vrot.slane %v2693, 4
          %v2695 = vmax.f32 %v2693, %v2694
          %v2696 = vrot.slane %v2695, 2
          %v2697 = vmax.f32 %v2695, %v2696
          %v2698 = vrot.slane %v2697, 1
          %v2699 = vmax.f32 %v2697, %v2698
          %v2700 = vsel %vm2510, %v1445, -inf
          %v2701 = vrot.slane %v2700, 4
          %v2702 = vmax.f32 %v2700, %v2701
          %v2703 = vrot.slane %v2702, 2
          %v2704 = vmax.f32 %v2702, %v2703
          %v2705 = vrot.slane %v2704, 1
          %v2706 = vmax.f32 %v2704, %v2705
          %v2707 = vsel %vm2510, %v1453, -inf
          %v2708 = vrot.slane %v2707, 4
          %v2709 = vmax.f32 %v2707, %v2708
          %v2710 = vrot.slane %v2709, 2
          %v2711 = vmax.f32 %v2709, %v2710
          %v2712 = vrot.slane %v2711, 1
          %v2713 = vmax.f32 %v2711, %v2712
          %v2714 = vsel %vm2510, %v1452, -inf
          %v2715 = vrot.slane %v2714, 4
          %v2716 = vmax.f32 %v2714, %v2715
          %v2717 = vrot.slane %v2716, 2
          %v2718 = vmax.f32 %v2716, %v2717
          %v2719 = vrot.slane %v2718, 1
          %v2720 = vmax.f32 %v2718, %v2719
          %v2721 = vsel %vm2510, %v1461, -inf
          %v2722 = vrot.slane %v2721, 4
          %v2723 = vmax.f32 %v2721, %v2722
          %v2724 = vrot.slane %v2723, 2
          %v2725 = vmax.f32 %v2723, %v2724
          %v2726 = vrot.slane %v2725, 1
          %v2727 = vmax.f32 %v2725, %v2726
          %v2728 = vsel %vm2510, %v1469, -inf
          %v2729 = vrot.slane %v2728, 4
          %v2730 = vmax.f32 %v2728, %v2729
          %v2731 = vrot.slane %v2730, 2
          %v2732 = vmax.f32 %v2730, %v2731
          %v2733 = vrot.slane %v2732, 1
          %v2734 = vmax.f32 %v2732, %v2733
          %v2735 = vsel %vm2510, %v1468, -inf
          %v2736 = vrot.slane %v2735, 4
          %v2737 = vmax.f32 %v2735, %v2736
          %v2738 = vrot.slane %v2737, 2
          %v2739 = vmax.f32 %v2737, %v2738
          %v2740 = vrot.slane %v2739, 1
          %v2741 = vmax.f32 %v2739, %v2740
          %v2742 = vsel %vm2510, %v1477, -inf
          %v2743 = vrot.slane %v2742, 4
          %v2744 = vmax.f32 %v2742, %v2743
          %v2745 = vrot.slane %v2744, 2
          %v2746 = vmax.f32 %v2744, %v2745
          %v2747 = vrot.slane %v2746, 1
          %v2748 = vmax.f32 %v2746, %v2747
          %v2749 = vsel %vm2510, %v1485, -inf
          %v2750 = vrot.slane %v2749, 4
          %v2751 = vmax.f32 %v2749, %v2750
          %v2752 = vrot.slane %v2751, 2
          %v2753 = vmax.f32 %v2751, %v2752
          %v2754 = vrot.slane %v2753, 1
          %v2755 = vmax.f32 %v2753, %v2754
          %v2756 = vsel %vm2510, %v1484, -inf
          %v2757 = vrot.slane %v2756, 4
          %v2758 = vmax.f32 %v2756, %v2757
          %v2759 = vrot.slane %v2758, 2
          %v2760 = vmax.f32 %v2758, %v2759
          %v2761 = vrot.slane %v2760, 1
          %v2762 = vmax.f32 %v2760, %v2761
          %v2763 = vsel %vm2510, %v1493, -inf
          %v2764 = vrot.slane %v2763, 4
          %v2765 = vmax.f32 %v2763, %v2764
          %v2766 = vrot.slane %v2765, 2
          %v2767 = vmax.f32 %v2765, %v2766
          %v2768 = vrot.slane %v2767, 1
          %v2769 = vmax.f32 %v2767, %v2768
          %v2770 = vsel %vm2510, %v1501, -inf
          %v2771 = vrot.slane %v2770, 4
          %v2772 = vmax.f32 %v2770, %v2771
          %v2773 = vrot.slane %v2772, 2
          %v2774 = vmax.f32 %v2772, %v2773
          %v2775 = vrot.slane %v2774, 1
          %v2776 = vmax.f32 %v2774, %v2775
          %v2777 = vsel %vm2510, %v1500, -inf
          %v2778 = vrot.slane %v2777, 4
          %v2779 = vmax.f32 %v2777, %v2778
          %v2780 = vrot.slane %v2779, 2
          %v2781 = vmax.f32 %v2779, %v2780
          %v2782 = vrot.slane %v2781, 1
          %v2783 = vmax.f32 %v2781, %v2782
          %v2784 = vsel %vm2510, %v1509, -inf
          %v2785 = vrot.slane %v2784, 4
          %v2786 = vmax.f32 %v2784, %v2785
          %v2787 = vrot.slane %v2786, 2
          %v2788 = vmax.f32 %v2786, %v2787
          %v2789 = vrot.slane %v2788, 1
          %v2790 = vmax.f32 %v2788, %v2789
          %v2791 = vsel %vm2510, %v1517, -inf
          %v2792 = vrot.slane %v2791, 4
          %v2793 = vmax.f32 %v2791, %v2792
          %v2794 = vrot.slane %v2793, 2
          %v2795 = vmax.f32 %v2793, %v2794
          %v2796 = vrot.slane %v2795, 1
          %v2797 = vmax.f32 %v2795, %v2796
          %v2798 = vsel %vm2510, %v1516, -inf
          %v2799 = vrot.slane %v2798, 4
          %v2800 = vmax.f32 %v2798, %v2799
          %v2801 = vrot.slane %v2800, 2
          %v2802 = vmax.f32 %v2800, %v2801
          %v2803 = vrot.slane %v2802, 1
          %v2804 = vmax.f32 %v2802, %v2803
          %v2805 = vsel %vm2510, %v1525, -inf
          %v2806 = vrot.slane %v2805, 4
          %v2807 = vmax.f32 %v2805, %v2806
          %v2808 = vrot.slane %v2807, 2
          %v2809 = vmax.f32 %v2807, %v2808
          %v2810 = vrot.slane %v2809, 1
          %v2811 = vmax.f32 %v2809, %v2810
          %v2812 = vsel %vm2510, %v1533, -inf
          %v2813 = vrot.slane %v2812, 4
          %v2814 = vmax.f32 %v2812, %v2813
          %v2815 = vrot.slane %v2814, 2
          %v2816 = vmax.f32 %v2814, %v2815
          %v2817 = vrot.slane %v2816, 1
          %v2818 = vmax.f32 %v2816, %v2817
          %v2819 = vsel %vm2510, %v1532, -inf
          %v2820 = vrot.slane %v2819, 4
          %v2821 = vmax.f32 %v2819, %v2820
          %v2822 = vrot.slane %v2821, 2
          %v2823 = vmax.f32 %v2821, %v2822
          %v2824 = vrot.slane %v2823, 1
          %v2825 = vmax.f32 %v2823, %v2824
          %v2826 = vsel %vm2510, %v1541, -inf
          %v2827 = vrot.slane %v2826, 4
          %v2828 = vmax.f32 %v2826, %v2827
          %v2829 = vrot.slane %v2828, 2
          %v2830 = vmax.f32 %v2828, %v2829
          %v2831 = vrot.slane %v2830, 1
          %v2832 = vmax.f32 %v2830, %v2831
          %v2833 = vsel %vm2510, %v1549, -inf
          %v2834 = vrot.slane %v2833, 4
          %v2835 = vmax.f32 %v2833, %v2834
          %v2836 = vrot.slane %v2835, 2
          %v2837 = vmax.f32 %v2835, %v2836
          %v2838 = vrot.slane %v2837, 1
          %v2839 = vmax.f32 %v2837, %v2838
          %v2840 = vsel %vm2510, %v1548, -inf
          %v2841 = vrot.slane %v2840, 4
          %v2842 = vmax.f32 %v2840, %v2841
          %v2843 = vrot.slane %v2842, 2
          %v2844 = vmax.f32 %v2842, %v2843
          %v2845 = vrot.slane %v2844, 1
          %v2846 = vmax.f32 %v2844, %v2845
          %v2847 = vsel %vm2510, %v1557, -inf
          %v2848 = vrot.slane %v2847, 4
          %v2849 = vmax.f32 %v2847, %v2848
          %v2850 = vrot.slane %v2849, 2
          %v2851 = vmax.f32 %v2849, %v2850
          %v2852 = vrot.slane %v2851, 1
          %v2853 = vmax.f32 %v2851, %v2852
          %v2854 = vsel %vm2510, %v1565, -inf
          %v2855 = vrot.slane %v2854, 4
          %v2856 = vmax.f32 %v2854, %v2855
          %v2857 = vrot.slane %v2856, 2
          %v2858 = vmax.f32 %v2856, %v2857
          %v2859 = vrot.slane %v2858, 1
          %v2860 = vmax.f32 %v2858, %v2859
          %v2861 = vsel %vm2510, %v1564, -inf
          %v2862 = vrot.slane %v2861, 4
          %v2863 = vmax.f32 %v2861, %v2862
          %v2864 = vrot.slane %v2863, 2
          %v2865 = vmax.f32 %v2863, %v2864
          %v2866 = vrot.slane %v2865, 1
          %v2867 = vmax.f32 %v2865, %v2866
          %v2868 = vsel %vm2510, %v1573, -inf
          %v2869 = vrot.slane %v2868, 4
          %v2870 = vmax.f32 %v2868, %v2869
          %v2871 = vrot.slane %v2870, 2
          %v2872 = vmax.f32 %v2870, %v2871
          %v2873 = vrot.slane %v2872, 1
          %v2874 = vmax.f32 %v2872, %v2873
          %v2875 = vsel %vm2510, %v1581, -inf
          %v2876 = vrot.slane %v2875, 4
          %v2877 = vmax.f32 %v2875, %v2876
          %v2878 = vrot.slane %v2877, 2
          %v2879 = vmax.f32 %v2877, %v2878
          %v2880 = vrot.slane %v2879, 1
          %v2881 = vmax.f32 %v2879, %v2880
          %v2882 = vsel %vm2510, %v1580, -inf
          %v2883 = vrot.slane %v2882, 4
          %v2884 = vmax.f32 %v2882, %v2883
          %v2885 = vrot.slane %v2884, 2
          %v2886 = vmax.f32 %v2884, %v2885
          %v2887 = vrot.slane %v2886, 1
          %v2888 = vmax.f32 %v2886, %v2887
          %v2889 = vsel %vm2510, %v1589, -inf
          %v2890 = vrot.slane %v2889, 4
          %v2891 = vmax.f32 %v2889, %v2890
          %v2892 = vrot.slane %v2891, 2
          %v2893 = vmax.f32 %v2891, %v2892
          %v2894 = vrot.slane %v2893, 1
          %v2895 = vmax.f32 %v2893, %v2894
          %v2896 = vsel %vm2510, %v1597, -inf
          %v2897 = vrot.slane %v2896, 4
          %v2898 = vmax.f32 %v2896, %v2897
          %v2899 = vrot.slane %v2898, 2
          %v2900 = vmax.f32 %v2898, %v2899
          %v2901 = vrot.slane %v2900, 1
          %v2902 = vmax.f32 %v2900, %v2901
          %v2903 = vsel %vm2510, %v1596, -inf
          %v2904 = vrot.slane %v2903, 4
          %v2905 = vmax.f32 %v2903, %v2904
          %v2906 = vrot.slane %v2905, 2
          %v2907 = vmax.f32 %v2905, %v2906
          %v2908 = vrot.slane %v2907, 1
          %v2909 = vmax.f32 %v2907, %v2908
          %v2910 = vsel %vm2510, %v1605, -inf
          %v2911 = vrot.slane %v2910, 4
          %v2912 = vmax.f32 %v2910, %v2911
          %v2913 = vrot.slane %v2912, 2
          %v2914 = vmax.f32 %v2912, %v2913
          %v2915 = vrot.slane %v2914, 1
          %v2916 = vmax.f32 %v2914, %v2915
          %v2917 = vsel %vm2510, %v1613, -inf
          %v2918 = vrot.slane %v2917, 4
          %v2919 = vmax.f32 %v2917, %v2918
          %v2920 = vrot.slane %v2919, 2
          %v2921 = vmax.f32 %v2919, %v2920
          %v2922 = vrot.slane %v2921, 1
          %v2923 = vmax.f32 %v2921, %v2922
          %v2924 = vsel %vm2510, %v1612, -inf
          %v2925 = vrot.slane %v2924, 4
          %v2926 = vmax.f32 %v2924, %v2925
          %v2927 = vrot.slane %v2926, 2
          %v2928 = vmax.f32 %v2926, %v2927
          %v2929 = vrot.slane %v2928, 1
          %v2930 = vmax.f32 %v2928, %v2929
          %v2931 = vsel %vm2510, %v1621, -inf
          %v2932 = vrot.slane %v2931, 4
          %v2933 = vmax.f32 %v2931, %v2932
          %v2934 = vrot.slane %v2933, 2
          %v2935 = vmax.f32 %v2933, %v2934
          %v2936 = vrot.slane %v2935, 1
          %v2937 = vmax.f32 %v2935, %v2936
          %v2938 = vsel %vm2510, %v1629, -inf
          %v2939 = vrot.slane %v2938, 4
          %v2940 = vmax.f32 %v2938, %v2939
          %v2941 = vrot.slane %v2940, 2
          %v2942 = vmax.f32 %v2940, %v2941
          %v2943 = vrot.slane %v2942, 1
          %v2944 = vmax.f32 %v2942, %v2943
          %v2945 = vsel %vm2510, %v1628, -inf
          %v2946 = vrot.slane %v2945, 4
          %v2947 = vmax.f32 %v2945, %v2946
          %v2948 = vrot.slane %v2947, 2
          %v2949 = vmax.f32 %v2947, %v2948
          %v2950 = vrot.slane %v2949, 1
          %v2951 = vmax.f32 %v2949, %v2950
          %v2952 = vsel %vm2510, %v1637, -inf
          %v2953 = vrot.slane %v2952, 4
          %v2954 = vmax.f32 %v2952, %v2953
          %v2955 = vrot.slane %v2954, 2
          %v2956 = vmax.f32 %v2954, %v2955
          %v2957 = vrot.slane %v2956, 1
          %v2958 = vmax.f32 %v2956, %v2957
          %v2959 = vsel %vm2510, %v1645, -inf
          %v2960 = vrot.slane %v2959, 4
          %v2961 = vmax.f32 %v2959, %v2960
          %v2962 = vrot.slane %v2961, 2
          %v2963 = vmax.f32 %v2961, %v2962
          %v2964 = vrot.slane %v2963, 1
          %v2965 = vmax.f32 %v2963, %v2964
          %v2966 = vsel %vm2510, %v1644, -inf
          %v2967 = vrot.slane %v2966, 4
          %v2968 = vmax.f32 %v2966, %v2967
          %v2969 = vrot.slane %v2968, 2
          %v2970 = vmax.f32 %v2968, %v2969
          %v2971 = vrot.slane %v2970, 1
          %v2972 = vmax.f32 %v2970, %v2971
          %v2973 = vsel %vm2510, %v1653, -inf
          %v2974 = vrot.slane %v2973, 4
          %v2975 = vmax.f32 %v2973, %v2974
          %v2976 = vrot.slane %v2975, 2
          %v2977 = vmax.f32 %v2975, %v2976
          %v2978 = vrot.slane %v2977, 1
          %v2979 = vmax.f32 %v2977, %v2978
          %v2980 = vsel %vm2510, %v1661, -inf
          %v2981 = vrot.slane %v2980, 4
          %v2982 = vmax.f32 %v2980, %v2981
          %v2983 = vrot.slane %v2982, 2
          %v2984 = vmax.f32 %v2982, %v2983
          %v2985 = vrot.slane %v2984, 1
          %v2986 = vmax.f32 %v2984, %v2985
          %v2987 = vsel %vm2510, %v1660, -inf
          %v2988 = vrot.slane %v2987, 4
          %v2989 = vmax.f32 %v2987, %v2988
          %v2990 = vrot.slane %v2989, 2
          %v2991 = vmax.f32 %v2989, %v2990
          %v2992 = vrot.slane %v2991, 1
          %v2993 = vmax.f32 %v2991, %v2992
          %v2994 = vsel %vm2510, %v1669, -inf
          %v2995 = vrot.slane %v2994, 4
          %v2996 = vmax.f32 %v2994, %v2995
          %v2997 = vrot.slane %v2996, 2
          %v2998 = vmax.f32 %v2996, %v2997
          %v2999 = vrot.slane %v2998, 1
          %v3000 = vmax.f32 %v2998, %v2999
          %v3001 = vsel %vm2510, %v1677, -inf
          %v3002 = vrot.slane %v3001, 4
          %v3003 = vmax.f32 %v3001, %v3002
          %v3004 = vrot.slane %v3003, 2
          %v3005 = vmax.f32 %v3003, %v3004
          %v3006 = vrot.slane %v3005, 1
          %v3007 = vmax.f32 %v3005, %v3006
          %v3008 = vsel %vm2510, %v1676, -inf
          %v3009 = vrot.slane %v3008, 4
          %v3010 = vmax.f32 %v3008, %v3009
          %v3011 = vrot.slane %v3010, 2
          %v3012 = vmax.f32 %v3010, %v3011
          %v3013 = vrot.slane %v3012, 1
          %v3014 = vmax.f32 %v3012, %v3013
          %v3015 = vsel %vm2510, %v1685, -inf
          %v3016 = vrot.slane %v3015, 4
          %v3017 = vmax.f32 %v3015, %v3016
          %v3018 = vrot.slane %v3017, 2
          %v3019 = vmax.f32 %v3017, %v3018
          %v3020 = vrot.slane %v3019, 1
          %v3021 = vmax.f32 %v3019, %v3020
          %v3022 = vsel %vm2510, %v1693, -inf
          %v3023 = vrot.slane %v3022, 4
          %v3024 = vmax.f32 %v3022, %v3023
          %v3025 = vrot.slane %v3024, 2
          %v3026 = vmax.f32 %v3024, %v3025
          %v3027 = vrot.slane %v3026, 1
          %v3028 = vmax.f32 %v3026, %v3027
          %v3029 = vsel %vm2510, %v1692, -inf
          %v3030 = vrot.slane %v3029, 4
          %v3031 = vmax.f32 %v3029, %v3030
          %v3032 = vrot.slane %v3031, 2
          %v3033 = vmax.f32 %v3031, %v3032
          %v3034 = vrot.slane %v3033, 1
          %v3035 = vmax.f32 %v3033, %v3034
          %v3036 = vsel %vm2510, %v1701, -inf
          %v3037 = vrot.slane %v3036, 4
          %v3038 = vmax.f32 %v3036, %v3037
          %v3039 = vrot.slane %v3038, 2
          %v3040 = vmax.f32 %v3038, %v3039
          %v3041 = vrot.slane %v3040, 1
          %v3042 = vmax.f32 %v3040, %v3041
          %v3043 = vsel %vm2510, %v1709, -inf
          %v3044 = vrot.slane %v3043, 4
          %v3045 = vmax.f32 %v3043, %v3044
          %v3046 = vrot.slane %v3045, 2
          %v3047 = vmax.f32 %v3045, %v3046
          %v3048 = vrot.slane %v3047, 1
          %v3049 = vmax.f32 %v3047, %v3048
          %v3050 = vsel %vm2510, %v1708, -inf
          %v3051 = vrot.slane %v3050, 4
          %v3052 = vmax.f32 %v3050, %v3051
          %v3053 = vrot.slane %v3052, 2
          %v3054 = vmax.f32 %v3052, %v3053
          %v3055 = vrot.slane %v3054, 1
          %v3056 = vmax.f32 %v3054, %v3055
          %v3057 = vsel %vm2510, %v1717, -inf
          %v3058 = vrot.slane %v3057, 4
          %v3059 = vmax.f32 %v3057, %v3058
          %v3060 = vrot.slane %v3059, 2
          %v3061 = vmax.f32 %v3059, %v3060
          %v3062 = vrot.slane %v3061, 1
          %v3063 = vmax.f32 %v3061, %v3062
          %v3064 = vsel %vm2510, %v1725, -inf
          %v3065 = vrot.slane %v3064, 4
          %v3066 = vmax.f32 %v3064, %v3065
          %v3067 = vrot.slane %v3066, 2
          %v3068 = vmax.f32 %v3066, %v3067
          %v3069 = vrot.slane %v3068, 1
          %v3070 = vmax.f32 %v3068, %v3069
          %v3071 = vsel %vm2510, %v1724, -inf
          %v3072 = vrot.slane %v3071, 4
          %v3073 = vmax.f32 %v3071, %v3072
          %v3074 = vrot.slane %v3073, 2
          %v3075 = vmax.f32 %v3073, %v3074
          %v3076 = vrot.slane %v3075, 1
          %v3077 = vmax.f32 %v3075, %v3076
          %v3078 = vsel %vm2510, %v1733, -inf
          %v3079 = vrot.slane %v3078, 4
          %v3080 = vmax.f32 %v3078, %v3079
          %v3081 = vrot.slane %v3080, 2
          %v3082 = vmax.f32 %v3080, %v3081
          %v3083 = vrot.slane %v3082, 1
          %v3084 = vmax.f32 %v3082, %v3083
          %v3085 = vsel %vm2510, %v1741, -inf
          %v3086 = vrot.slane %v3085, 4
          %v3087 = vmax.f32 %v3085, %v3086
          %v3088 = vrot.slane %v3087, 2
          %v3089 = vmax.f32 %v3087, %v3088
          %v3090 = vrot.slane %v3089, 1
          %v3091 = vmax.f32 %v3089, %v3090
          %v3092 = vsel %vm2510, %v1740, -inf
          %v3093 = vrot.slane %v3092, 4
          %v3094 = vmax.f32 %v3092, %v3093
          %v3095 = vrot.slane %v3094, 2
          %v3096 = vmax.f32 %v3094, %v3095
          %v3097 = vrot.slane %v3096, 1
          %v3098 = vmax.f32 %v3096, %v3097
          %v3099 = vsel %vm2510, %v1749, -inf
          %v3100 = vrot.slane %v3099, 4
          %v3101 = vmax.f32 %v3099, %v3100
          %v3102 = vrot.slane %v3101, 2
          %v3103 = vmax.f32 %v3101, %v3102
          %v3104 = vrot.slane %v3103, 1
          %v3105 = vmax.f32 %v3103, %v3104
          %v3106 = vsel %vm2510, %v1757, -inf
          %v3107 = vrot.slane %v3106, 4
          %v3108 = vmax.f32 %v3106, %v3107
          %v3109 = vrot.slane %v3108, 2
          %v3110 = vmax.f32 %v3108, %v3109
          %v3111 = vrot.slane %v3110, 1
          %v3112 = vmax.f32 %v3110, %v3111
          %v3113 = vsel %vm2510, %v1756, -inf
          %v3114 = vrot.slane %v3113, 4
          %v3115 = vmax.f32 %v3113, %v3114
          %v3116 = vrot.slane %v3115, 2
          %v3117 = vmax.f32 %v3115, %v3116
          %v3118 = vrot.slane %v3117, 1
          %v3119 = vmax.f32 %v3117, %v3118
          %v3120 = vsel %vm2510, %v1765, -inf
          %v3121 = vrot.slane %v3120, 4
          %v3122 = vmax.f32 %v3120, %v3121
          %v3123 = vrot.slane %v3122, 2
          %v3124 = vmax.f32 %v3122, %v3123
          %v3125 = vrot.slane %v3124, 1
          %v3126 = vmax.f32 %v3124, %v3125
          %v3127 = vsel %vm2510, %v1773, -inf
          %v3128 = vrot.slane %v3127, 4
          %v3129 = vmax.f32 %v3127, %v3128
          %v3130 = vrot.slane %v3129, 2
          %v3131 = vmax.f32 %v3129, %v3130
          %v3132 = vrot.slane %v3131, 1
          %v3133 = vmax.f32 %v3131, %v3132
          %v3134 = vsel %vm2510, %v1772, -inf
          %v3135 = vrot.slane %v3134, 4
          %v3136 = vmax.f32 %v3134, %v3135
          %v3137 = vrot.slane %v3136, 2
          %v3138 = vmax.f32 %v3136, %v3137
          %v3139 = vrot.slane %v3138, 1
          %v3140 = vmax.f32 %v3138, %v3139
          %v3141 = vsel %vm2510, %v1781, -inf
          %v3142 = vrot.slane %v3141, 4
          %v3143 = vmax.f32 %v3141, %v3142
          %v3144 = vrot.slane %v3143, 2
          %v3145 = vmax.f32 %v3143, %v3144
          %v3146 = vrot.slane %v3145, 1
          %v3147 = vmax.f32 %v3145, %v3146
          %v3148 = vsel %vm2510, %v1789, -inf
          %v3149 = vrot.slane %v3148, 4
          %v3150 = vmax.f32 %v3148, %v3149
          %v3151 = vrot.slane %v3150, 2
          %v3152 = vmax.f32 %v3150, %v3151
          %v3153 = vrot.slane %v3152, 1
          %v3154 = vmax.f32 %v3152, %v3153
          %v3155 = vsel %vm2510, %v1788, -inf
          %v3156 = vrot.slane %v3155, 4
          %v3157 = vmax.f32 %v3155, %v3156
          %v3158 = vrot.slane %v3157, 2
          %v3159 = vmax.f32 %v3157, %v3158
          %v3160 = vrot.slane %v3159, 1
          %v3161 = vmax.f32 %v3159, %v3160
          %v3162 = vsel %vm2510, %v1797, -inf
          %v3163 = vrot.slane %v3162, 4
          %v3164 = vmax.f32 %v3162, %v3163
          %v3165 = vrot.slane %v3164, 2
          %v3166 = vmax.f32 %v3164, %v3165
          %v3167 = vrot.slane %v3166, 1
          %v3168 = vmax.f32 %v3166, %v3167
          %v3169 = vsel %vm2510, %v1805, -inf
          %v3170 = vrot.slane %v3169, 4
          %v3171 = vmax.f32 %v3169, %v3170
          %v3172 = vrot.slane %v3171, 2
          %v3173 = vmax.f32 %v3171, %v3172
          %v3174 = vrot.slane %v3173, 1
          %v3175 = vmax.f32 %v3173, %v3174
          %v3176 = vsel %vm2510, %v1804, -inf
          %v3177 = vrot.slane %v3176, 4
          %v3178 = vmax.f32 %v3176, %v3177
          %v3179 = vrot.slane %v3178, 2
          %v3180 = vmax.f32 %v3178, %v3179
          %v3181 = vrot.slane %v3180, 1
          %v3182 = vmax.f32 %v3180, %v3181
          %v3183 = vsel %vm2510, %v1813, -inf
          %v3184 = vrot.slane %v3183, 4
          %v3185 = vmax.f32 %v3183, %v3184
          %v3186 = vrot.slane %v3185, 2
          %v3187 = vmax.f32 %v3185, %v3186
          %v3188 = vrot.slane %v3187, 1
          %v3189 = vmax.f32 %v3187, %v3188
          %v3190 = vsel %vm2510, %v1821, -inf
          %v3191 = vrot.slane %v3190, 4
          %v3192 = vmax.f32 %v3190, %v3191
          %v3193 = vrot.slane %v3192, 2
          %v3194 = vmax.f32 %v3192, %v3193
          %v3195 = vrot.slane %v3194, 1
          %v3196 = vmax.f32 %v3194, %v3195
          %v3197 = vsel %vm2510, %v1820, -inf
          %v3198 = vrot.slane %v3197, 4
          %v3199 = vmax.f32 %v3197, %v3198
          %v3200 = vrot.slane %v3199, 2
          %v3201 = vmax.f32 %v3199, %v3200
          %v3202 = vrot.slane %v3201, 1
          %v3203 = vmax.f32 %v3201, %v3202
          %v3204 = vsel %vm2510, %v1829, -inf
          %v3205 = vrot.slane %v3204, 4
          %v3206 = vmax.f32 %v3204, %v3205
          %v3207 = vrot.slane %v3206, 2
          %v3208 = vmax.f32 %v3206, %v3207
          %v3209 = vrot.slane %v3208, 1
          %v3210 = vmax.f32 %v3208, %v3209
          %v3211 = vsel %vm2510, %v1837, -inf
          %v3212 = vrot.slane %v3211, 4
          %v3213 = vmax.f32 %v3211, %v3212
          %v3214 = vrot.slane %v3213, 2
          %v3215 = vmax.f32 %v3213, %v3214
          %v3216 = vrot.slane %v3215, 1
          %v3217 = vmax.f32 %v3215, %v3216
          %v3218 = vsel %vm2510, %v1836, -inf
          %v3219 = vrot.slane %v3218, 4
          %v3220 = vmax.f32 %v3218, %v3219
          %v3221 = vrot.slane %v3220, 2
          %v3222 = vmax.f32 %v3220, %v3221
          %v3223 = vrot.slane %v3222, 1
          %v3224 = vmax.f32 %v3222, %v3223
          %v3225 = vsel %vm2510, %v1845, -inf
          %v3226 = vrot.slane %v3225, 4
          %v3227 = vmax.f32 %v3225, %v3226
          %v3228 = vrot.slane %v3227, 2
          %v3229 = vmax.f32 %v3227, %v3228
          %v3230 = vrot.slane %v3229, 1
          %v3231 = vmax.f32 %v3229, %v3230
          %v3232 = vsel %vm2510, %v1853, -inf
          %v3233 = vrot.slane %v3232, 4
          %v3234 = vmax.f32 %v3232, %v3233
          %v3235 = vrot.slane %v3234, 2
          %v3236 = vmax.f32 %v3234, %v3235
          %v3237 = vrot.slane %v3236, 1
          %v3238 = vmax.f32 %v3236, %v3237
          %v3239 = vsel %vm2510, %v1852, -inf
          %v3240 = vrot.slane %v3239, 4
          %v3241 = vmax.f32 %v3239, %v3240
          %v3242 = vrot.slane %v3241, 2
          %v3243 = vmax.f32 %v3241, %v3242
          %v3244 = vrot.slane %v3243, 1
          %v3245 = vmax.f32 %v3243, %v3244
          %v3246 = vsel %vm2510, %v1861, -inf
          %v3247 = vrot.slane %v3246, 4
          %v3248 = vmax.f32 %v3246, %v3247
          %v3249 = vrot.slane %v3248, 2
          %v3250 = vmax.f32 %v3248, %v3249
          %v3251 = vrot.slane %v3250, 1
          %v3252 = vmax.f32 %v3250, %v3251
          %v3253 = vsel %vm2510, %v1869, -inf
          %v3254 = vrot.slane %v3253, 4
          %v3255 = vmax.f32 %v3253, %v3254
          %v3256 = vrot.slane %v3255, 2
          %v3257 = vmax.f32 %v3255, %v3256
          %v3258 = vrot.slane %v3257, 1
          %v3259 = vmax.f32 %v3257, %v3258
          %v3260 = vsel %vm2510, %v1868, -inf
          %v3261 = vrot.slane %v3260, 4
          %v3262 = vmax.f32 %v3260, %v3261
          %v3263 = vrot.slane %v3262, 2
          %v3264 = vmax.f32 %v3262, %v3263
          %v3265 = vrot.slane %v3264, 1
          %v3266 = vmax.f32 %v3264, %v3265
          %v3267 = vsel %vm2510, %v1877, -inf
          %v3268 = vrot.slane %v3267, 4
          %v3269 = vmax.f32 %v3267, %v3268
          %v3270 = vrot.slane %v3269, 2
          %v3271 = vmax.f32 %v3269, %v3270
          %v3272 = vrot.slane %v3271, 1
          %v3273 = vmax.f32 %v3271, %v3272
          %v3274 = vsel %vm2510, %v1885, -inf
          %v3275 = vrot.slane %v3274, 4
          %v3276 = vmax.f32 %v3274, %v3275
          %v3277 = vrot.slane %v3276, 2
          %v3278 = vmax.f32 %v3276, %v3277
          %v3279 = vrot.slane %v3278, 1
          %v3280 = vmax.f32 %v3278, %v3279
          %v3281 = vsel %vm2510, %v1884, -inf
          %v3282 = vrot.slane %v3281, 4
          %v3283 = vmax.f32 %v3281, %v3282
          %v3284 = vrot.slane %v3283, 2
          %v3285 = vmax.f32 %v3283, %v3284
          %v3286 = vrot.slane %v3285, 1
          %v3287 = vmax.f32 %v3285, %v3286
          %v3288 = vsel %vm2510, %v1893, -inf
          %v3289 = vrot.slane %v3288, 4
          %v3290 = vmax.f32 %v3288, %v3289
          %v3291 = vrot.slane %v3290, 2
          %v3292 = vmax.f32 %v3290, %v3291
          %v3293 = vrot.slane %v3292, 1
          %v3294 = vmax.f32 %v3292, %v3293
          %v3295 = vsel %vm2510, %v1901, -inf
          %v3296 = vrot.slane %v3295, 4
          %v3297 = vmax.f32 %v3295, %v3296
          %v3298 = vrot.slane %v3297, 2
          %v3299 = vmax.f32 %v3297, %v3298
          %v3300 = vrot.slane %v3299, 1
          %v3301 = vmax.f32 %v3299, %v3300
          %v3302 = vsel %vm2510, %v1900, -inf
          %v3303 = vrot.slane %v3302, 4
          %v3304 = vmax.f32 %v3302, %v3303
          %v3305 = vrot.slane %v3304, 2
          %v3306 = vmax.f32 %v3304, %v3305
          %v3307 = vrot.slane %v3306, 1
          %v3308 = vmax.f32 %v3306, %v3307
          %v3309 = vsel %vm2510, %v1909, -inf
          %v3310 = vrot.slane %v3309, 4
          %v3311 = vmax.f32 %v3309, %v3310
          %v3312 = vrot.slane %v3311, 2
          %v3313 = vmax.f32 %v3311, %v3312
          %v3314 = vrot.slane %v3313, 1
          %v3315 = vmax.f32 %v3313, %v3314
          %v3316 = vsel %vm2510, %v1917, -inf
          %v3317 = vrot.slane %v3316, 4
          %v3318 = vmax.f32 %v3316, %v3317
          %v3319 = vrot.slane %v3318, 2
          %v3320 = vmax.f32 %v3318, %v3319
          %v3321 = vrot.slane %v3320, 1
          %v3322 = vmax.f32 %v3320, %v3321
          %v3323 = vsel %vm2510, %v1916, -inf
          %v3324 = vrot.slane %v3323, 4
          %v3325 = vmax.f32 %v3323, %v3324
          %v3326 = vrot.slane %v3325, 2
          %v3327 = vmax.f32 %v3325, %v3326
          %v3328 = vrot.slane %v3327, 1
          %v3329 = vmax.f32 %v3327, %v3328
          %v3330 = vsel %vm2510, %v1925, -inf
          %v3331 = vrot.slane %v3330, 4
          %v3332 = vmax.f32 %v3330, %v3331
          %v3333 = vrot.slane %v3332, 2
          %v3334 = vmax.f32 %v3332, %v3333
          %v3335 = vrot.slane %v3334, 1
          %v3336 = vmax.f32 %v3334, %v3335
          %v3337 = vsel %vm2510, %v1933, -inf
          %v3338 = vrot.slane %v3337, 4
          %v3339 = vmax.f32 %v3337, %v3338
          %v3340 = vrot.slane %v3339, 2
          %v3341 = vmax.f32 %v3339, %v3340
          %v3342 = vrot.slane %v3341, 1
          %v3343 = vmax.f32 %v3341, %v3342
          %v3344 = vsel %vm2510, %v1932, -inf
          %v3345 = vrot.slane %v3344, 4
          %v3346 = vmax.f32 %v3344, %v3345
          %v3347 = vrot.slane %v3346, 2
          %v3348 = vmax.f32 %v3346, %v3347
          %v3349 = vrot.slane %v3348, 1
          %v3350 = vmax.f32 %v3348, %v3349
          %v3351 = vsel %vm2510, %v1941, -inf
          %v3352 = vrot.slane %v3351, 4
          %v3353 = vmax.f32 %v3351, %v3352
          %v3354 = vrot.slane %v3353, 2
          %v3355 = vmax.f32 %v3353, %v3354
          %v3356 = vrot.slane %v3355, 1
          %v3357 = vmax.f32 %v3355, %v3356
          %v3358 = vsel %vm2510, %v1949, -inf
          %v3359 = vrot.slane %v3358, 4
          %v3360 = vmax.f32 %v3358, %v3359
          %v3361 = vrot.slane %v3360, 2
          %v3362 = vmax.f32 %v3360, %v3361
          %v3363 = vrot.slane %v3362, 1
          %v3364 = vmax.f32 %v3362, %v3363
          %v3365 = vsel %vm2510, %v1948, -inf
          %v3366 = vrot.slane %v3365, 4
          %v3367 = vmax.f32 %v3365, %v3366
          %v3368 = vrot.slane %v3367, 2
          %v3369 = vmax.f32 %v3367, %v3368
          %v3370 = vrot.slane %v3369, 1
          %v3371 = vmax.f32 %v3369, %v3370
          %v3372 = vsel %vm2510, %v1957, -inf
          %v3373 = vrot.slane %v3372, 4
          %v3374 = vmax.f32 %v3372, %v3373
          %v3375 = vrot.slane %v3374, 2
          %v3376 = vmax.f32 %v3374, %v3375
          %v3377 = vrot.slane %v3376, 1
          %v3378 = vmax.f32 %v3376, %v3377
          %v3379 = vsel %vm2510, %v1965, -inf
          %v3380 = vrot.slane %v3379, 4
          %v3381 = vmax.f32 %v3379, %v3380
          %v3382 = vrot.slane %v3381, 2
          %v3383 = vmax.f32 %v3381, %v3382
          %v3384 = vrot.slane %v3383, 1
          %v3385 = vmax.f32 %v3383, %v3384
          %v3386 = vsel %vm2510, %v1964, -inf
          %v3387 = vrot.slane %v3386, 4
          %v3388 = vmax.f32 %v3386, %v3387
          %v3389 = vrot.slane %v3388, 2
          %v3390 = vmax.f32 %v3388, %v3389
          %v3391 = vrot.slane %v3390, 1
          %v3392 = vmax.f32 %v3390, %v3391
          %v3393 = vsel %vm2510, %v1973, -inf
          %v3394 = vrot.slane %v3393, 4
          %v3395 = vmax.f32 %v3393, %v3394
          %v3396 = vrot.slane %v3395, 2
          %v3397 = vmax.f32 %v3395, %v3396
          %v3398 = vrot.slane %v3397, 1
          %v3399 = vmax.f32 %v3397, %v3398
          %v3400 = vsel %vm2510, %v1981, -inf
          %v3401 = vrot.slane %v3400, 4
          %v3402 = vmax.f32 %v3400, %v3401
          %v3403 = vrot.slane %v3402, 2
          %v3404 = vmax.f32 %v3402, %v3403
          %v3405 = vrot.slane %v3404, 1
          %v3406 = vmax.f32 %v3404, %v3405
          %v3407 = vsel %vm2510, %v1980, -inf
          %v3408 = vrot.slane %v3407, 4
          %v3409 = vmax.f32 %v3407, %v3408
          %v3410 = vrot.slane %v3409, 2
          %v3411 = vmax.f32 %v3409, %v3410
          %v3412 = vrot.slane %v3411, 1
          %v3413 = vmax.f32 %v3411, %v3412
          %v3414 = vsel %vm2510, %v1989, -inf
          %v3415 = vrot.slane %v3414, 4
          %v3416 = vmax.f32 %v3414, %v3415
          %v3417 = vrot.slane %v3416, 2
          %v3418 = vmax.f32 %v3416, %v3417
          %v3419 = vrot.slane %v3418, 1
          %v3420 = vmax.f32 %v3418, %v3419
          %v3421 = vsel %vm2510, %v1997, -inf
          %v3422 = vrot.slane %v3421, 4
          %v3423 = vmax.f32 %v3421, %v3422
          %v3424 = vrot.slane %v3423, 2
          %v3425 = vmax.f32 %v3423, %v3424
          %v3426 = vrot.slane %v3425, 1
          %v3427 = vmax.f32 %v3425, %v3426
          %v3428 = vsel %vm2510, %v1996, -inf
          %v3429 = vrot.slane %v3428, 4
          %v3430 = vmax.f32 %v3428, %v3429
          %v3431 = vrot.slane %v3430, 2
          %v3432 = vmax.f32 %v3430, %v3431
          %v3433 = vrot.slane %v3432, 1
          %v3434 = vmax.f32 %v3432, %v3433
          %v3435 = vsel %vm2510, %v2005, -inf
          %v3436 = vrot.slane %v3435, 4
          %v3437 = vmax.f32 %v3435, %v3436
          %v3438 = vrot.slane %v3437, 2
          %v3439 = vmax.f32 %v3437, %v3438
          %v3440 = vrot.slane %v3439, 1
          %v3441 = vmax.f32 %v3439, %v3440
          %v3442 = vsel %vm2510, %v2013, -inf
          %v3443 = vrot.slane %v3442, 4
          %v3444 = vmax.f32 %v3442, %v3443
          %v3445 = vrot.slane %v3444, 2
          %v3446 = vmax.f32 %v3444, %v3445
          %v3447 = vrot.slane %v3446, 1
          %v3448 = vmax.f32 %v3446, %v3447
          %v3449 = vsel %vm2510, %v2012, -inf
          %v3450 = vrot.slane %v3449, 4
          %v3451 = vmax.f32 %v3449, %v3450
          %v3452 = vrot.slane %v3451, 2
          %v3453 = vmax.f32 %v3451, %v3452
          %v3454 = vrot.slane %v3453, 1
          %v3455 = vmax.f32 %v3453, %v3454
          %v3456 = vsel %vm2510, %v2021, -inf
          %v3457 = vrot.slane %v3456, 4
          %v3458 = vmax.f32 %v3456, %v3457
          %v3459 = vrot.slane %v3458, 2
          %v3460 = vmax.f32 %v3458, %v3459
          %v3461 = vrot.slane %v3460, 1
          %v3462 = vmax.f32 %v3460, %v3461
          %v3463 = vsel %vm2510, %v2029, -inf
          %v3464 = vrot.slane %v3463, 4
          %v3465 = vmax.f32 %v3463, %v3464
          %v3466 = vrot.slane %v3465, 2
          %v3467 = vmax.f32 %v3465, %v3466
          %v3468 = vrot.slane %v3467, 1
          %v3469 = vmax.f32 %v3467, %v3468
          %v3470 = vsel %vm2510, %v2028, -inf
          %v3471 = vrot.slane %v3470, 4
          %v3472 = vmax.f32 %v3470, %v3471
          %v3473 = vrot.slane %v3472, 2
          %v3474 = vmax.f32 %v3472, %v3473
          %v3475 = vrot.slane %v3474, 1
          %v3476 = vmax.f32 %v3474, %v3475
          %v3477 = vsel %vm2510, %v2037, -inf
          %v3478 = vrot.slane %v3477, 4
          %v3479 = vmax.f32 %v3477, %v3478
          %v3480 = vrot.slane %v3479, 2
          %v3481 = vmax.f32 %v3479, %v3480
          %v3482 = vrot.slane %v3481, 1
          %v3483 = vmax.f32 %v3481, %v3482
          %v3484 = vsel %vm2510, %v2045, -inf
          %v3485 = vrot.slane %v3484, 4
          %v3486 = vmax.f32 %v3484, %v3485
          %v3487 = vrot.slane %v3486, 2
          %v3488 = vmax.f32 %v3486, %v3487
          %v3489 = vrot.slane %v3488, 1
          %v3490 = vmax.f32 %v3488, %v3489
          %v3491 = vsel %vm2510, %v2044, -inf
          %v3492 = vrot.slane %v3491, 4
          %v3493 = vmax.f32 %v3491, %v3492
          %v3494 = vrot.slane %v3493, 2
          %v3495 = vmax.f32 %v3493, %v3494
          %v3496 = vrot.slane %v3495, 1
          %v3497 = vmax.f32 %v3495, %v3496
          %v3498 = vsel %vm2510, %v2053, -inf
          %v3499 = vrot.slane %v3498, 4
          %v3500 = vmax.f32 %v3498, %v3499
          %v3501 = vrot.slane %v3500, 2
          %v3502 = vmax.f32 %v3500, %v3501
          %v3503 = vrot.slane %v3502, 1
          %v3504 = vmax.f32 %v3502, %v3503
          %v3505 = vsel %vm2510, %v2061, -inf
          %v3506 = vrot.slane %v3505, 4
          %v3507 = vmax.f32 %v3505, %v3506
          %v3508 = vrot.slane %v3507, 2
          %v3509 = vmax.f32 %v3507, %v3508
          %v3510 = vrot.slane %v3509, 1
          %v3511 = vmax.f32 %v3509, %v3510
          %v3512 = vsel %vm2510, %v2060, -inf
          %v3513 = vrot.slane %v3512, 4
          %v3514 = vmax.f32 %v3512, %v3513
          %v3515 = vrot.slane %v3514, 2
          %v3516 = vmax.f32 %v3514, %v3515
          %v3517 = vrot.slane %v3516, 1
          %v3518 = vmax.f32 %v3516, %v3517
          %v3519 = vsel %vm2510, %v2069, -inf
          %v3520 = vrot.slane %v3519, 4
          %v3521 = vmax.f32 %v3519, %v3520
          %v3522 = vrot.slane %v3521, 2
          %v3523 = vmax.f32 %v3521, %v3522
          %v3524 = vrot.slane %v3523, 1
          %v3525 = vmax.f32 %v3523, %v3524
          %v3526 = vsel %vm2510, %v2077, -inf
          %v3527 = vrot.slane %v3526, 4
          %v3528 = vmax.f32 %v3526, %v3527
          %v3529 = vrot.slane %v3528, 2
          %v3530 = vmax.f32 %v3528, %v3529
          %v3531 = vrot.slane %v3530, 1
          %v3532 = vmax.f32 %v3530, %v3531
          %v3533 = vsel %vm2510, %v2076, -inf
          %v3534 = vrot.slane %v3533, 4
          %v3535 = vmax.f32 %v3533, %v3534
          %v3536 = vrot.slane %v3535, 2
          %v3537 = vmax.f32 %v3535, %v3536
          %v3538 = vrot.slane %v3537, 1
          %v3539 = vmax.f32 %v3537, %v3538
          %v3540 = vsel %vm2510, %v2085, -inf
          %v3541 = vrot.slane %v3540, 4
          %v3542 = vmax.f32 %v3540, %v3541
          %v3543 = vrot.slane %v3542, 2
          %v3544 = vmax.f32 %v3542, %v3543
          %v3545 = vrot.slane %v3544, 1
          %v3546 = vmax.f32 %v3544, %v3545
          %v3547 = vsel %vm2510, %v2093, -inf
          %v3548 = vrot.slane %v3547, 4
          %v3549 = vmax.f32 %v3547, %v3548
          %v3550 = vrot.slane %v3549, 2
          %v3551 = vmax.f32 %v3549, %v3550
          %v3552 = vrot.slane %v3551, 1
          %v3553 = vmax.f32 %v3551, %v3552
          %v3554 = vsel %vm2510, %v2092, -inf
          %v3555 = vrot.slane %v3554, 4
          %v3556 = vmax.f32 %v3554, %v3555
          %v3557 = vrot.slane %v3556, 2
          %v3558 = vmax.f32 %v3556, %v3557
          %v3559 = vrot.slane %v3558, 1
          %v3560 = vmax.f32 %v3558, %v3559
          %v3561 = vsel %vm2510, %v2101, -inf
          %v3562 = vrot.slane %v3561, 4
          %v3563 = vmax.f32 %v3561, %v3562
          %v3564 = vrot.slane %v3563, 2
          %v3565 = vmax.f32 %v3563, %v3564
          %v3566 = vrot.slane %v3565, 1
          %v3567 = vmax.f32 %v3565, %v3566
          %v3568 = vsel %vm2510, %v2109, -inf
          %v3569 = vrot.slane %v3568, 4
          %v3570 = vmax.f32 %v3568, %v3569
          %v3571 = vrot.slane %v3570, 2
          %v3572 = vmax.f32 %v3570, %v3571
          %v3573 = vrot.slane %v3572, 1
          %v3574 = vmax.f32 %v3572, %v3573
          %v3575 = vsel %vm2510, %v2108, -inf
          %v3576 = vrot.slane %v3575, 4
          %v3577 = vmax.f32 %v3575, %v3576
          %v3578 = vrot.slane %v3577, 2
          %v3579 = vmax.f32 %v3577, %v3578
          %v3580 = vrot.slane %v3579, 1
          %v3581 = vmax.f32 %v3579, %v3580
          %v3582 = vsel %vm2510, %v2117, -inf
          %v3583 = vrot.slane %v3582, 4
          %v3584 = vmax.f32 %v3582, %v3583
          %v3585 = vrot.slane %v3584, 2
          %v3586 = vmax.f32 %v3584, %v3585
          %v3587 = vrot.slane %v3586, 1
          %v3588 = vmax.f32 %v3586, %v3587
          %v3589 = vsel %vm2510, %v2125, -inf
          %v3590 = vrot.slane %v3589, 4
          %v3591 = vmax.f32 %v3589, %v3590
          %v3592 = vrot.slane %v3591, 2
          %v3593 = vmax.f32 %v3591, %v3592
          %v3594 = vrot.slane %v3593, 1
          %v3595 = vmax.f32 %v3593, %v3594
          %v3596 = vsel %vm2510, %v2124, -inf
          %v3597 = vrot.slane %v3596, 4
          %v3598 = vmax.f32 %v3596, %v3597
          %v3599 = vrot.slane %v3598, 2
          %v3600 = vmax.f32 %v3598, %v3599
          %v3601 = vrot.slane %v3600, 1
          %v3602 = vmax.f32 %v3600, %v3601
          %v3603 = vsel %vm2510, %v2133, -inf
          %v3604 = vrot.slane %v3603, 4
          %v3605 = vmax.f32 %v3603, %v3604
          %v3606 = vrot.slane %v3605, 2
          %v3607 = vmax.f32 %v3605, %v3606
          %v3608 = vrot.slane %v3607, 1
          %v3609 = vmax.f32 %v3607, %v3608
          %v3610 = vsel %vm2510, %v2141, -inf
          %v3611 = vrot.slane %v3610, 4
          %v3612 = vmax.f32 %v3610, %v3611
          %v3613 = vrot.slane %v3612, 2
          %v3614 = vmax.f32 %v3612, %v3613
          %v3615 = vrot.slane %v3614, 1
          %v3616 = vmax.f32 %v3614, %v3615
          %v3617 = vsel %vm2510, %v2140, -inf
          %v3618 = vrot.slane %v3617, 4
          %v3619 = vmax.f32 %v3617, %v3618
          %v3620 = vrot.slane %v3619, 2
          %v3621 = vmax.f32 %v3619, %v3620
          %v3622 = vrot.slane %v3621, 1
          %v3623 = vmax.f32 %v3621, %v3622
          %v3624 = vsel %vm2510, %v2149, -inf
          %v3625 = vrot.slane %v3624, 4
          %v3626 = vmax.f32 %v3624, %v3625
          %v3627 = vrot.slane %v3626, 2
          %v3628 = vmax.f32 %v3626, %v3627
          %v3629 = vrot.slane %v3628, 1
          %v3630 = vmax.f32 %v3628, %v3629
          %v3631 = vsel %vm2510, %v2157, -inf
          %v3632 = vrot.slane %v3631, 4
          %v3633 = vmax.f32 %v3631, %v3632
          %v3634 = vrot.slane %v3633, 2
          %v3635 = vmax.f32 %v3633, %v3634
          %v3636 = vrot.slane %v3635, 1
          %v3637 = vmax.f32 %v3635, %v3636
          %v3638 = vsel %vm2510, %v2156, -inf
          %v3639 = vrot.slane %v3638, 4
          %v3640 = vmax.f32 %v3638, %v3639
          %v3641 = vrot.slane %v3640, 2
          %v3642 = vmax.f32 %v3640, %v3641
          %v3643 = vrot.slane %v3642, 1
          %v3644 = vmax.f32 %v3642, %v3643
          %v3645 = vsel %vm2510, %v2165, -inf
          %v3646 = vrot.slane %v3645, 4
          %v3647 = vmax.f32 %v3645, %v3646
          %v3648 = vrot.slane %v3647, 2
          %v3649 = vmax.f32 %v3647, %v3648
          %v3650 = vrot.slane %v3649, 1
          %v3651 = vmax.f32 %v3649, %v3650
          %v3652 = vsel %vm2510, %v2173, -inf
          %v3653 = vrot.slane %v3652, 4
          %v3654 = vmax.f32 %v3652, %v3653
          %v3655 = vrot.slane %v3654, 2
          %v3656 = vmax.f32 %v3654, %v3655
          %v3657 = vrot.slane %v3656, 1
          %v3658 = vmax.f32 %v3656, %v3657
          %v3659 = vsel %vm2510, %v2172, -inf
          %v3660 = vrot.slane %v3659, 4
          %v3661 = vmax.f32 %v3659, %v3660
          %v3662 = vrot.slane %v3661, 2
          %v3663 = vmax.f32 %v3661, %v3662
          %v3664 = vrot.slane %v3663, 1
          %v3665 = vmax.f32 %v3663, %v3664
          %v3666 = vsel %vm2510, %v2181, -inf
          %v3667 = vrot.slane %v3666, 4
          %v3668 = vmax.f32 %v3666, %v3667
          %v3669 = vrot.slane %v3668, 2
          %v3670 = vmax.f32 %v3668, %v3669
          %v3671 = vrot.slane %v3670, 1
          %v3672 = vmax.f32 %v3670, %v3671
          %v3673 = vsel %vm2510, %v2189, -inf
          %v3674 = vrot.slane %v3673, 4
          %v3675 = vmax.f32 %v3673, %v3674
          %v3676 = vrot.slane %v3675, 2
          %v3677 = vmax.f32 %v3675, %v3676
          %v3678 = vrot.slane %v3677, 1
          %v3679 = vmax.f32 %v3677, %v3678
          %v3680 = vsel %vm2510, %v2188, -inf
          %v3681 = vrot.slane %v3680, 4
          %v3682 = vmax.f32 %v3680, %v3681
          %v3683 = vrot.slane %v3682, 2
          %v3684 = vmax.f32 %v3682, %v3683
          %v3685 = vrot.slane %v3684, 1
          %v3686 = vmax.f32 %v3684, %v3685
          %v3687 = vsel %vm2510, %v2197, -inf
          %v3688 = vrot.slane %v3687, 4
          %v3689 = vmax.f32 %v3687, %v3688
          %v3690 = vrot.slane %v3689, 2
          %v3691 = vmax.f32 %v3689, %v3690
          %v3692 = vrot.slane %v3691, 1
          %v3693 = vmax.f32 %v3691, %v3692
          %v3694 = vsel %vm2510, %v2205, -inf
          %v3695 = vrot.slane %v3694, 4
          %v3696 = vmax.f32 %v3694, %v3695
          %v3697 = vrot.slane %v3696, 2
          %v3698 = vmax.f32 %v3696, %v3697
          %v3699 = vrot.slane %v3698, 1
          %v3700 = vmax.f32 %v3698, %v3699
          %v3701 = vsel %vm2510, %v2204, -inf
          %v3702 = vrot.slane %v3701, 4
          %v3703 = vmax.f32 %v3701, %v3702
          %v3704 = vrot.slane %v3703, 2
          %v3705 = vmax.f32 %v3703, %v3704
          %v3706 = vrot.slane %v3705, 1
          %v3707 = vmax.f32 %v3705, %v3706
          %v3708 = vsel %vm2510, %v2213, -inf
          %v3709 = vrot.slane %v3708, 4
          %v3710 = vmax.f32 %v3708, %v3709
          %v3711 = vrot.slane %v3710, 2
          %v3712 = vmax.f32 %v3710, %v3711
          %v3713 = vrot.slane %v3712, 1
          %v3714 = vmax.f32 %v3712, %v3713
          %v3715 = vsel %vm2510, %v2221, -inf
          %v3716 = vrot.slane %v3715, 4
          %v3717 = vmax.f32 %v3715, %v3716
          %v3718 = vrot.slane %v3717, 2
          %v3719 = vmax.f32 %v3717, %v3718
          %v3720 = vrot.slane %v3719, 1
          %v3721 = vmax.f32 %v3719, %v3720
          %v3722 = vsel %vm2510, %v2220, -inf
          %v3723 = vrot.slane %v3722, 4
          %v3724 = vmax.f32 %v3722, %v3723
          %v3725 = vrot.slane %v3724, 2
          %v3726 = vmax.f32 %v3724, %v3725
          %v3727 = vrot.slane %v3726, 1
          %v3728 = vmax.f32 %v3726, %v3727
          %v3729 = vsel %vm2510, %v2229, -inf
          %v3730 = vrot.slane %v3729, 4
          %v3731 = vmax.f32 %v3729, %v3730
          %v3732 = vrot.slane %v3731, 2
          %v3733 = vmax.f32 %v3731, %v3732
          %v3734 = vrot.slane %v3733, 1
          %v3735 = vmax.f32 %v3733, %v3734
          %v3736 = vsel %vm2510, %v2237, -inf
          %v3737 = vrot.slane %v3736, 4
          %v3738 = vmax.f32 %v3736, %v3737
          %v3739 = vrot.slane %v3738, 2
          %v3740 = vmax.f32 %v3738, %v3739
          %v3741 = vrot.slane %v3740, 1
          %v3742 = vmax.f32 %v3740, %v3741
          %v3743 = vsel %vm2510, %v2236, -inf
          %v3744 = vrot.slane %v3743, 4
          %v3745 = vmax.f32 %v3743, %v3744
          %v3746 = vrot.slane %v3745, 2
          %v3747 = vmax.f32 %v3745, %v3746
          %v3748 = vrot.slane %v3747, 1
          %v3749 = vmax.f32 %v3747, %v3748
          %v3750 = vsel %vm2510, %v2245, -inf
          %v3751 = vrot.slane %v3750, 4
          %v3752 = vmax.f32 %v3750, %v3751
          %v3753 = vrot.slane %v3752, 2
          %v3754 = vmax.f32 %v3752, %v3753
          %v3755 = vrot.slane %v3754, 1
          %v3756 = vmax.f32 %v3754, %v3755
          %v3757 = vsel %vm2510, %v2253, -inf
          %v3758 = vrot.slane %v3757, 4
          %v3759 = vmax.f32 %v3757, %v3758
          %v3760 = vrot.slane %v3759, 2
          %v3761 = vmax.f32 %v3759, %v3760
          %v3762 = vrot.slane %v3761, 1
          %v3763 = vmax.f32 %v3761, %v3762
          %v3764 = vsel %vm2510, %v2252, -inf
          %v3765 = vrot.slane %v3764, 4
          %v3766 = vmax.f32 %v3764, %v3765
          %v3767 = vrot.slane %v3766, 2
          %v3768 = vmax.f32 %v3766, %v3767
          %v3769 = vrot.slane %v3768, 1
          %v3770 = vmax.f32 %v3768, %v3769
          %v3771 = vsel %vm2510, %v2261, -inf
          %v3772 = vrot.slane %v3771, 4
          %v3773 = vmax.f32 %v3771, %v3772
          %v3774 = vrot.slane %v3773, 2
          %v3775 = vmax.f32 %v3773, %v3774
          %v3776 = vrot.slane %v3775, 1
          %v3777 = vmax.f32 %v3775, %v3776
          %v3778 = vsel %vm2510, %v2269, -inf
          %v3779 = vrot.slane %v3778, 4
          %v3780 = vmax.f32 %v3778, %v3779
          %v3781 = vrot.slane %v3780, 2
          %v3782 = vmax.f32 %v3780, %v3781
          %v3783 = vrot.slane %v3782, 1
          %v3784 = vmax.f32 %v3782, %v3783
          %v3785 = vsel %vm2510, %v2268, -inf
          %v3786 = vrot.slane %v3785, 4
          %v3787 = vmax.f32 %v3785, %v3786
          %v3788 = vrot.slane %v3787, 2
          %v3789 = vmax.f32 %v3787, %v3788
          %v3790 = vrot.slane %v3789, 1
          %v3791 = vmax.f32 %v3789, %v3790
          %v3792 = vsel %vm2510, %v2277, -inf
          %v3793 = vrot.slane %v3792, 4
          %v3794 = vmax.f32 %v3792, %v3793
          %v3795 = vrot.slane %v3794, 2
          %v3796 = vmax.f32 %v3794, %v3795
          %v3797 = vrot.slane %v3796, 1
          %v3798 = vmax.f32 %v3796, %v3797
          %v3799 = vsel %vm2510, %v2285, -inf
          %v3800 = vrot.slane %v3799, 4
          %v3801 = vmax.f32 %v3799, %v3800
          %v3802 = vrot.slane %v3801, 2
          %v3803 = vmax.f32 %v3801, %v3802
          %v3804 = vrot.slane %v3803, 1
          %v3805 = vmax.f32 %v3803, %v3804
          %v3806 = vsel %vm2510, %v2284, -inf
          %v3807 = vrot.slane %v3806, 4
          %v3808 = vmax.f32 %v3806, %v3807
          %v3809 = vrot.slane %v3808, 2
          %v3810 = vmax.f32 %v3808, %v3809
          %v3811 = vrot.slane %v3810, 1
          %v3812 = vmax.f32 %v3810, %v3811
          %v3813 = vsel %vm2510, %v2293, -inf
          %v3814 = vrot.slane %v3813, 4
          %v3815 = vmax.f32 %v3813, %v3814
          %v3816 = vrot.slane %v3815, 2
          %v3817 = vmax.f32 %v3815, %v3816
          %v3818 = vrot.slane %v3817, 1
          %v3819 = vmax.f32 %v3817, %v3818
          %v3820 = vsel %vm2510, %v2301, -inf
          %v3821 = vrot.slane %v3820, 4
          %v3822 = vmax.f32 %v3820, %v3821
          %v3823 = vrot.slane %v3822, 2
          %v3824 = vmax.f32 %v3822, %v3823
          %v3825 = vrot.slane %v3824, 1
          %v3826 = vmax.f32 %v3824, %v3825
          %v3827 = vsel %vm2510, %v2300, -inf
          %v3828 = vrot.slane %v3827, 4
          %v3829 = vmax.f32 %v3827, %v3828
          %v3830 = vrot.slane %v3829, 2
          %v3831 = vmax.f32 %v3829, %v3830
          %v3832 = vrot.slane %v3831, 1
          %v3833 = vmax.f32 %v3831, %v3832
          %v3834 = vsel %vm2510, %v2309, -inf
          %v3835 = vrot.slane %v3834, 4
          %v3836 = vmax.f32 %v3834, %v3835
          %v3837 = vrot.slane %v3836, 2
          %v3838 = vmax.f32 %v3836, %v3837
          %v3839 = vrot.slane %v3838, 1
          %v3840 = vmax.f32 %v3838, %v3839
          %v3841 = vsel %vm2510, %v2317, -inf
          %v3842 = vrot.slane %v3841, 4
          %v3843 = vmax.f32 %v3841, %v3842
          %v3844 = vrot.slane %v3843, 2
          %v3845 = vmax.f32 %v3843, %v3844
          %v3846 = vrot.slane %v3845, 1
          %v3847 = vmax.f32 %v3845, %v3846
          %v3848 = vsel %vm2510, %v2316, -inf
          %v3849 = vrot.slane %v3848, 4
          %v3850 = vmax.f32 %v3848, %v3849
          %v3851 = vrot.slane %v3850, 2
          %v3852 = vmax.f32 %v3850, %v3851
          %v3853 = vrot.slane %v3852, 1
          %v3854 = vmax.f32 %v3852, %v3853
          %v3855 = vmax.f32 %v2517, %v2853
          %v3856 = vmax.f32 %v2524, %v2860
          %v3857 = vmax.f32 %v2531, %v2867
          %v3858 = vmax.f32 %v2538, %v2874
          %v3859 = vmax.f32 %v2545, %v2881
          %v3860 = vmax.f32 %v2552, %v2888
          %v3861 = vmax.f32 %v2559, %v2895
          %v3862 = vmax.f32 %v2566, %v2902
          %v3863 = vmax.f32 %v2573, %v2909
          %v3864 = vmax.f32 %v2580, %v2916
          %v3865 = vmax.f32 %v2587, %v2923
          %v3866 = vmax.f32 %v2594, %v2930
          %v3867 = vmax.f32 %v2601, %v2937
          %v3868 = vmax.f32 %v2608, %v2944
          %v3869 = vmax.f32 %v2615, %v2951
          %v3870 = vmax.f32 %v2622, %v2958
          %v3871 = vmax.f32 %v2629, %v2965
          %v3872 = vmax.f32 %v2636, %v2972
          %v3873 = vmax.f32 %v2643, %v2979
          %v3874 = vmax.f32 %v2650, %v2986
          %v3875 = vmax.f32 %v2657, %v2993
          %v3876 = vmax.f32 %v2664, %v3000
          %v3877 = vmax.f32 %v2671, %v3007
          %v3878 = vmax.f32 %v2678, %v3014
          %v3879 = vmax.f32 %v2685, %v3021
          %v3880 = vmax.f32 %v2692, %v3028
          %v3881 = vmax.f32 %v2699, %v3035
          %v3882 = vmax.f32 %v2706, %v3042
          %v3883 = vmax.f32 %v2713, %v3049
          %v3884 = vmax.f32 %v2720, %v3056
          %v3885 = vmax.f32 %v2727, %v3063
          %v3886 = vmax.f32 %v2734, %v3070
          %v3887 = vmax.f32 %v2741, %v3077
          %v3888 = vmax.f32 %v2748, %v3084
          %v3889 = vmax.f32 %v2755, %v3091
          %v3890 = vmax.f32 %v2762, %v3098
          %v3891 = vmax.f32 %v2769, %v3105
          %v3892 = vmax.f32 %v2776, %v3112
          %v3893 = vmax.f32 %v2783, %v3119
          %v3894 = vmax.f32 %v2790, %v3126
          %v3895 = vmax.f32 %v2797, %v3133
          %v3896 = vmax.f32 %v2804, %v3140
          %v3897 = vmax.f32 %v2811, %v3147
          %v3898 = vmax.f32 %v2818, %v3154
          %v3899 = vmax.f32 %v2825, %v3161
          %v3900 = vmax.f32 %v2832, %v3168
          %v3901 = vmax.f32 %v2839, %v3175
          %v3902 = vmax.f32 %v2846, %v3182
          %v3903 = vmax.f32 %v3189, %v3525
          %v3904 = vmax.f32 %v3196, %v3532
          %v3905 = vmax.f32 %v3203, %v3539
          %v3906 = vmax.f32 %v3210, %v3546
          %v3907 = vmax.f32 %v3217, %v3553
          %v3908 = vmax.f32 %v3224, %v3560
          %v3909 = vmax.f32 %v3231, %v3567
          %v3910 = vmax.f32 %v3238, %v3574
          %v3911 = vmax.f32 %v3245, %v3581
          %v3912 = vmax.f32 %v3252, %v3588
          %v3913 = vmax.f32 %v3259, %v3595
          %v3914 = vmax.f32 %v3266, %v3602
          %v3915 = vmax.f32 %v3273, %v3609
          %v3916 = vmax.f32 %v3280, %v3616
          %v3917 = vmax.f32 %v3287, %v3623
          %v3918 = vmax.f32 %v3294, %v3630
          %v3919 = vmax.f32 %v3301, %v3637
          %v3920 = vmax.f32 %v3308, %v3644
          %v3921 = vmax.f32 %v3315, %v3651
          %v3922 = vmax.f32 %v3322, %v3658
          %v3923 = vmax.f32 %v3329, %v3665
          %v3924 = vmax.f32 %v3336, %v3672
          %v3925 = vmax.f32 %v3343, %v3679
          %v3926 = vmax.f32 %v3350, %v3686
          %v3927 = vmax.f32 %v3357, %v3693
          %v3928 = vmax.f32 %v3364, %v3700
          %v3929 = vmax.f32 %v3371, %v3707
          %v3930 = vmax.f32 %v3378, %v3714
          %v3931 = vmax.f32 %v3385, %v3721
          %v3932 = vmax.f32 %v3392, %v3728
          %v3933 = vmax.f32 %v3399, %v3735
          %v3934 = vmax.f32 %v3406, %v3742
          %v3935 = vmax.f32 %v3413, %v3749
          %v3936 = vmax.f32 %v3420, %v3756
          %v3937 = vmax.f32 %v3427, %v3763
          %v3938 = vmax.f32 %v3434, %v3770
          %v3939 = vmax.f32 %v3441, %v3777
          %v3940 = vmax.f32 %v3448, %v3784
          %v3941 = vmax.f32 %v3455, %v3791
          %v3942 = vmax.f32 %v3462, %v3798
          %v3943 = vmax.f32 %v3469, %v3805
          %v3944 = vmax.f32 %v3476, %v3812
          %v3945 = vmax.f32 %v3483, %v3819
          %v3946 = vmax.f32 %v3490, %v3826
          %v3947 = vmax.f32 %v3497, %v3833
          %v3948 = vmax.f32 %v3504, %v3840
          %v3949 = vmax.f32 %v3511, %v3847
          %v3950 = vmax.f32 %v3518, %v3854
          %s3951 = smul.u32 %s26, 32
          %v3952 = vpack.c.bf16 %v3855, %v3855
          %v3953 = vpack.c.bf16 %v3856, %v3856
          %v3954 = vpack.c.bf16 %v3857, %v3857
          %v3955 = vpack.c.bf16 %v3858, %v3858
          %v3956 = vpack.c.bf16 %v3859, %v3859
          %v3957 = vpack.c.bf16 %v3860, %v3860
          %v3958 = vpack.c.bf16 %v3861, %v3861
          %v3959 = vpack.c.bf16 %v3862, %v3862
          %v3960 = vpack.c.bf16 %v3863, %v3863
          %v3961 = vpack.c.bf16 %v3864, %v3864
          %v3962 = vpack.c.bf16 %v3865, %v3865
          %v3963 = vpack.c.bf16 %v3866, %v3866
          %v3964 = vpack.c.bf16 %v3867, %v3867
          %v3965 = vpack.c.bf16 %v3868, %v3868
          %v3966 = vpack.c.bf16 %v3869, %v3869
          %v3967 = vpack.c.bf16 %v3870, %v3870
          %v3968 = vpack.c.bf16 %v3871, %v3871
          %v3969 = vpack.c.bf16 %v3872, %v3872
          %v3970 = vpack.c.bf16 %v3873, %v3873
          %v3971 = vpack.c.bf16 %v3874, %v3874
          %v3972 = vpack.c.bf16 %v3875, %v3875
          %v3973 = vpack.c.bf16 %v3876, %v3876
          %v3974 = vpack.c.bf16 %v3877, %v3877
          %v3975 = vpack.c.bf16 %v3878, %v3878
          %v3976 = vpack.c.bf16 %v3879, %v3879
          %v3977 = vpack.c.bf16 %v3880, %v3880
          %v3978 = vpack.c.bf16 %v3881, %v3881
          %v3979 = vpack.c.bf16 %v3882, %v3882
          %v3980 = vpack.c.bf16 %v3883, %v3883
          %v3981 = vpack.c.bf16 %v3884, %v3884
          %v3982 = vpack.c.bf16 %v3885, %v3885
          %v3983 = vpack.c.bf16 %v3886, %v3886
          %v3984 = vpack.c.bf16 %v3887, %v3887
          %v3985 = vpack.c.bf16 %v3888, %v3888
          %v3986 = vpack.c.bf16 %v3889, %v3889
          %v3987 = vpack.c.bf16 %v3890, %v3890
          %v3988 = vpack.c.bf16 %v3891, %v3891
          %v3989 = vpack.c.bf16 %v3892, %v3892
          %v3990 = vpack.c.bf16 %v3893, %v3893
          %v3991 = vpack.c.bf16 %v3894, %v3894
          %v3992 = vpack.c.bf16 %v3895, %v3895
          %v3993 = vpack.c.bf16 %v3896, %v3896
          %v3994 = vpack.c.bf16 %v3897, %v3897
          %v3995 = vpack.c.bf16 %v3898, %v3898
          %v3996 = vpack.c.bf16 %v3899, %v3899
          %v3997 = vpack.c.bf16 %v3900, %v3900
          %v3998 = vpack.c.bf16 %v3901, %v3901
          %v3999 = vpack.c.bf16 %v3902, %v3902
          %v4000 = vpack.c.bf16 %v3903, %v3903
          %v4001 = vpack.c.bf16 %v3904, %v3904
          %v4002 = vpack.c.bf16 %v3905, %v3905
          %v4003 = vpack.c.bf16 %v3906, %v3906
          %v4004 = vpack.c.bf16 %v3907, %v3907
          %v4005 = vpack.c.bf16 %v3908, %v3908
          %v4006 = vpack.c.bf16 %v3909, %v3909
          %v4007 = vpack.c.bf16 %v3910, %v3910
          %v4008 = vpack.c.bf16 %v3911, %v3911
          %v4009 = vpack.c.bf16 %v3912, %v3912
          %v4010 = vpack.c.bf16 %v3913, %v3913
          %v4011 = vpack.c.bf16 %v3914, %v3914
          %v4012 = vpack.c.bf16 %v3915, %v3915
          %v4013 = vpack.c.bf16 %v3916, %v3916
          %v4014 = vpack.c.bf16 %v3917, %v3917
          %v4015 = vpack.c.bf16 %v3918, %v3918
          %v4016 = vpack.c.bf16 %v3919, %v3919
          %v4017 = vpack.c.bf16 %v3920, %v3920
          %v4018 = vpack.c.bf16 %v3921, %v3921
          %v4019 = vpack.c.bf16 %v3922, %v3922
          %v4020 = vpack.c.bf16 %v3923, %v3923
          %v4021 = vpack.c.bf16 %v3924, %v3924
          %v4022 = vpack.c.bf16 %v3925, %v3925
          %v4023 = vpack.c.bf16 %v3926, %v3926
          %v4024 = vpack.c.bf16 %v3927, %v3927
          %v4025 = vpack.c.bf16 %v3928, %v3928
          %v4026 = vpack.c.bf16 %v3929, %v3929
          %v4027 = vpack.c.bf16 %v3930, %v3930
          %v4028 = vpack.c.bf16 %v3931, %v3931
          %v4029 = vpack.c.bf16 %v3932, %v3932
          %v4030 = vpack.c.bf16 %v3933, %v3933
          %v4031 = vpack.c.bf16 %v3934, %v3934
          %v4032 = vpack.c.bf16 %v3935, %v3935
          %v4033 = vpack.c.bf16 %v3936, %v3936
          %v4034 = vpack.c.bf16 %v3937, %v3937
          %v4035 = vpack.c.bf16 %v3938, %v3938
          %v4036 = vpack.c.bf16 %v3939, %v3939
          %v4037 = vpack.c.bf16 %v3940, %v3940
          %v4038 = vpack.c.bf16 %v3941, %v3941
          %v4039 = vpack.c.bf16 %v3942, %v3942
          %v4040 = vpack.c.bf16 %v3943, %v3943
          %v4041 = vpack.c.bf16 %v3944, %v3944
          %v4042 = vpack.c.bf16 %v3945, %v3945
          %v4043 = vpack.c.bf16 %v3946, %v3946
          %v4044 = vpack.c.bf16 %v3947, %v3947
          %v4045 = vpack.c.bf16 %v3948, %v3948
          %v4046 = vpack.c.bf16 %v3949, %v3949
          %v4047 = vpack.c.bf16 %v3950, %v3950
          %v4144 = vunpack.c.l.b16 %v3952
          %v4145 = vunpack.c.l.b16 %v3953
          %v4146 = vunpack.c.l.b16 %v3954
          %v4147 = vunpack.c.l.b16 %v3955
          %v4148 = vunpack.c.l.b16 %v3956
          %v4149 = vunpack.c.l.b16 %v3957
          %v4150 = vunpack.c.l.b16 %v3958
          %v4151 = vunpack.c.l.b16 %v3959
          %v4152 = vunpack.c.l.b16 %v3960
          %v4153 = vunpack.c.l.b16 %v3961
          %v4154 = vunpack.c.l.b16 %v3962
          %v4155 = vunpack.c.l.b16 %v3963
          %v4156 = vunpack.c.l.b16 %v3964
          %v4157 = vunpack.c.l.b16 %v3965
          %v4158 = vunpack.c.l.b16 %v3966
          %v4159 = vunpack.c.l.b16 %v3967
          %v4160 = vunpack.c.l.b16 %v3968
          %v4161 = vunpack.c.l.b16 %v3969
          %v4162 = vunpack.c.l.b16 %v3970
          %v4163 = vunpack.c.l.b16 %v3971
          %v4164 = vunpack.c.l.b16 %v3972
          %v4165 = vunpack.c.l.b16 %v3973
          %v4166 = vunpack.c.l.b16 %v3974
          %v4167 = vunpack.c.l.b16 %v3975
          %v4168 = vunpack.c.l.b16 %v3976
          %v4169 = vunpack.c.l.b16 %v3977
          %v4170 = vunpack.c.l.b16 %v3978
          %v4171 = vunpack.c.l.b16 %v3979
          %v4172 = vunpack.c.l.b16 %v3980
          %v4173 = vunpack.c.l.b16 %v3981
          %v4174 = vunpack.c.l.b16 %v3982
          %v4175 = vunpack.c.l.b16 %v3983
          %v4176 = vunpack.c.l.b16 %v3984
          %v4177 = vunpack.c.l.b16 %v3985
          %v4178 = vunpack.c.l.b16 %v3986
          %v4179 = vunpack.c.l.b16 %v3987
          %v4180 = vunpack.c.l.b16 %v3988
          %v4181 = vunpack.c.l.b16 %v3989
          %v4182 = vunpack.c.l.b16 %v3990
          %v4183 = vunpack.c.l.b16 %v3991
          %v4184 = vunpack.c.l.b16 %v3992
          %v4185 = vunpack.c.l.b16 %v3993
          %v4186 = vunpack.c.l.b16 %v3994
          %v4187 = vunpack.c.l.b16 %v3995
          %v4188 = vunpack.c.l.b16 %v3996
          %v4189 = vunpack.c.l.b16 %v3997
          %v4190 = vunpack.c.l.b16 %v3998
          %v4191 = vunpack.c.l.b16 %v3999
          %v4192 = vunpack.c.l.b16 %v4000
          %v4193 = vunpack.c.l.b16 %v4001
          %v4194 = vunpack.c.l.b16 %v4002
          %v4195 = vunpack.c.l.b16 %v4003
          %v4196 = vunpack.c.l.b16 %v4004
          %v4197 = vunpack.c.l.b16 %v4005
          %v4198 = vunpack.c.l.b16 %v4006
          %v4199 = vunpack.c.l.b16 %v4007
          %v4200 = vunpack.c.l.b16 %v4008
          %v4201 = vunpack.c.l.b16 %v4009
          %v4202 = vunpack.c.l.b16 %v4010
          %v4203 = vunpack.c.l.b16 %v4011
          %v4204 = vunpack.c.l.b16 %v4012
          %v4205 = vunpack.c.l.b16 %v4013
          %v4206 = vunpack.c.l.b16 %v4014
          %v4207 = vunpack.c.l.b16 %v4015
          %v4208 = vunpack.c.l.b16 %v4016
          %v4209 = vunpack.c.l.b16 %v4017
          %v4210 = vunpack.c.l.b16 %v4018
          %v4211 = vunpack.c.l.b16 %v4019
          %v4212 = vunpack.c.l.b16 %v4020
          %v4213 = vunpack.c.l.b16 %v4021
          %v4214 = vunpack.c.l.b16 %v4022
          %v4215 = vunpack.c.l.b16 %v4023
          %v4216 = vunpack.c.l.b16 %v4024
          %v4217 = vunpack.c.l.b16 %v4025
          %v4218 = vunpack.c.l.b16 %v4026
          %v4219 = vunpack.c.l.b16 %v4027
          %v4220 = vunpack.c.l.b16 %v4028
          %v4221 = vunpack.c.l.b16 %v4029
          %v4222 = vunpack.c.l.b16 %v4030
          %v4223 = vunpack.c.l.b16 %v4031
          %v4224 = vunpack.c.l.b16 %v4032
          %v4225 = vunpack.c.l.b16 %v4033
          %v4226 = vunpack.c.l.b16 %v4034
          %v4227 = vunpack.c.l.b16 %v4035
          %v4228 = vunpack.c.l.b16 %v4036
          %v4229 = vunpack.c.l.b16 %v4037
          %v4230 = vunpack.c.l.b16 %v4038
          %v4231 = vunpack.c.l.b16 %v4039
          %v4232 = vunpack.c.l.b16 %v4040
          %v4233 = vunpack.c.l.b16 %v4041
          %v4234 = vunpack.c.l.b16 %v4042
          %v4235 = vunpack.c.l.b16 %v4043
          %v4236 = vunpack.c.l.b16 %v4044
          %v4237 = vunpack.c.l.b16 %v4045
          %v4238 = vunpack.c.l.b16 %v4046
          %v4239 = vunpack.c.l.b16 %v4047
          %vm4240 = vcmask 1041409
          %v4241 = vsel %vm4240, %v4147, %v4144
          %vm4242 = vcmask 1042434
          %v4243 = vsel %vm4242, %v4150, %v4241
          %vm4244 = vcmask 1043459
          %v4245 = vsel %vm4244, %v4153, %v4243
          %vm4246 = vcmask 1044484
          %v4247 = vsel %vm4246, %v4156, %v4245
          %vm4248 = vcmask 1045509
          %v4249 = vsel %vm4248, %v4159, %v4247
          %vm4250 = vcmask 1046534
          %v4251 = vsel %vm4250, %v4162, %v4249
          %vm4252 = vcmask 1047559
          %v4253 = vsel %vm4252, %v4165, %v4251
          %v4254 = vsel %vm4240, %v4148, %v4145
          %v4255 = vsel %vm4242, %v4151, %v4254
          %v4256 = vsel %vm4244, %v4154, %v4255
          %v4257 = vsel %vm4246, %v4157, %v4256
          %v4258 = vsel %vm4248, %v4160, %v4257
          %v4259 = vsel %vm4250, %v4163, %v4258
          %v4260 = vsel %vm4252, %v4166, %v4259
          %v4261 = vsel %vm4240, %v4149, %v4146
          %v4262 = vsel %vm4242, %v4152, %v4261
          %v4263 = vsel %vm4244, %v4155, %v4262
          %v4264 = vsel %vm4246, %v4158, %v4263
          %v4265 = vsel %vm4248, %v4161, %v4264
          %v4266 = vsel %vm4250, %v4164, %v4265
          %v4267 = vsel %vm4252, %v4167, %v4266
          %v4268 = vsel %vm4240, %v4171, %v4168
          %v4269 = vsel %vm4242, %v4174, %v4268
          %v4270 = vsel %vm4244, %v4177, %v4269
          %v4271 = vsel %vm4246, %v4180, %v4270
          %v4272 = vsel %vm4248, %v4183, %v4271
          %v4273 = vsel %vm4250, %v4186, %v4272
          %v4274 = vsel %vm4252, %v4189, %v4273
          %v4275 = vsel %vm4240, %v4172, %v4169
          %v4276 = vsel %vm4242, %v4175, %v4275
          %v4277 = vsel %vm4244, %v4178, %v4276
          %v4278 = vsel %vm4246, %v4181, %v4277
          %v4279 = vsel %vm4248, %v4184, %v4278
          %v4280 = vsel %vm4250, %v4187, %v4279
          %v4281 = vsel %vm4252, %v4190, %v4280
          %v4282 = vsel %vm4240, %v4173, %v4170
          %v4283 = vsel %vm4242, %v4176, %v4282
          %v4284 = vsel %vm4244, %v4179, %v4283
          %v4285 = vsel %vm4246, %v4182, %v4284
          %v4286 = vsel %vm4248, %v4185, %v4285
          %v4287 = vsel %vm4250, %v4188, %v4286
          %v4288 = vsel %vm4252, %v4191, %v4287
          %v4289 = vsel %vm4240, %v4195, %v4192
          %v4290 = vsel %vm4242, %v4198, %v4289
          %v4291 = vsel %vm4244, %v4201, %v4290
          %v4292 = vsel %vm4246, %v4204, %v4291
          %v4293 = vsel %vm4248, %v4207, %v4292
          %v4294 = vsel %vm4250, %v4210, %v4293
          %v4295 = vsel %vm4252, %v4213, %v4294
          %v4296 = vsel %vm4240, %v4196, %v4193
          %v4297 = vsel %vm4242, %v4199, %v4296
          %v4298 = vsel %vm4244, %v4202, %v4297
          %v4299 = vsel %vm4246, %v4205, %v4298
          %v4300 = vsel %vm4248, %v4208, %v4299
          %v4301 = vsel %vm4250, %v4211, %v4300
          %v4302 = vsel %vm4252, %v4214, %v4301
          %v4303 = vsel %vm4240, %v4197, %v4194
          %v4304 = vsel %vm4242, %v4200, %v4303
          %v4305 = vsel %vm4244, %v4203, %v4304
          %v4306 = vsel %vm4246, %v4206, %v4305
          %v4307 = vsel %vm4248, %v4209, %v4306
          %v4308 = vsel %vm4250, %v4212, %v4307
          %v4309 = vsel %vm4252, %v4215, %v4308
          %v4310 = vsel %vm4240, %v4219, %v4216
          %v4311 = vsel %vm4242, %v4222, %v4310
          %v4312 = vsel %vm4244, %v4225, %v4311
          %v4313 = vsel %vm4246, %v4228, %v4312
          %v4314 = vsel %vm4248, %v4231, %v4313
          %v4315 = vsel %vm4250, %v4234, %v4314
          %v4316 = vsel %vm4252, %v4237, %v4315
          %v4317 = vsel %vm4240, %v4220, %v4217
          %v4318 = vsel %vm4242, %v4223, %v4317
          %v4319 = vsel %vm4244, %v4226, %v4318
          %v4320 = vsel %vm4246, %v4229, %v4319
          %v4321 = vsel %vm4248, %v4232, %v4320
          %v4322 = vsel %vm4250, %v4235, %v4321
          %v4323 = vsel %vm4252, %v4238, %v4322
          %v4324 = vsel %vm4240, %v4221, %v4218
          %v4325 = vsel %vm4242, %v4224, %v4324
          %v4326 = vsel %vm4244, %v4227, %v4325
          %v4327 = vsel %vm4246, %v4230, %v4326
          %v4328 = vsel %vm4248, %v4233, %v4327
          %v4329 = vsel %vm4250, %v4236, %v4328
          %v4330 = vsel %vm4252, %v4239, %v4329
          %v4331 = vpack.c.b16 %v4274, %v4253
          %v4332 = vpack.c.b16 %v4281, %v4260
          %v4333 = vpack.c.b16 %v4288, %v4267
          %v4334 = vpack.c.b16 %v4316, %v4295
          %v4335 = vpack.c.b16 %v4323, %v4302
          %v4336 = vpack.c.b16 %v4330, %v4309
          %s4343 = sshra.s32 %s3951, 4
          %s4344 = sand.u32 %s3951, 15
          %s4345 = smul.u32 %s4343, 3
          %s4346 = smul.addr %s4345, 8
          %s4347 = scalar_lea.vmem [#allocation2], %s4346
          %4348 = vst [vmem:[%s4347] sm:$0xff] %v4331
          %4349 = vst [vmem:[%s4347 + $0x8] sm:$0xff] %v4332
          %4350 = vst [vmem:[%s4347 + $0x10] sm:$0xff] %v4333
          %4351 = vst [vmem:[%s4347 + $0x18] sm:$0xff] %v4334
          %4352 = vst [vmem:[%s4347 + $0x20] sm:$0xff] %v4335
          %4353 = vst [vmem:[%s4347 + $0x28] sm:$0xff] %v4336
        $region90: #{tpu_custom_call.1} parent=81 // pred_fallthru
          _
        %p4354 = scmp.eq.s32.totalorder %s26, 2
        // Predicated region
        $region91: #{tpu_custom_call.1} parent=81 // pred_check
          %p4355 = pneg %p4354
        $region92: #{tpu_custom_call.1} parent=81 // pred_check_branch
          %4357 = sbr.rel (%p4355) target = $region94
        $region93: #{tpu_custom_call.1} parent=81 // pred_region
          %v4358 = vld [vmem:[#allocation2 + $0x8] sm:$0xff]
          %v4359 = vld [vmem:[#allocation2 + $0x10] sm:$0xff]
          %v4360 = vld [vmem:[#allocation2 + $0x20] sm:$0xff]
          %v4361 = vld [vmem:[#allocation2 + $0x28] sm:$0xff]
          %v4362 = vld [vmem:[#allocation2 + $0x38] sm:$0xff]
          %v4363 = vld [vmem:[#allocation2 + $0x40] sm:$0xff]
          %v4364 = vld [vmem:[#allocation2 + $0x50] sm:$0xff]
          %v4365 = vld [vmem:[#allocation2 + $0x58] sm:$0xff]
          %v4366 = vunpack.c.l.bf16 %v4358
          %v4367 = vunpack.c.l.bf16 %v4359
          %v4368 = vunpack.c.h.bf16 %v4358
          %v4369 = vunpack.c.h.bf16 %v4359
          %v4370 = vunpack.c.l.bf16 %v4360
          %v4371 = vunpack.c.l.bf16 %v4361
          %v4372 = vunpack.c.h.bf16 %v4360
          %v4373 = vunpack.c.h.bf16 %v4361
          %v4374 = vunpack.c.l.bf16 %v4362
          %v4375 = vunpack.c.l.bf16 %v4363
          %v4376 = vunpack.c.h.bf16 %v4362
          %v4377 = vunpack.c.h.bf16 %v4363
          %v4378 = vunpack.c.l.bf16 %v4364
          %v4379 = vunpack.c.l.bf16 %v4365
          %v4380 = vunpack.c.h.bf16 %v4364
          %v4381 = vunpack.c.h.bf16 %v4365
          %4382 = vxpose.xlu0.b32.start [1/16] %v4366, 128
          %4383 = vxpose.xlu0.b32.cont [2/16] %v4368, 128
          %4384 = vxpose.xlu0.b32.cont [3/16] %v4370, 128
          %4385 = vxpose.xlu0.b32.cont [4/16] %v4372, 128
          %4386 = vxpose.xlu0.b32.cont [5/16] %v4374, 128
          %4387 = vxpose.xlu0.b32.cont [6/16] %v4376, 128
          %4388 = vxpose.xlu0.b32.cont [7/16] %v4378, 128
          %4389 = vxpose.xlu0.b32.cont [8/16] %v4380, 128
          %4390 = vxpose.xlu0.b32.cont [9/16] 0.0, 128
          %4391 = vxpose.xlu0.b32.cont [10/16] 0.0, 128
          %4392 = vxpose.xlu0.b32.cont [11/16] 0.0, 128
          %4393 = vxpose.xlu0.b32.cont [12/16] 0.0, 128
          %4394 = vxpose.xlu0.b32.cont [13/16] 0.0, 128
          %4395 = vxpose.xlu0.b32.cont [14/16] 0.0, 128
          %4396 = vxpose.xlu0.b32.cont [15/16] 0.0, 128
          %4397 = vxpose.xlu0.b32.end [16/16] 0.0, 128
          %v4398 = vpop.trf.xlu0
          %v4399 = vpop.trf.xlu0
          %v4400 = vpop.trf.xlu0
          %v4401 = vpop.trf.xlu0
          %v4402 = vpop.trf.xlu0
          %v4403 = vpop.trf.xlu0
          %v4404 = vpop.trf.xlu0
          %v4405 = vpop.trf.xlu0
          %v4406 = vpop.trf.xlu0
          %v4407 = vpop.trf.xlu0
          %v4408 = vpop.trf.xlu0
          %v4409 = vpop.trf.xlu0
          %v4410 = vpop.trf.xlu0
          %v4411 = vpop.trf.xlu0
          %v4412 = vpop.trf.xlu0
          %v4413 = vpop.trf.xlu0
          %4414 = vxpose.xlu0.b32.start [1/16] %v4367, 128
          %4415 = vxpose.xlu0.b32.cont [2/16] %v4369, 128
          %4416 = vxpose.xlu0.b32.cont [3/16] %v4371, 128
          %4417 = vxpose.xlu0.b32.cont [4/16] %v4373, 128
          %4418 = vxpose.xlu0.b32.cont [5/16] %v4375, 128
          %4419 = vxpose.xlu0.b32.cont [6/16] %v4377, 128
          %4420 = vxpose.xlu0.b32.cont [7/16] %v4379, 128
          %4421 = vxpose.xlu0.b32.cont [8/16] %v4381, 128
          %4422 = vxpose.xlu0.b32.cont [9/16] 0.0, 128
          %4423 = vxpose.xlu0.b32.cont [10/16] 0.0, 128
          %4424 = vxpose.xlu0.b32.cont [11/16] 0.0, 128
          %4425 = vxpose.xlu0.b32.cont [12/16] 0.0, 128
          %4426 = vxpose.xlu0.b32.cont [13/16] 0.0, 128
          %4427 = vxpose.xlu0.b32.cont [14/16] 0.0, 128
          %4428 = vxpose.xlu0.b32.cont [15/16] 0.0, 128
          %4429 = vxpose.xlu0.b32.end [16/16] 0.0, 128
          %v4430 = vpop.trf.xlu0
          %v4431 = vpop.trf.xlu0
          %v4432 = vpop.trf.xlu0
          %v4433 = vpop.trf.xlu0
          %v4434 = vpop.trf.xlu0
          %v4435 = vpop.trf.xlu0
          %v4436 = vpop.trf.xlu0
          %v4437 = vpop.trf.xlu0
          %v4438 = vpop.trf.xlu0
          %v4439 = vpop.trf.xlu0
          %v4440 = vpop.trf.xlu0
          %v4441 = vpop.trf.xlu0
          %v4442 = vpop.trf.xlu0
          %v4443 = vpop.trf.xlu0
          %v4444 = vpop.trf.xlu0
          %v4445 = vpop.trf.xlu0
          %v4446 = vpack.c.bf16 %v4399, %v4398
          %v4447 = vpack.c.bf16 %v4401, %v4400
          %v4448 = vpack.c.bf16 %v4403, %v4402
          %v4449 = vpack.c.bf16 %v4405, %v4404
          %v4450 = vpack.c.bf16 %v4407, %v4406
          %v4451 = vpack.c.bf16 %v4409, %v4408
          %v4452 = vpack.c.bf16 %v4411, %v4410
          %v4453 = vpack.c.bf16 %v4413, %v4412
          %v4454 = vpack.c.bf16 %v4431, %v4430
          %v4455 = vpack.c.bf16 %v4433, %v4432
          %v4456 = vpack.c.bf16 %v4435, %v4434
          %v4457 = vpack.c.bf16 %v4437, %v4436
          %v4458 = vpack.c.bf16 %v4439, %v4438
          %v4459 = vpack.c.bf16 %v4441, %v4440
          %v4460 = vpack.c.bf16 %v4443, %v4442
          %v4461 = vpack.c.bf16 %v4445, %v4444
          %vm4462 = vcmask 523264
          %4463 = vst.msk [vmem:[#allocation3] sm:$0xff] %vm4462, %v4446
          %4464 = vst.msk [vmem:[#allocation3 + $0x8] sm:$0xff] %vm4462, %v4447
          %4465 = vst.msk [vmem:[#allocation3 + $0x10] sm:$0xff] %vm4462, %v4448
          %4466 = vst.msk [vmem:[#allocation3 + $0x18] sm:$0xff] %vm4462, %v4449
          %4467 = vst.msk [vmem:[#allocation3 + $0x20] sm:$0xff] %vm4462, %v4450
          %4468 = vst.msk [vmem:[#allocation3 + $0x28] sm:$0xff] %vm4462, %v4451
          %4469 = vst.msk [vmem:[#allocation3 + $0x30] sm:$0xff] %vm4462, %v4452
          %4470 = vst.msk [vmem:[#allocation3 + $0x38] sm:$0xff] %vm4462, %v4453
          %4471 = vst.msk [vmem:[#allocation3 + $0x40] sm:$0xff] %vm4462, %v4454
          %4472 = vst.msk [vmem:[#allocation3 + $0x48] sm:$0xff] %vm4462, %v4455
          %4473 = vst.msk [vmem:[#allocation3 + $0x50] sm:$0xff] %vm4462, %v4456
          %4474 = vst.msk [vmem:[#allocation3 + $0x58] sm:$0xff] %vm4462, %v4457
          %4475 = vst.msk [vmem:[#allocation3 + $0x60] sm:$0xff] %vm4462, %v4458
          %4476 = vst.msk [vmem:[#allocation3 + $0x68] sm:$0xff] %vm4462, %v4459
          %4477 = vst.msk [vmem:[#allocation3 + $0x70] sm:$0xff] %vm4462, %v4460
          %4478 = vst.msk [vmem:[#allocation3 + $0x78] sm:$0xff] %vm4462, %v4461
        $region94: #{tpu_custom_call.1} parent=81 // pred_fallthru
          _
        %p4479 = scmp.ge.s32.totalorder %s26, 2
        // Predicated region
        $region95: #{tpu_custom_call.1} parent=81 // pred_check
          %p4480 = pneg %p4479
        $region96: #{tpu_custom_call.1} parent=81 // pred_check_branch
          %4482 = sbr.rel (%p4480) target = $region98
        $region97: #{tpu_custom_call.1} parent=81 // pred_region
          %v4483 = vld [vmem:[%s3] sm:$0xf]
          %v4484 = vld [vmem:[%s3 + $0x4] sm:$0xf]
          %v4485 = vld [vmem:[%s3 + $0x8] sm:$0xf]
          %v4486 = vld [vmem:[%s3 + $0xc] sm:$0xf]
          %v4487 = vld [vmem:[%s3 + $0x10] sm:$0xf]
          %v4488 = vld [vmem:[%s3 + $0x14] sm:$0xf]
          %v4489 = vld [vmem:[%s3 + $0x18] sm:$0xf]
          %v4490 = vld [vmem:[%s3 + $0x1c] sm:$0xf]
          %v4491 = vld [vmem:[%s3 + $0x20] sm:$0xf]
          %v4492 = vld [vmem:[%s3 + $0x24] sm:$0xf]
          %v4493 = vld [vmem:[%s3 + $0x28] sm:$0xf]
          %v4494 = vld [vmem:[%s3 + $0x2c] sm:$0xf]
          %v4495 = vld [vmem:[%s3 + $0x30] sm:$0xf]
          %v4496 = vld [vmem:[%s3 + $0x34] sm:$0xf]
          %v4497 = vld [vmem:[%s3 + $0x38] sm:$0xf]
          %v4498 = vld [vmem:[%s3 + $0x3c] sm:$0xf]
          %v4499 = vld [vmem:[%s4] sm:$0xff]
          %v4500 = vld [vmem:[%s4 + $0x8] sm:$0xff]
          %v4501 = vld [vmem:[%s4 + $0x10] sm:$0xff]
          %v4502 = vld [vmem:[%s4 + $0x18] sm:$0xff]
          %v4503 = vld [vmem:[%s4 + $0x20] sm:$0xff]
          %v4504 = vld [vmem:[%s4 + $0x28] sm:$0xff]
          %v4505 = vld [vmem:[%s4 + $0x30] sm:$0xff]
          %v4506 = vld [vmem:[%s4 + $0x38] sm:$0xff]
          %v4507 = vld [vmem:[%s4 + $0x40] sm:$0xff]
          %v4508 = vld [vmem:[%s4 + $0x48] sm:$0xff]
          %v4509 = vld [vmem:[%s4 + $0x50] sm:$0xff]
          %v4510 = vld [vmem:[%s4 + $0x58] sm:$0xff]
          %v4511 = vld [vmem:[%s4 + $0x60] sm:$0xff]
          %v4512 = vld [vmem:[%s4 + $0x68] sm:$0xff]
          %v4513 = vld [vmem:[%s4 + $0x70] sm:$0xff]
          %v4514 = vld [vmem:[%s4 + $0x78] sm:$0xff]
          %4516 = vset.pattern.permute.xlu0 0
          %4517 = vperm.xlu0 %4516, %v4499
          %v4518 = vpop.permute.xlu0 %4517
          %4521 = vset.pattern.permute.xlu0 0
          %4522 = vperm.xlu0 %4521, %v4500
          %v4523 = vpop.permute.xlu0 %4522
          %4526 = vset.pattern.permute.xlu0 0
          %4527 = vperm.xlu0 %4526, %v4501
          %v4528 = vpop.permute.xlu0 %4527
          %4531 = vset.pattern.permute.xlu0 0
          %4532 = vperm.xlu0 %4531, %v4502
          %v4533 = vpop.permute.xlu0 %4532
          %4536 = vset.pattern.permute.xlu0 0
          %4537 = vperm.xlu0 %4536, %v4503
          %v4538 = vpop.permute.xlu0 %4537
          %4541 = vset.pattern.permute.xlu0 0
          %4542 = vperm.xlu0 %4541, %v4504
          %v4543 = vpop.permute.xlu0 %4542
          %4546 = vset.pattern.permute.xlu0 0
          %4547 = vperm.xlu0 %4546, %v4505
          %v4548 = vpop.permute.xlu0 %4547
          %4551 = vset.pattern.permute.xlu0 0
          %4552 = vperm.xlu0 %4551, %v4506
          %v4553 = vpop.permute.xlu0 %4552
          %4556 = vset.pattern.permute.xlu0 0
          %4557 = vperm.xlu0 %4556, %v4507
          %v4558 = vpop.permute.xlu0 %4557
          %4561 = vset.pattern.permute.xlu0 0
          %4562 = vperm.xlu0 %4561, %v4508
          %v4563 = vpop.permute.xlu0 %4562
          %4566 = vset.pattern.permute.xlu0 0
          %4567 = vperm.xlu0 %4566, %v4509
          %v4568 = vpop.permute.xlu0 %4567
          %4571 = vset.pattern.permute.xlu0 0
          %4572 = vperm.xlu0 %4571, %v4510
          %v4573 = vpop.permute.xlu0 %4572
          %4576 = vset.pattern.permute.xlu0 0
          %4577 = vperm.xlu0 %4576, %v4511
          %v4578 = vpop.permute.xlu0 %4577
          %4581 = vset.pattern.permute.xlu0 0
          %4582 = vperm.xlu0 %4581, %v4512
          %v4583 = vpop.permute.xlu0 %4582
          %4586 = vset.pattern.permute.xlu0 0
          %4587 = vperm.xlu0 %4586, %v4513
          %v4588 = vpop.permute.xlu0 %4587
          %4591 = vset.pattern.permute.xlu0 0
          %4592 = vperm.xlu0 %4591, %v4514
          %v4593 = vpop.permute.xlu0 %4592
          %v4611 = vunpack.c.l.b16 %v4483
          %v4612 = vunpack.c.l.b16 %v4484
          %v4613 = vunpack.c.l.b16 %v4485
          %v4614 = vunpack.c.l.b16 %v4486
          %v4615 = vunpack.c.l.b16 %v4487
          %v4616 = vunpack.c.l.b16 %v4488
          %v4617 = vunpack.c.l.b16 %v4489
          %v4618 = vunpack.c.l.b16 %v4490
          %v4619 = vunpack.c.l.b16 %v4491
          %v4620 = vunpack.c.l.b16 %v4492
          %v4621 = vunpack.c.l.b16 %v4493
          %v4622 = vunpack.c.l.b16 %v4494
          %v4623 = vunpack.c.l.b16 %v4495
          %v4624 = vunpack.c.l.b16 %v4496
          %v4625 = vunpack.c.l.b16 %v4497
          %v4626 = vunpack.c.l.b16 %v4498
          %v4627 = vpack.c.b16 %v4612, %v4611
          %v4628 = vpack.c.b16 %v4614, %v4613
          %v4629 = vpack.c.b16 %v4616, %v4615
          %v4630 = vpack.c.b16 %v4618, %v4617
          %v4631 = vpack.c.b16 %v4620, %v4619
          %v4632 = vpack.c.b16 %v4622, %v4621
          %v4633 = vpack.c.b16 %v4624, %v4623
          %v4634 = vpack.c.b16 %v4626, %v4625
          %vm4635 = vcmask 130048
          %v4637 = vsel %vm4635, %v4627, 0
          %v4640 = vsel %vm4635, %v4628, 0
          %v4643 = vsel %vm4635, %v4629, 0
          %v4646 = vsel %vm4635, %v4630, 0
          %v4649 = vsel %vm4635, %v4631, 0
          %v4652 = vsel %vm4635, %v4632, 0
          %v4655 = vsel %vm4635, %v4633, 0
          %v4658 = vsel %vm4635, %v4634, 0
          %4660 = vmatprep.subr.bf16.mxu0 0
          %4661 = vmatpush1.bf16.msra.mxu0 %v393
          %4662 = vmatprep.subr.bf16.mxu0 0
          %4663 = vmatpush1.bf16.msra.mxu0 0
          %4664 = vmatprep.subr.bf16.mxu0 0
          %4665 = vmatpush1.bf16.msra.mxu0 0
          %4666 = vmatprep.subr.bf16.mxu0 0
          %4667 = vmatpush1.bf16.msra.mxu0 0
          %4668 = vmatprep.subr.bf16.mxu0 0
          %4669 = vmatpush1.bf16.msra.mxu0 0
          %4670 = vmatprep.subr.bf16.mxu0 0
          %4671 = vmatpush1.bf16.msra.mxu0 0
          %4672 = vmatprep.subr.bf16.mxu0 0
          %4673 = vmatpush1.bf16.msra.mxu0 0
          %4674 = vmatprep.subr.bf16.mxu0 0
          %4675 = vmatpush1.bf16.msra.mxu0 0
          %4676 = vmatprep.subr.bf16.mxu0 0
          %4677 = vmatpush1.bf16.msra.mxu0 0
          %4678 = vmatprep.subr.bf16.mxu0 0
          %4679 = vmatpush1.bf16.msra.mxu0 0
          %4680 = vmatprep.subr.bf16.mxu0 0
          %4681 = vmatpush1.bf16.msra.mxu0 0
          %4682 = vmatprep.subr.bf16.mxu0 0
          %4683 = vmatpush1.bf16.msra.mxu0 0
          %4684 = vmatprep.subr.bf16.mxu0 0
          %4685 = vmatpush1.bf16.msra.mxu0 0
          %4686 = vmatprep.subr.bf16.mxu0 0
          %4687 = vmatpush1.bf16.msra.mxu0 0
          %4688 = vmatprep.subr.bf16.mxu0 0
          %4689 = vmatpush1.bf16.msra.mxu0 0
          %4690 = vmatprep.subr.bf16.mxu0 0
          %4691 = vmatpush1.bf16.msra.mxu0 0
          %4692 = vmatprep.mubr.bf16.mxu0 0
          %4693 = vmatmul.mubr.bf16.gmra.mrb[0].mxu0 %v4637
          %v4694 = vpop.f32.mrb[0].mxu0
          %v4695 = vadd.f32 %v4518, %v4694
          %v4696 = vpop.f32.mrb[0].mxu0
          %v4697 = vpop.f32.mrb[0].mxu0
          %v4698 = vadd.f32 %v4523, %v4697
          %v4699 = vpop.f32.mrb[0].mxu0
          %4700 = vmatprep.mubr.bf16.mxu0 0
          %4701 = vmatmul.mubr.bf16.gmra.mrb[0].mxu0 %v4640
          %v4702 = vpop.f32.mrb[0].mxu0
          %v4703 = vadd.f32 %v4528, %v4702
          %v4704 = vpop.f32.mrb[0].mxu0
          %v4705 = vpop.f32.mrb[0].mxu0
          %v4706 = vadd.f32 %v4533, %v4705
          %v4707 = vpop.f32.mrb[0].mxu0
          %4708 = vmatprep.mubr.bf16.mxu0 0
          %4709 = vmatmul.mubr.bf16.gmra.mrb[0].mxu0 %v4643
          %v4710 = vpop.f32.mrb[0].mxu0
          %v4711 = vadd.f32 %v4538, %v4710
          %v4712 = vpop.f32.mrb[0].mxu0
          %v4713 = vpop.f32.mrb[0].mxu0
          %v4714 = vadd.f32 %v4543, %v4713
          %v4715 = vpop.f32.mrb[0].mxu0
          %4716 = vmatprep.mubr.bf16.mxu0 0
          %4717 = vmatmul.mubr.bf16.gmra.mrb[0].mxu0 %v4646
          %v4718 = vpop.f32.mrb[0].mxu0
          %v4719 = vadd.f32 %v4548, %v4718
          %v4720 = vpop.f32.mrb[0].mxu0
          %v4721 = vpop.f32.mrb[0].mxu0
          %v4722 = vadd.f32 %v4553, %v4721
          %v4723 = vpop.f32.mrb[0].mxu0
          %4724 = vmatprep.mubr.bf16.mxu0 0
          %4725 = vmatmul.mubr.bf16.gmra.mrb[0].mxu0 %v4649
          %v4726 = vpop.f32.mrb[0].mxu0
          %v4727 = vadd.f32 %v4558, %v4726
          %v4728 = vpop.f32.mrb[0].mxu0
          %v4729 = vpop.f32.mrb[0].mxu0
          %v4730 = vadd.f32 %v4563, %v4729
          %v4731 = vpop.f32.mrb[0].mxu0
          %4732 = vmatprep.mubr.bf16.mxu0 0
          %4733 = vmatmul.mubr.bf16.gmra.mrb[0].mxu0 %v4652
          %v4734 = vpop.f32.mrb[0].mxu0
          %v4735 = vadd.f32 %v4568, %v4734
          %v4736 = vpop.f32.mrb[0].mxu0
          %v4737 = vpop.f32.mrb[0].mxu0
          %v4738 = vadd.f32 %v4573, %v4737
          %v4739 = vpop.f32.mrb[0].mxu0
          %4740 = vmatprep.mubr.bf16.mxu0 0
          %4741 = vmatmul.mubr.bf16.gmra.mrb[0].mxu0 %v4655
          %v4742 = vpop.f32.mrb[0].mxu0
          %v4743 = vadd.f32 %v4578, %v4742
          %v4744 = vpop.f32.mrb[0].mxu0
          %v4745 = vpop.f32.mrb[0].mxu0
          %v4746 = vadd.f32 %v4583, %v4745
          %v4747 = vpop.f32.mrb[0].mxu0
          %4748 = vmatprep.mubr.bf16.mxu0 0
          %4749 = vmatmul.mubr.bf16.gmra.mrb[0].mxu0 %v4658
          %v4750 = vpop.f32.mrb[0].mxu0
          %v4751 = vadd.f32 %v4588, %v4750
          %v4752 = vpop.f32.mrb[0].mxu0
          %v4753 = vpop.f32.mrb[0].mxu0
          %v4754 = vadd.f32 %v4593, %v4753
          %v4755 = vpop.f32.mrb[0].mxu0
          %4756 = vdwg.mxu0
          %v4757 = vld [vmem:[#allocation2] sm:$0xff]
          %v4758 = vld [vmem:[#allocation2 + $0x18] sm:$0xff]
          %v4759 = vld [vmem:[#allocation2 + $0x30] sm:$0xff]
          %v4760 = vld [vmem:[#allocation2 + $0x48] sm:$0xff]
          %v4761 = vpack.c.bf16 %v4698, %v4695
          %v4762 = vpack.c.bf16 %v4706, %v4703
          %v4763 = vpack.c.bf16 %v4714, %v4711
          %v4764 = vpack.c.bf16 %v4722, %v4719
          %v4765 = vpack.c.bf16 %v4730, %v4727
          %v4766 = vpack.c.bf16 %v4738, %v4735
          %v4767 = vpack.c.bf16 %v4746, %v4743
          %v4768 = vpack.c.bf16 %v4754, %v4751
          %4769 = vmatprep.subr.bf16.mxu0 0
          %4770 = vmatpush1.bf16.msra.mxu0 %v4761
          %4771 = vmatprep.subr.bf16.mxu0 0
          %4772 = vmatpush1.bf16.msra.mxu0 %v4762
          %4773 = vmatprep.subr.bf16.mxu0 0
          %4774 = vmatpush1.bf16.msra.mxu0 %v4763
          %4775 = vmatprep.subr.bf16.mxu0 0
          %4776 = vmatpush1.bf16.msra.mxu0 %v4764
          %4777 = vmatprep.subr.bf16.mxu0 0
          %4778 = vmatpush1.bf16.msra.mxu0 %v4765
          %4779 = vmatprep.subr.bf16.mxu0 0
          %4780 = vmatpush1.bf16.msra.mxu0 %v4766
          %4781 = vmatprep.subr.bf16.mxu0 0
          %4782 = vmatpush1.bf16.msra.mxu0 %v4767
          %4783 = vmatprep.subr.bf16.mxu0 0
          %4784 = vmatpush1.bf16.msra.mxu0 %v4768
          %4785 = vmatprep.subr.bf16.mxu0 0
          %4786 = vmatpush1.bf16.msra.mxu0 0
          %4787 = vmatprep.subr.bf16.mxu0 0
          %4788 = vmatpush1.bf16.msra.mxu0 0
          %4789 = vmatprep.subr.bf16.mxu0 0
          %4790 = vmatpush1.bf16.msra.mxu0 0
          %4791 = vmatprep.subr.bf16.mxu0 0
          %4792 = vmatpush1.bf16.msra.mxu0 0
          %4793 = vmatprep.subr.bf16.mxu0 0
          %4794 = vmatpush1.bf16.msra.mxu0 0
          %4795 = vmatprep.subr.bf16.mxu0 0
          %4796 = vmatpush1.bf16.msra.mxu0 0
          %4797 = vmatprep.subr.bf16.mxu0 0
          %4798 = vmatpush1.bf16.msra.mxu0 0
          %4799 = vmatprep.subr.bf16.mxu0 0
          %4800 = vmatpush1.bf16.msra.mxu0 0
          %4801 = vmatprep.mubr.bf16.mxu0 0
          %4802 = vmatmul.mubr.bf16.gmra.mrb[0].mxu0 %v4757
          %v4803 = vpop.f32.mrb[0].mxu0
          %v4804 = vadd.f32 0.0, %v4803
          %v4805 = vpop.f32.mrb[0].mxu0
          %v4806 = vpop.f32.mrb[0].mxu0
          %v4807 = vadd.f32 0.0, %v4806
          %v4808 = vpop.f32.mrb[0].mxu0
          %4809 = vmatprep.mubr.bf16.mxu0 0
          %4810 = vmatmul.mubr.bf16.gmra.mrb[0].mxu0 %v4758
          %v4811 = vpop.f32.mrb[0].mxu0
          %v4812 = vadd.f32 0.0, %v4811
          %v4813 = vpop.f32.mrb[0].mxu0
          %v4814 = vpop.f32.mrb[0].mxu0
          %v4815 = vadd.f32 0.0, %v4814
          %v4816 = vpop.f32.mrb[0].mxu0
          %4817 = vmatprep.mubr.bf16.mxu0 0
          %4818 = vmatmul.mubr.bf16.gmra.mrb[0].mxu0 %v4759
          %v4819 = vpop.f32.mrb[0].mxu0
          %v4820 = vadd.f32 0.0, %v4819
          %v4821 = vpop.f32.mrb[0].mxu0
          %v4822 = vpop.f32.mrb[0].mxu0
          %v4823 = vadd.f32 0.0, %v4822
          %v4824 = vpop.f32.mrb[0].mxu0
          %4825 = vmatprep.mubr.bf16.mxu0 0
          %4826 = vmatmul.mubr.bf16.gmra.mrb[0].mxu0 %v4760
          %v4827 = vpop.f32.mrb[0].mxu0
          %v4828 = vadd.f32 0.0, %v4827
          %v4829 = vpop.f32.mrb[0].mxu0
          %v4830 = vpop.f32.mrb[0].mxu0
          %v4831 = vadd.f32 0.0, %v4830
          %v4832 = vpop.f32.mrb[0].mxu0
          %4833 = vdwg.mxu0
          %v4834 = vmax.f32 %v4804, %v4820
          %v4835 = vmax.f32 %v4807, %v4823
          %v4836 = vmax.f32 %v4812, %v4828
          %v4837 = vmax.f32 %v4815, %v4831
          %v4838 = vmax.f32 %v4834, %v4835
          %v4839 = vmax.f32 %v4836, %v4837
          %v4840 = vmax.f32 %v4838, %v4839
          %v4841 = vrot.slane %v4840, 4
          %v4842 = vmax.f32 %v4840, %v4841
          %v4843 = vrot.slane %v4842, 2
          %v4844 = vmax.f32 %v4842, %v4843
          %v4845 = vrot.slane %v4844, 1
          %v4846 = vmax.f32 %v4844, %v4845
          %v4847 = vsub.f32 %v4804, %v4846
          %v4848 = vsub.f32 %v4807, %v4846
          %v4849 = vsub.f32 %v4812, %v4846
          %v4850 = vsub.f32 %v4815, %v4846
          %v4851 = vsub.f32 %v4820, %v4846
          %v4852 = vsub.f32 %v4823, %v4846
          %v4853 = vsub.f32 %v4828, %v4846
          %v4854 = vsub.f32 %v4831, %v4846
          %v4855 = vmul.f32 %v4847, 1.442695
          %v4856 = vpow.pop %v4855
          %v4857 = vmul.f32 %v4848, 1.442695
          %v4858 = vpow.pop %v4857
          %v4859 = vmul.f32 %v4849, 1.442695
          %v4860 = vpow.pop %v4859
          %v4861 = vmul.f32 %v4850, 1.442695
          %v4862 = vpow.pop %v4861
          %v4863 = vmul.f32 %v4851, 1.442695
          %v4864 = vpow.pop %v4863
          %v4865 = vmul.f32 %v4852, 1.442695
          %v4866 = vpow.pop %v4865
          %v4867 = vmul.f32 %v4853, 1.442695
          %v4868 = vpow.pop %v4867
          %v4869 = vmul.f32 %v4854, 1.442695
          %v4870 = vpow.pop %v4869
          %v4871 = vadd.f32 %v4856, %v4858
          %v4872 = vadd.f32 %v4871, %v4860
          %v4873 = vadd.f32 %v4872, %v4862
          %v4874 = vadd.f32 %v4873, %v4864
          %v4875 = vadd.f32 %v4874, %v4866
          %v4876 = vadd.f32 %v4875, %v4868
          %v4877 = vadd.f32 %v4876, %v4870
          %v4878 = vrot.slane %v4877, 4
          %v4879 = vadd.f32 %v4877, %v4878
          %v4880 = vrot.slane %v4879, 2
          %v4881 = vadd.f32 %v4879, %v4880
          %v4882 = vrot.slane %v4881, 1
          %v4883 = vadd.f32 %v4881, %v4882
          %v4884 = vld [vmem:[#allocation3] sm:$0xff]
          %v4885 = vld [vmem:[#allocation3 + $0x8] sm:$0xff]
          %v4886 = vld [vmem:[#allocation3 + $0x10] sm:$0xff]
          %v4887 = vld [vmem:[#allocation3 + $0x18] sm:$0xff]
          %v4888 = vld [vmem:[#allocation3 + $0x20] sm:$0xff]
          %v4889 = vld [vmem:[#allocation3 + $0x28] sm:$0xff]
          %v4890 = vld [vmem:[#allocation3 + $0x30] sm:$0xff]
          %v4891 = vld [vmem:[#allocation3 + $0x38] sm:$0xff]
          %v4892 = vld [vmem:[#allocation3 + $0x40] sm:$0xff]
          %v4893 = vld [vmem:[#allocation3 + $0x48] sm:$0xff]
          %v4894 = vld [vmem:[#allocation3 + $0x50] sm:$0xff]
          %v4895 = vld [vmem:[#allocation3 + $0x58] sm:$0xff]
          %v4896 = vld [vmem:[#allocation3 + $0x60] sm:$0xff]
          %v4897 = vld [vmem:[#allocation3 + $0x68] sm:$0xff]
          %v4898 = vld [vmem:[#allocation3 + $0x70] sm:$0xff]
          %v4899 = vld [vmem:[#allocation3 + $0x78] sm:$0xff]
          %v4900 = vpack.c.bf16 %v4858, %v4856
          %v4901 = vpack.c.bf16 %v4862, %v4860
          %v4902 = vpack.c.bf16 %v4866, %v4864
          %v4903 = vpack.c.bf16 %v4870, %v4868
          %vm4904 = vcmask 523264
          %v4906 = vsel %vm4904, %v4884, 0
          %v4909 = vsel %vm4904, %v4885, 0
          %v4912 = vsel %vm4904, %v4886, 0
          %v4915 = vsel %vm4904, %v4887, 0
          %v4918 = vsel %vm4904, %v4888, 0
          %v4921 = vsel %vm4904, %v4889, 0
          %v4924 = vsel %vm4904, %v4890, 0
          %v4927 = vsel %vm4904, %v4891, 0
          %v4930 = vsel %vm4904, %v4892, 0
          %v4933 = vsel %vm4904, %v4893, 0
          %v4936 = vsel %vm4904, %v4894, 0
          %v4939 = vsel %vm4904, %v4895, 0
          %v4942 = vsel %vm4904, %v4896, 0
          %v4945 = vsel %vm4904, %v4897, 0
          %v4948 = vsel %vm4904, %v4898, 0
          %v4951 = vsel %vm4904, %v4899, 0
          %4953 = vmatprep.subr.bf16.mxu0 0
          %4954 = vmatpush1.bf16.msra.mxu0 %v4900
          %4955 = vmatprep.subr.bf16.mxu0 0
          %4956 = vmatpush1.bf16.msra.mxu0 %v4901
          %4957 = vmatprep.subr.bf16.mxu0 0
          %4958 = vmatpush1.bf16.msra.mxu0 %v4902
          %4959 = vmatprep.subr.bf16.mxu0 0
          %4960 = vmatpush1.bf16.msra.mxu0 %v4903
          %4961 = vmatprep.subr.bf16.mxu0 0
          %4962 = vmatpush1.bf16.msra.mxu0 0
          %4963 = vmatprep.subr.bf16.mxu0 0
          %4964 = vmatpush1.bf16.msra.mxu0 0
          %4965 = vmatprep.subr.bf16.mxu0 0
          %4966 = vmatpush1.bf16.msra.mxu0 0
          %4967 = vmatprep.subr.bf16.mxu0 0
          %4968 = vmatpush1.bf16.msra.mxu0 0
          %4969 = vmatprep.subr.bf16.mxu0 0
          %4970 = vmatpush1.bf16.msra.mxu0 0
          %4971 = vmatprep.subr.bf16.mxu0 0
          %4972 = vmatpush1.bf16.msra.mxu0 0
          %4973 = vmatprep.subr.bf16.mxu0 0
          %4974 = vmatpush1.bf16.msra.mxu0 0
          %4975 = vmatprep.subr.bf16.mxu0 0
          %4976 = vmatpush1.bf16.msra.mxu0 0
          %4977 = vmatprep.subr.bf16.mxu0 0
          %4978 = vmatpush1.bf16.msra.mxu0 0
          %4979 = vmatprep.subr.bf16.mxu0 0
          %4980 = vmatpush1.bf16.msra.mxu0 0
          %4981 = vmatprep.subr.bf16.mxu0 0
          %4982 = vmatpush1.bf16.msra.mxu0 0
          %4983 = vmatprep.subr.bf16.mxu0 0
          %4984 = vmatpush1.bf16.msra.mxu0 0
          %4985 = vmatprep.mubr.bf16.mxu0 0
          %4986 = vmatmul.mubr.bf16.gmra.mrb[0].mxu0 %v4906
          %v4987 = vpop.f32.mrb[0].mxu0
          %v4988 = vadd.f32 0.0, %v4987
          %v4989 = vpop.f32.mrb[0].mxu0
          %v4990 = vpop.f32.mrb[0].mxu0
          %v4991 = vadd.f32 0.0, %v4990
          %v4992 = vpop.f32.mrb[0].mxu0
          %4993 = vmatprep.mubr.bf16.mxu0 0
          %4994 = vmatmul.mubr.bf16.gmra.mrb[0].mxu0 %v4909
          %v4995 = vpop.f32.mrb[0].mxu0
          %v4996 = vadd.f32 0.0, %v4995
          %v4997 = vpop.f32.mrb[0].mxu0
          %v4998 = vpop.f32.mrb[0].mxu0
          %v4999 = vadd.f32 0.0, %v4998
          %v5000 = vpop.f32.mrb[0].mxu0
          %5001 = vmatprep.mubr.bf16.mxu0 0
          %5002 = vmatmul.mubr.bf16.gmra.mrb[0].mxu0 %v4912
          %v5003 = vpop.f32.mrb[0].mxu0
          %v5004 = vadd.f32 0.0, %v5003
          %v5005 = vpop.f32.mrb[0].mxu0
          %v5006 = vpop.f32.mrb[0].mxu0
          %v5007 = vadd.f32 0.0, %v5006
          %v5008 = vpop.f32.mrb[0].mxu0
          %5009 = vmatprep.mubr.bf16.mxu0 0
          %5010 = vmatmul.mubr.bf16.gmra.mrb[0].mxu0 %v4915
          %v5011 = vpop.f32.mrb[0].mxu0
          %v5012 = vadd.f32 0.0, %v5011
          %v5013 = vpop.f32.mrb[0].mxu0
          %v5014 = vpop.f32.mrb[0].mxu0
          %v5015 = vadd.f32 0.0, %v5014
          %v5016 = vpop.f32.mrb[0].mxu0
          %5017 = vmatprep.mubr.bf16.mxu0 0
          %5018 = vmatmul.mubr.bf16.gmra.mrb[0].mxu0 %v4918
          %v5019 = vpop.f32.mrb[0].mxu0
          %v5020 = vadd.f32 0.0, %v5019
          %v5021 = vpop.f32.mrb[0].mxu0
          %v5022 = vpop.f32.mrb[0].mxu0
          %v5023 = vadd.f32 0.0, %v5022
          %v5024 = vpop.f32.mrb[0].mxu0
          %5025 = vmatprep.mubr.bf16.mxu0 0
          %5026 = vmatmul.mubr.bf16.gmra.mrb[0].mxu0 %v4921
          %v5027 = vpop.f32.mrb[0].mxu0
          %v5028 = vadd.f32 0.0, %v5027
          %v5029 = vpop.f32.mrb[0].mxu0
          %v5030 = vpop.f32.mrb[0].mxu0
          %v5031 = vadd.f32 0.0, %v5030
          %v5032 = vpop.f32.mrb[0].mxu0
          %5033 = vmatprep.mubr.bf16.mxu0 0
          %5034 = vmatmul.mubr.bf16.gmra.mrb[0].mxu0 %v4924
          %v5035 = vpop.f32.mrb[0].mxu0
          %v5036 = vadd.f32 0.0, %v5035
          %v5037 = vpop.f32.mrb[0].mxu0
          %v5038 = vpop.f32.mrb[0].mxu0
          %v5039 = vadd.f32 0.0, %v5038
          %v5040 = vpop.f32.mrb[0].mxu0
          %5041 = vmatprep.mubr.bf16.mxu0 0
          %5042 = vmatmul.mubr.bf16.gmra.mrb[0].mxu0 %v4927
          %v5043 = vpop.f32.mrb[0].mxu0
          %v5044 = vadd.f32 0.0, %v5043
          %v5045 = vpop.f32.mrb[0].mxu0
          %v5046 = vpop.f32.mrb[0].mxu0
          %v5047 = vadd.f32 0.0, %v5046
          %v5048 = vpop.f32.mrb[0].mxu0
          %5049 = vmatprep.mubr.bf16.mxu0 0
          %5050 = vmatmul.mubr.bf16.gmra.mrb[0].mxu0 %v4930
          %v5051 = vpop.f32.mrb[0].mxu0
          %v5052 = vadd.f32 0.0, %v5051
          %v5053 = vpop.f32.mrb[0].mxu0
          %v5054 = vpop.f32.mrb[0].mxu0
          %v5055 = vadd.f32 0.0, %v5054
          %v5056 = vpop.f32.mrb[0].mxu0
          %5057 = vmatprep.mubr.bf16.mxu0 0
          %5058 = vmatmul.mubr.bf16.gmra.mrb[0].mxu0 %v4933
          %v5059 = vpop.f32.mrb[0].mxu0
          %v5060 = vadd.f32 0.0, %v5059
          %v5061 = vpop.f32.mrb[0].mxu0
          %v5062 = vpop.f32.mrb[0].mxu0
          %v5063 = vadd.f32 0.0, %v5062
          %v5064 = vpop.f32.mrb[0].mxu0
          %5065 = vmatprep.mubr.bf16.mxu0 0
          %5066 = vmatmul.mubr.bf16.gmra.mrb[0].mxu0 %v4936
          %v5067 = vpop.f32.mrb[0].mxu0
          %v5068 = vadd.f32 0.0, %v5067
          %v5069 = vpop.f32.mrb[0].mxu0
          %v5070 = vpop.f32.mrb[0].mxu0
          %v5071 = vadd.f32 0.0, %v5070
          %v5072 = vpop.f32.mrb[0].mxu0
          %5073 = vmatprep.mubr.bf16.mxu0 0
          %5074 = vmatmul.mubr.bf16.gmra.mrb[0].mxu0 %v4939
          %v5075 = vpop.f32.mrb[0].mxu0
          %v5076 = vadd.f32 0.0, %v5075
          %v5077 = vpop.f32.mrb[0].mxu0
          %v5078 = vpop.f32.mrb[0].mxu0
          %v5079 = vadd.f32 0.0, %v5078
          %v5080 = vpop.f32.mrb[0].mxu0
          %5081 = vmatprep.mubr.bf16.mxu0 0
          %5082 = vmatmul.mubr.bf16.gmra.mrb[0].mxu0 %v4942
          %v5083 = vpop.f32.mrb[0].mxu0
          %v5084 = vadd.f32 0.0, %v5083
          %v5085 = vpop.f32.mrb[0].mxu0
          %v5086 = vpop.f32.mrb[0].mxu0
          %v5087 = vadd.f32 0.0, %v5086
          %v5088 = vpop.f32.mrb[0].mxu0
          %5089 = vmatprep.mubr.bf16.mxu0 0
          %5090 = vmatmul.mubr.bf16.gmra.mrb[0].mxu0 %v4945
          %v5091 = vpop.f32.mrb[0].mxu0
          %v5092 = vadd.f32 0.0, %v5091
          %v5093 = vpop.f32.mrb[0].mxu0
          %v5094 = vpop.f32.mrb[0].mxu0
          %v5095 = vadd.f32 0.0, %v5094
          %v5096 = vpop.f32.mrb[0].mxu0
          %5097 = vmatprep.mubr.bf16.mxu0 0
          %5098 = vmatmul.mubr.bf16.gmra.mrb[0].mxu0 %v4948
          %v5099 = vpop.f32.mrb[0].mxu0
          %v5100 = vadd.f32 0.0, %v5099
          %v5101 = vpop.f32.mrb[0].mxu0
          %v5102 = vpop.f32.mrb[0].mxu0
          %v5103 = vadd.f32 0.0, %v5102
          %v5104 = vpop.f32.mrb[0].mxu0
          %5105 = vmatprep.mubr.bf16.mxu0 0
          %5106 = vmatmul.mubr.bf16.gmra.mrb[0].mxu0 %v4951
          %v5107 = vpop.f32.mrb[0].mxu0
          %v5108 = vadd.f32 0.0, %v5107
          %v5109 = vpop.f32.mrb[0].mxu0
          %v5110 = vpop.f32.mrb[0].mxu0
          %v5111 = vadd.f32 0.0, %v5110
          %v5112 = vpop.f32.mrb[0].mxu0
          %5113 = vdwg.mxu0
          %v5114 = vrcp.pop %v4883
          %v5115 = vmul.f32 %v4988, %v5114
          %v5116 = vmul.f32 %v4991, %v5114
          %v5117 = vmul.f32 %v4996, %v5114
          %v5118 = vmul.f32 %v4999, %v5114
          %v5119 = vmul.f32 %v5004, %v5114
          %v5120 = vmul.f32 %v5007, %v5114
          %v5121 = vmul.f32 %v5012, %v5114
          %v5122 = vmul.f32 %v5015, %v5114
          %v5123 = vmul.f32 %v5020, %v5114
          %v5124 = vmul.f32 %v5023, %v5114
          %v5125 = vmul.f32 %v5028, %v5114
          %v5126 = vmul.f32 %v5031, %v5114
          %v5127 = vmul.f32 %v5036, %v5114
          %v5128 = vmul.f32 %v5039, %v5114
          %v5129 = vmul.f32 %v5044, %v5114
          %v5130 = vmul.f32 %v5047, %v5114
          %v5131 = vmul.f32 %v5052, %v5114
          %v5132 = vmul.f32 %v5055, %v5114
          %v5133 = vmul.f32 %v5060, %v5114
          %v5134 = vmul.f32 %v5063, %v5114
          %v5135 = vmul.f32 %v5068, %v5114
          %v5136 = vmul.f32 %v5071, %v5114
          %v5137 = vmul.f32 %v5076, %v5114
          %v5138 = vmul.f32 %v5079, %v5114
          %v5139 = vmul.f32 %v5084, %v5114
          %v5140 = vmul.f32 %v5087, %v5114
          %v5141 = vmul.f32 %v5092, %v5114
          %v5142 = vmul.f32 %v5095, %v5114
          %v5143 = vmul.f32 %v5100, %v5114
          %v5144 = vmul.f32 %v5103, %v5114
          %v5145 = vmul.f32 %v5108, %v5114
          %v5146 = vmul.f32 %v5111, %v5114
          %v5147 = vld [vmem:[%s5] sm:$0xff]
          %v5148 = vld [vmem:[%s5 + $0x8] sm:$0xff]
          %v5149 = vpack.c.bf16 %v5116, %v5115
          %v5150 = vpack.c.bf16 %v5118, %v5117
          %v5151 = vpack.c.bf16 %v5120, %v5119
          %v5152 = vpack.c.bf16 %v5122, %v5121
          %v5153 = vpack.c.bf16 %v5124, %v5123
          %v5154 = vpack.c.bf16 %v5126, %v5125
          %v5155 = vpack.c.bf16 %v5128, %v5127
          %v5156 = vpack.c.bf16 %v5130, %v5129
          %v5157 = vpack.c.bf16 %v5132, %v5131
          %v5158 = vpack.c.bf16 %v5134, %v5133
          %v5159 = vpack.c.bf16 %v5136, %v5135
          %v5160 = vpack.c.bf16 %v5138, %v5137
          %v5161 = vpack.c.bf16 %v5140, %v5139
          %v5162 = vpack.c.bf16 %v5142, %v5141
          %v5163 = vpack.c.bf16 %v5144, %v5143
          %v5164 = vpack.c.bf16 %v5146, %v5145
          %v5165 = vld [vmem:[%s6] sm:$0xff]
          %v5166 = vld [vmem:[%s6 + $0x8] sm:$0xff]
          %5168 = vset.pattern.permute.xlu0 0
          %5169 = vperm.xlu0 %5168, %v5165
          %v5170 = vpop.permute.xlu0 %5169
          %5173 = vset.pattern.permute.xlu0 0
          %5174 = vperm.xlu0 %5173, %v5166
          %v5175 = vpop.permute.xlu0 %5174
          %v5179 = vunpack.c.l.b16 %v5147
          %v5180 = vunpack.c.h.b16 %v5147
          %v5181 = vunpack.c.l.b16 %v5148
          %v5182 = vunpack.c.h.b16 %v5148
          %v5183 = vpack.c.b16 %v5181, %v5179
          %v5184 = vpack.c.b16 %v5182, %v5180
          %5187 = vmatprep.subr.bf16.mxu0 0
          %5188 = vmatpush1.bf16.msra.mxu0 %v5149
          %5189 = vmatprep.subr.bf16.mxu0 0
          %5190 = vmatpush1.bf16.msra.mxu0 %v5150
          %5191 = vmatprep.subr.bf16.mxu0 0
          %5192 = vmatpush1.bf16.msra.mxu0 %v5151
          %5193 = vmatprep.subr.bf16.mxu0 0
          %5194 = vmatpush1.bf16.msra.mxu0 %v5152
          %5195 = vmatprep.subr.bf16.mxu0 0
          %5196 = vmatpush1.bf16.msra.mxu0 %v5153
          %5197 = vmatprep.subr.bf16.mxu0 0
          %5198 = vmatpush1.bf16.msra.mxu0 %v5154
          %5199 = vmatprep.subr.bf16.mxu0 0
          %5200 = vmatpush1.bf16.msra.mxu0 %v5155
          %5201 = vmatprep.subr.bf16.mxu0 0
          %5202 = vmatpush1.bf16.msra.mxu0 %v5156
          %5203 = vmatprep.subr.bf16.mxu0 0
          %5204 = vmatpush1.bf16.msra.mxu0 %v5157
          %5205 = vmatprep.subr.bf16.mxu0 0
          %5206 = vmatpush1.bf16.msra.mxu0 %v5158
          %5207 = vmatprep.subr.bf16.mxu0 0
          %5208 = vmatpush1.bf16.msra.mxu0 %v5159
          %5209 = vmatprep.subr.bf16.mxu0 0
          %5210 = vmatpush1.bf16.msra.mxu0 %v5160
          %5211 = vmatprep.subr.bf16.mxu0 0
          %5212 = vmatpush1.bf16.msra.mxu0 %v5161
          %5213 = vmatprep.subr.bf16.mxu0 0
          %5214 = vmatpush1.bf16.msra.mxu0 %v5162
          %5215 = vmatprep.subr.bf16.mxu0 0
          %5216 = vmatpush1.bf16.msra.mxu0 %v5163
          %5217 = vmatprep.subr.bf16.mxu0 0
          %5218 = vmatpush1.bf16.msra.mxu0 %v5164
          %5219 = vmatprep.mubr.bf16.mxu0 %v5184
          %5220 = vmatmul.mubr.bf16.gmra.mrb[0].mxu0 %v5183
          %v5221 = vpop.f32.mrb[0].mxu0
          %v5222 = vadd.f32 %v5170, %v5221
          %v5223 = vpop.f32.mrb[0].mxu0
          %v5224 = vpop.f32.mrb[0].mxu0
          %v5225 = vadd.f32 %v5175, %v5224
          %v5226 = vpop.f32.mrb[0].mxu0
          %5227 = vdwg.mxu0
          %v5228 = vadd.f32 %v5222, %v391
          %v5229 = vadd.f32 %v5225, %v392
          %5230 = vst [vmem:[%s374] sm:$0xff] %v5228
          %5231 = vst [vmem:[%s374 + $0x8] sm:$0xff] %v5229
        $region98: #{tpu_custom_call.1} parent=81 // pred_fallthru
          _
        %s5232 = sand.u32 %s227, 1
        %s5233 = scalar_lea.sflag [#allocation6], %s5232
        %s5234 = sand.u32 %s227, 1
        %s5235 = smul.addr %s5234, 16
        %s5236 = scalar_lea.vmem [#allocation5], %s5235
        // Predicated region
        $region99: #{tpu_custom_call.1} parent=81 // pred_check
          %p5237 = pneg %p237
        $region100: #{tpu_custom_call.1} parent=81 // pred_check_branch
          %5239 = sbr.rel (%p5237) target = $region102
        $region101: #{tpu_custom_call.1} parent=81 // pred_region
          %s5240 = ssub.s32 %s26, 2
          %p5241 = scmp.gt.s32.totalorder %s5240, 0
          %s5242 = scalar_select %p5241, %s5240, 0
          %s5244 = ssub.s32 256, 256
          %5245 = vsyncadd %s5233, %s5244
          %s5246 = smul.addr %s25, 4
          %s5247 = sadd.s32 %s5242, %s5246
          %s5248 = smul.addr %s5247, 128
          %s5249 = scalar_lea.hbm %s7, %s5248
          %s5250 = sshll.u32 %s5236, 4
          %s5251 = int_to_ptr.vmem [resolvable:$true] %s5250
          %5256 = dma.vmem_to_hbm [thread:$0]  %s5251, 256, %s5249, %s5233, 128, 256, 8
        $region102: #{tpu_custom_call.1} parent=81 // pred_fallthru
          _
      $region82: #{tpu_custom_call.1} parent=5 // pred_fallthru
        _
      %p5257 = scmp.le.s32.totalorder 2, %s16
      // Predicated region
      $region103: #{tpu_custom_call.1} parent=5 // pred_check
        %p5258 = pneg %p5257
      $region104: #{tpu_custom_call.1} parent=5 // pred_check_branch
        %5260 = sbr.rel (%p5258) target = $region106
      $region105: #{tpu_custom_call.1} parent=5 // pred_region
        %s5261 = ssub.s32 %s16, 2
        // Predicated region
        $region107: #{tpu_custom_call.1} parent=105 // pred_check
          %p5262 = pneg %p243
        $region108: #{tpu_custom_call.1} parent=105 // pred_check_branch
          %5264 = sbr.rel (%p5262) target = $region110
        $region109: #{tpu_custom_call.1} parent=105 // pred_region
          %s5265 = sand.u32 %s228, 1
          %s5266 = scalar_lea.sflag [#allocation6], %s5265
          %s5267 = sand.u32 %s228, 1
          %s5268 = smul.addr %s5267, 16
          %s5269 = scalar_lea.vmem [#allocation5], %s5268
          %5270 = dma.done %s5266, 256
        $region110: #{tpu_custom_call.1} parent=105 // pred_fallthru
          _
      $region106: #{tpu_custom_call.1} parent=5 // pred_fallthru
        _
    $region6: #{tpu_custom_call.1} parent=1 // loop_footer
      %s20 = sadd.s32 1, %s16
    $region7: #{tpu_custom_call.1} parent=1 // loop_footer_branch
      %15 = sbr.rel target = $region3
    $region8: #{tpu_custom_call.1} parent=1 // loop_exit
      _
    %5271 = vsyncpa [#allocation6], 1
    %s5272 = scalar_lea.sflag [#allocation6], 1
    %5273 = vsyncpa %s5272, 1

</llo_original>
